<compile_context>
chip_gen: v5e
topology: v5e:2x2
jax: 0.10.0
libtpu: 0.0.40
codegen_flags: <defaults>
</compile_context>

<pallas_src>
import math

import numpy as np
import jax
import jax.numpy as jnp
from jax.experimental import pallas as pl
from jax.experimental.pallas import tpu as pltpu

# ----------------------------- model config ---------------------------------
B = 2                 # batch
IMG_C = 3             # input channels
TEMPLATE_SZ = 32      # template image H = W
SEARCH_SZ = 64        # search image H = W
PATCH = 16            # patch size (conv kernel = stride)
EMBED = 32            # transformer embedding dim
HEADS = 4             # attention heads
HEAD_DIM = EMBED // HEADS
DEPTH = 2             # transformer blocks
MLP_HID = 64          # MLP hidden dim
HEAD_MID = 16         # corner-head mid channels

NUM_TOKEN_Z = (TEMPLATE_SZ // PATCH) ** 2          # 4
NUM_TOKEN_X = (SEARCH_SZ // PATCH) ** 2            # 16
N_TOK = NUM_TOKEN_Z + NUM_TOKEN_X                  # 20
FEAT_SZ_S = SEARCH_SZ // PATCH                     # 4
FEAT_LEN_S = FEAT_SZ_S ** 2                        # 16
PATCH_DIM = IMG_C * PATCH * PATCH                  # 768


# ----------------------------- fused Pallas kernel ---------------------------
def _fused_kernel(
    # per-sample input (block (1, N_TOK, PATCH_DIM))
    tok_ref,
    # shared weights / constants (full blocks, same for every grid step)
    pos_ref, patch_w_ref, patch_b_ref,
    ln1_g_ref, ln1_b_ref, qkv_w_ref, qkv_b_ref, proj_w_ref, proj_b_ref,
    ln2_g_ref, ln2_b_ref, fc1_w_ref, fc1_b_ref, fc2_w_ref, fc2_b_ref,
    ln_f_g_ref, ln_f_b_ref,
    hc1_w_ref, hc1_b_ref, hc2_w_ref, hc2_b_ref, shift_ref,
    cx_ref, cy_ref,
    cls1_w_ref, cls1_b_ref, cls2_w_ref, cls2_b_ref,
    # per-sample outputs
    before_norm_ref, score_ref, box_ref, logits_ref,
):
    f32 = jnp.float32
    bf16 = jnp.bfloat16

    def mm(a, b):                                   # a @ b, bf16 operands, f32 acc
        return jnp.dot(a.astype(bf16), b.astype(bf16), preferred_element_type=f32)

    def mm_nt(a, b):                                # a @ b.T without explicit transpose
        return jax.lax.dot_general(
            a.astype(bf16), b.astype(bf16),
            dimension_numbers=(((1,), (1,)), ((), ())),
            preferred_element_type=f32)

    def layernorm(x, g, b):
        mu = jnp.mean(x, axis=-1, keepdims=True)
        var = jnp.mean((x - mu) ** 2, axis=-1, keepdims=True)
        return (x - mu) * jax.lax.rsqrt(var + 1e-5) * g + b

    # ---- patch embed + positional embedding (template & search tokens concatenated)
    x = mm(tok_ref[0], patch_w_ref[...]) + patch_b_ref[...] + pos_ref[...]   # (N_TOK, E)

    scale = 1.0 / math.sqrt(HEAD_DIM)

    # ---- transformer blocks (static unroll over DEPTH, heads split in-register)
    for d in range(DEPTH):
        h = layernorm(x, ln1_g_ref[d], ln1_b_ref[d])
        qkv = mm(h, qkv_w_ref[d]) + qkv_b_ref[d]                             # (N, 3E)
        head_outs = []
        for hh in range(HEADS):
            q = qkv[:, hh * HEAD_DIM:(hh + 1) * HEAD_DIM]
            k = qkv[:, EMBED + hh * HEAD_DIM:EMBED + (hh + 1) * HEAD_DIM]
            v = qkv[:, 2 * EMBED + hh * HEAD_DIM:2 * EMBED + (hh + 1) * HEAD_DIM]
            s = mm_nt(q, k) * scale                                          # (N, N)
            m = jnp.max(s, axis=-1, keepdims=True)
            e = jnp.exp(s - m)
            p = e * pl.reciprocal(jnp.sum(e, axis=-1, keepdims=True), approx=True)
            head_outs.append(mm(p, v))                                       # (N, D)
        o = jnp.concatenate(head_outs, axis=-1)                              # (N, E)
        o = mm(o, proj_w_ref[d]) + proj_b_ref[d]
        x = x + o
        h = layernorm(x, ln2_g_ref[d], ln2_b_ref[d])
        h = jax.nn.gelu(mm(h, fc1_w_ref[d]) + fc1_b_ref[d])                  # (N, MLP_HID)
        h = mm(h, fc2_w_ref[d]) + fc2_b_ref[d]
        x = x + h

    before_norm_ref[0] = x                                                   # (N_TOK, E)

    # ---- cls head: mean-pool over tokens + 2-layer MLP (relu)
    pooled = jnp.mean(x, axis=0, keepdims=True)                              # (1, E)
    c = jnp.maximum(mm(pooled, cls1_w_ref[...]) + cls1_b_ref[...], 0.0)
    logits_ref[0] = mm(c, cls2_w_ref[...]) + cls2_b_ref[...]                 # (1, 1)

    # ---- final LayerNorm + corner box head (tl/br branches fused)
    enc = layernorm(x, ln_f_g_ref[...], ln_f_b_ref[...])                     # (N_TOK, E)
    # 3x3 conv (pad=1) on the 4x4 search-token feature map as 9 shifted matmuls.
    # shift_ref[t] is a (HW, N_TOK) 0/1 matrix that both selects the search
    # tokens and applies the (di,dj) spatial shift with zero padding.
    hconv = jnp.zeros((FEAT_LEN_S, 2 * HEAD_MID), f32)
    for t in range(9):
        a = mm(enc, hc1_w_ref[t])                                            # (N_TOK, 2*mid)
        hconv = hconv + mm(shift_ref[t], a)                                  # (HW, 2*mid)
    hconv = jnp.maximum(hconv + hc1_b_ref[...], 0.0)
    score = mm(hconv, hc2_w_ref[...]) + hc2_b_ref[...]                       # (HW, 2): cols {tl, br}
    score_ref[0] = score

    # soft-argmax for both branches at once (reduce over the HW / sublane axis)
    smax = jnp.max(score, axis=0, keepdims=True)                             # (1, 2)
    e = jnp.exp(score - smax)
    p = e * pl.reciprocal(jnp.sum(e, axis=0, keepdims=True), approx=True)    # (HW, 2)
    exp_x = jnp.sum(p * cx_ref[...], axis=0, keepdims=True)                  # (1, 2): [tl_x, br_x]
    exp_y = jnp.sum(p * cy_ref[...], axis=0, keepdims=True)                  # (1, 2): [tl_y, br_y]
    box_ref[0] = jnp.concatenate([exp_x, exp_y], axis=0)                     # (2, 2): rows {x, y}


def fused_forward_call(params, consts, tokens_in):
    Bn = tokens_in.shape[0]
    weights = [
        params["pos_embed"], params["patch_w"], params["patch_b"],
        params["ln1_g"], params["ln1_b"], params["qkv_w"], params["qkv_b"],
        params["proj_w"], params["proj_b"], params["ln2_g"], params["ln2_b"],
        params["fc1_w"], params["fc1_b"], params["fc2_w"], params["fc2_b"],
        params["ln_f_g"], params["ln_f_b"],
        params["head_c1_w"], params["head_c1_b"],
        params["head_c2_w"], params["head_c2_b"],
        consts["shift"], consts["coord_x"], consts["coord_y"],
        params["cls1_w"], params["cls1_b"], params["cls2_w"], params["cls2_b"],
    ]

    def _broadcast_spec(arr):
        nd = arr.ndim
        return pl.BlockSpec(arr.shape, lambda b, _nd=nd: (0,) * _nd)

    in_specs = [pl.BlockSpec((1, N_TOK, PATCH_DIM), lambda b: (b, 0, 0))]
    in_specs += [_broadcast_spec(w) for w in weights]

    out_shape = (
        jax.ShapeDtypeStruct((Bn, N_TOK, EMBED), jnp.float32),    # before_norm
        jax.ShapeDtypeStruct((Bn, FEAT_LEN_S, 2), jnp.float32),   # score maps, cols {tl, br}
        jax.ShapeDtypeStruct((Bn, 2, 2), jnp.float32),            # soft-argmax: rows {x, y}, cols {tl, br}
        jax.ShapeDtypeStruct((Bn, 1, 1), jnp.float32),            # cls logits
    )
    out_specs = (
        pl.BlockSpec((1, N_TOK, EMBED), lambda b: (b, 0, 0)),
        pl.BlockSpec((1, FEAT_LEN_S, 2), lambda b: (b, 0, 0)),
        pl.BlockSpec((1, 2, 2), lambda b: (b, 0, 0)),
        pl.BlockSpec((1, 1, 1), lambda b: (b, 0, 0)),
    )
    return pl.pallas_call(
        _fused_kernel,
        out_shape=out_shape,
        grid=(Bn,),
        in_specs=in_specs,
        out_specs=out_specs,
        compiler_params=pltpu.CompilerParams(
            dimension_semantics=("parallel",)),
    )(tokens_in, *weights)


# ----------------------------- glue helpers ----------------------------------
def patchify(img, patch):
    """NCHW image -> (B, num_patches, C*patch*patch) token slab (stride==kernel)."""
    Bn, C, H, W = img.shape
    x = img.reshape(Bn, C, H // patch, patch, W // patch, patch)
    x = x.transpose(0, 2, 4, 1, 3, 5)                 # (B, H/P, W/P, C, P, P)
    return x.reshape(Bn, (H // patch) * (W // patch), C * patch * patch)


def box_xyxy_to_cxcywh(box):
    x0, y0, x1, y1 = box[..., 0], box[..., 1], box[..., 2], box[..., 3]
    return jnp.stack([(x0 + x1) * 0.5, (y0 + y1) * 0.5, x1 - x0, y1 - y0], axis=-1)


def build_constants():
    """Shift/select matrices for the 3x3 conv (pad=1) and soft-argmax coords."""
    S = np.zeros((9, FEAT_LEN_S, N_TOK), np.float32)
    for di in range(3):
        for dj in range(3):
            dd = di * 3 + dj
            for p in range(FEAT_LEN_S):
                i, j = divmod(p, FEAT_SZ_S)
                si, sj = i + di - 1, j + dj - 1
                if 0 <= si < FEAT_SZ_S and 0 <= sj < FEAT_SZ_S:
                    S[dd, p, NUM_TOKEN_Z + si * FEAT_SZ_S + sj] = 1.0
    idx = np.arange(FEAT_LEN_S, dtype=np.float32)
    coord_x = ((idx % FEAT_SZ_S) / FEAT_SZ_S).reshape(FEAT_LEN_S, 1)
    coord_y = ((idx // FEAT_SZ_S) / FEAT_SZ_S).reshape(FEAT_LEN_S, 1)
    return {
        "shift": jnp.asarray(S),
        "coord_x": jnp.asarray(coord_x),
        "coord_y": jnp.asarray(coord_y),
    }


# ----------------------------- parameters ------------------------------------
def _init(key, shape, scale=0.02):
    return scale * jax.random.normal(key, shape, jnp.float32)


def init_params(key):
    keys = iter(jax.random.split(key, 64))
    p = {}
    p["patch_w"] = _init(next(keys), (PATCH_DIM, EMBED))
    p["patch_b"] = jnp.zeros((1, EMBED), jnp.float32)
    pos_z = _init(next(keys), (NUM_TOKEN_Z, EMBED))
    pos_x = _init(next(keys), (NUM_TOKEN_X, EMBED))
    p["pos_embed"] = jnp.concatenate([pos_z, pos_x], axis=0)        # (N_TOK, E)

    def stack(shape):
        return jnp.stack([_init(next(keys), shape) for _ in range(DEPTH)])

    # transformer blocks, weights stacked along DEPTH so one kernel holds them all
    p["ln1_g"] = jnp.ones((DEPTH, 1, EMBED), jnp.float32)
    p["ln1_b"] = jnp.zeros((DEPTH, 1, EMBED), jnp.float32)
    p["qkv_w"] = stack((EMBED, 3 * EMBED))
    p["qkv_b"] = jnp.zeros((DEPTH, 1, 3 * EMBED), jnp.float32)
    p["proj_w"] = stack((EMBED, EMBED))
    p["proj_b"] = jnp.zeros((DEPTH, 1, EMBED), jnp.float32)
    p["ln2_g"] = jnp.ones((DEPTH, 1, EMBED), jnp.float32)
    p["ln2_b"] = jnp.zeros((DEPTH, 1, EMBED), jnp.float32)
    p["fc1_w"] = stack((EMBED, MLP_HID))
    p["fc1_b"] = jnp.zeros((DEPTH, 1, MLP_HID), jnp.float32)
    p["fc2_w"] = stack((MLP_HID, EMBED))
    p["fc2_b"] = jnp.zeros((DEPTH, 1, EMBED), jnp.float32)
    p["ln_f_g"] = jnp.ones((1, EMBED), jnp.float32)
    p["ln_f_b"] = jnp.zeros((1, EMBED), jnp.float32)

    # corner box head: tl/br 3x3 conv weights fused along the output dim,
    # 1x1 conv weights fused into a block-diagonal (2*mid, 2) matrix.
    tl_c1 = _init(next(keys), (9, EMBED, HEAD_MID))
    br_c1 = _init(next(keys), (9, EMBED, HEAD_MID))
    p["head_c1_w"] = jnp.concatenate([tl_c1, br_c1], axis=-1)        # (9, E, 2*mid)
    p["head_c1_b"] = jnp.zeros((1, 2 * HEAD_MID), jnp.float32)
    tl_c2 = _init(next(keys), (HEAD_MID, 1))
    br_c2 = _init(next(keys), (HEAD_MID, 1))
    c2 = jnp.zeros((2 * HEAD_MID, 2), jnp.float32)
    c2 = c2.at[:HEAD_MID, 0:1].set(tl_c2).at[HEAD_MID:, 1:2].set(br_c2)
    p["head_c2_w"] = c2
    p["head_c2_b"] = jnp.zeros((1, 2), jnp.float32)

    # cls head (MLP on mean-pooled 'before_norm' features)
    p["cls1_w"] = _init(next(keys), (EMBED, EMBED))
    p["cls1_b"] = jnp.zeros((1, EMBED), jnp.float32)
    p["cls2_w"] = _init(next(keys), (EMBED, 1))
    p["cls2_b"] = jnp.zeros((1, 1), jnp.float32)
    return p


# ----------------------------- forward ----------------------------------------
def focustrack_forward(params, consts, template, search, training=True):
    Bn = template.shape[0]
    zt = patchify(template, PATCH)                              # (B, Nz, 768)
    xt = patchify(search, PATCH)                                # (B, Nx, 768)
    tokens_in = jnp.concatenate([zt, xt], axis=1)               # (B, N_TOK, 768)

    before_norm, score, box_exp, logits = fused_forward_call(params, consts, tokens_in)

    # assemble outputs (tiny elementwise glue)
    tlx, brx = box_exp[:, 0, 0], box_exp[:, 0, 1]
    tly, bry = box_exp[:, 1, 0], box_exp[:, 1, 1]
    pred_box = jnp.stack([tlx, tly, brx, bry], axis=-1)         # (B, 4) xyxy
    outputs_coord = box_xyxy_to_cxcywh(pred_box).reshape(Bn, 1, 4)
    score_map = jnp.transpose(score, (0, 2, 1)).reshape(Bn, 2, FEAT_SZ_S, FEAT_SZ_S)

    # decoder=None path: masks_x = pred_masks_full = None (decoder unspecified)
    out = {
        "pred_boxes": outputs_coord,
        "score_map": score_map,
        "logits": logits.reshape(Bn, 1),
        "before_norm": before_norm,
    }
    return out


# ----------------------------- main -------------------------------------------
if __name__ == "__main__":
    key = jax.random.PRNGKey(0)
    pkey, zkey, xkey = jax.random.split(key, 3)
    params = init_params(pkey)
    consts = build_constants()
    template = jax.random.normal(zkey, (B, IMG_C, TEMPLATE_SZ, TEMPLATE_SZ), jnp.float32)
    search = jax.random.normal(xkey, (B, IMG_C, SEARCH_SZ, SEARCH_SZ), jnp.float32)

    fwd = jax.jit(focustrack_forward)
    out = fwd(params, consts, template, search)
    jax.block_until_ready(out)

    assert out["pred_boxes"].shape == (B, 1, 4)
    assert out["score_map"].shape == (B, 2, FEAT_SZ_S, FEAT_SZ_S)
    assert out["logits"].shape == (B, 1)
    assert out["before_norm"].shape == (B, N_TOK, EMBED)
    print("KERNEL_OK")
</pallas_src>

<mosaic_0001>
module attributes {stable_mosaic.version = 11 : i64} {
  func.func @_fused_kernel(%arg0: i32, %arg1: memref<1x20x768xf32, #tpu.memory_space<vmem>>, %arg2: memref<20x32xf32, #tpu.memory_space<vmem>>, %arg3: memref<768x32xf32, #tpu.memory_space<vmem>>, %arg4: memref<1x32xf32, #tpu.memory_space<vmem>>, %arg5: memref<2x1x32xf32, #tpu.memory_space<vmem>>, %arg6: memref<2x1x32xf32, #tpu.memory_space<vmem>>, %arg7: memref<2x32x96xf32, #tpu.memory_space<vmem>>, %arg8: memref<2x1x96xf32, #tpu.memory_space<vmem>>, %arg9: memref<2x32x32xf32, #tpu.memory_space<vmem>>, %arg10: memref<2x1x32xf32, #tpu.memory_space<vmem>>, %arg11: memref<2x1x32xf32, #tpu.memory_space<vmem>>, %arg12: memref<2x1x32xf32, #tpu.memory_space<vmem>>, %arg13: memref<2x32x64xf32, #tpu.memory_space<vmem>>, %arg14: memref<2x1x64xf32, #tpu.memory_space<vmem>>, %arg15: memref<2x64x32xf32, #tpu.memory_space<vmem>>, %arg16: memref<2x1x32xf32, #tpu.memory_space<vmem>>, %arg17: memref<1x32xf32, #tpu.memory_space<vmem>>, %arg18: memref<1x32xf32, #tpu.memory_space<vmem>>, %arg19: memref<9x32x32xf32, #tpu.memory_space<vmem>>, %arg20: memref<1x32xf32, #tpu.memory_space<vmem>>, %arg21: memref<32x2xf32, #tpu.memory_space<vmem>>, %arg22: memref<1x2xf32, #tpu.memory_space<vmem>>, %arg23: memref<9x16x20xf32, #tpu.memory_space<vmem>>, %arg24: memref<16x1xf32, #tpu.memory_space<vmem>>, %arg25: memref<16x1xf32, #tpu.memory_space<vmem>>, %arg26: memref<32x32xf32, #tpu.memory_space<vmem>>, %arg27: memref<1x32xf32, #tpu.memory_space<vmem>>, %arg28: memref<32x1xf32, #tpu.memory_space<vmem>>, %arg29: memref<1x1xf32, #tpu.memory_space<vmem>>, %arg30: memref<1x20x32xf32, #tpu.memory_space<vmem>>, %arg31: memref<1x16x2xf32, #tpu.memory_space<vmem>>, %arg32: memref<1x2x2xf32, #tpu.memory_space<vmem>>, %arg33: memref<1x1x1xf32, #tpu.memory_space<vmem>>) attributes {dimension_semantics = [#tpu.dimension_semantics<parallel>], iteration_bounds = array<i64: 2>, scalar_prefetch = 0 : i64, scratch_operands = 0 : i64, tpu.core_type = #tpu.core_type<tc>, window_params = [{transform_indices = @transform_0, window_bounds = array<i64: 1, 20, 768>}, {pipeline_mode = #tpu.pipeline_mode<synchronous>, transform_indices = @transform_1, window_bounds = array<i64: 20, 32>}, {pipeline_mode = #tpu.pipeline_mode<synchronous>, transform_indices = @transform_2, window_bounds = array<i64: 768, 32>}, {pipeline_mode = #tpu.pipeline_mode<synchronous>, transform_indices = @transform_3, window_bounds = array<i64: 1, 32>}, {pipeline_mode = #tpu.pipeline_mode<synchronous>, transform_indices = @transform_4, window_bounds = array<i64: 2, 1, 32>}, {pipeline_mode = #tpu.pipeline_mode<synchronous>, transform_indices = @transform_5, window_bounds = array<i64: 2, 1, 32>}, {pipeline_mode = #tpu.pipeline_mode<synchronous>, transform_indices = @transform_6, window_bounds = array<i64: 2, 32, 96>}, {pipeline_mode = #tpu.pipeline_mode<synchronous>, transform_indices = @transform_7, window_bounds = array<i64: 2, 1, 96>}, {pipeline_mode = #tpu.pipeline_mode<synchronous>, transform_indices = @transform_8, window_bounds = array<i64: 2, 32, 32>}, {pipeline_mode = #tpu.pipeline_mode<synchronous>, transform_indices = @transform_9, window_bounds = array<i64: 2, 1, 32>}, {pipeline_mode = #tpu.pipeline_mode<synchronous>, transform_indices = @transform_10, window_bounds = array<i64: 2, 1, 32>}, {pipeline_mode = #tpu.pipeline_mode<synchronous>, transform_indices = @transform_11, window_bounds = array<i64: 2, 1, 32>}, {pipeline_mode = #tpu.pipeline_mode<synchronous>, transform_indices = @transform_12, window_bounds = array<i64: 2, 32, 64>}, {pipeline_mode = #tpu.pipeline_mode<synchronous>, transform_indices = @transform_13, window_bounds = array<i64: 2, 1, 64>}, {pipeline_mode = #tpu.pipeline_mode<synchronous>, transform_indices = @transform_14, window_bounds = array<i64: 2, 64, 32>}, {pipeline_mode = #tpu.pipeline_mode<synchronous>, transform_indices = @transform_15, window_bounds = array<i64: 2, 1, 32>}, {pipeline_mode = #tpu.pipeline_mode<synchronous>, transform_indices = @transform_16, window_bounds = array<i64: 1, 32>}, {pipeline_mode = #tpu.pipeline_mode<synchronous>, transform_indices = @transform_17, window_bounds = array<i64: 1, 32>}, {pipeline_mode = #tpu.pipeline_mode<synchronous>, transform_indices = @transform_18, window_bounds = array<i64: 9, 32, 32>}, {pipeline_mode = #tpu.pipeline_mode<synchronous>, transform_indices = @transform_19, window_bounds = array<i64: 1, 32>}, {pipeline_mode = #tpu.pipeline_mode<synchronous>, transform_indices = @transform_20, window_bounds = array<i64: 32, 2>}, {pipeline_mode = #tpu.pipeline_mode<synchronous>, transform_indices = @transform_21, window_bounds = array<i64: 1, 2>}, {pipeline_mode = #tpu.pipeline_mode<synchronous>, transform_indices = @transform_22, window_bounds = array<i64: 9, 16, 20>}, {pipeline_mode = #tpu.pipeline_mode<synchronous>, transform_indices = @transform_23, window_bounds = array<i64: 16, 1>}, {pipeline_mode = #tpu.pipeline_mode<synchronous>, transform_indices = @transform_24, window_bounds = array<i64: 16, 1>}, {pipeline_mode = #tpu.pipeline_mode<synchronous>, transform_indices = @transform_25, window_bounds = array<i64: 32, 32>}, {pipeline_mode = #tpu.pipeline_mode<synchronous>, transform_indices = @transform_26, window_bounds = array<i64: 1, 32>}, {pipeline_mode = #tpu.pipeline_mode<synchronous>, transform_indices = @transform_27, window_bounds = array<i64: 32, 1>}, {pipeline_mode = #tpu.pipeline_mode<synchronous>, transform_indices = @transform_28, window_bounds = array<i64: 1, 1>}, {transform_indices = @transform_29, window_bounds = array<i64: 1, 20, 32>}, {transform_indices = @transform_30, window_bounds = array<i64: 1, 16, 2>}, {transform_indices = @transform_31, window_bounds = array<i64: 1, 2, 2>}, {transform_indices = @transform_32, window_bounds = array<i64: 1, 1, 1>}]} {
    %c0 = arith.constant 0 : index
    %c0_0 = arith.constant 0 : index
    %c0_1 = arith.constant 0 : index
    %0 = vector.load %arg1[%c0, %c0_0, %c0_1] : memref<1x20x768xf32, #tpu.memory_space<vmem>>, vector<1x20x768xf32>
    %1 = vector.shape_cast %0 : vector<1x20x768xf32> to vector<20x768xf32>
    %c0_2 = arith.constant 0 : index
    %c0_3 = arith.constant 0 : index
    %2 = vector.load %arg3[%c0_2, %c0_3] : memref<768x32xf32, #tpu.memory_space<vmem>>, vector<768x32xf32>
    %3 = arith.truncf %1 : vector<20x768xf32> to vector<20x768xbf16>
    %4 = arith.truncf %2 : vector<768x32xf32> to vector<768x32xbf16>
    %cst = arith.constant dense<0.000000e+00> : vector<20x32xf32>
    %5 = tpu.matmul %3, %4, %cst {dimension_numbers = #tpu.dot_dimension_numbers<[1], [0], [0], [1], [0, 0, 1, 1], [], []>} : vector<20x768xbf16>, vector<768x32xbf16>, vector<20x32xf32> -> vector<20x32xf32>
    %c0_4 = arith.constant 0 : index
    %c0_5 = arith.constant 0 : index
    %6 = vector.load %arg4[%c0_4, %c0_5] : memref<1x32xf32, #tpu.memory_space<vmem>>, vector<1x32xf32>
    %7 = vector.broadcast %6 : vector<1x32xf32> to vector<20x32xf32>
    %8 = arith.addf %5, %7 : vector<20x32xf32>
    %c0_6 = arith.constant 0 : index
    %c0_7 = arith.constant 0 : index
    %9 = vector.load %arg2[%c0_6, %c0_7] : memref<20x32xf32, #tpu.memory_space<vmem>>, vector<20x32xf32>
    %10 = arith.addf %8, %9 : vector<20x32xf32>
    %c0_8 = arith.constant 0 : index
    %c0_9 = arith.constant 0 : index
    %c0_10 = arith.constant 0 : index
    %11 = vector.load %arg5[%c0_8, %c0_9, %c0_10] : memref<2x1x32xf32, #tpu.memory_space<vmem>>, vector<1x1x32xf32>
    %12 = vector.shape_cast %11 : vector<1x1x32xf32> to vector<1x32xf32>
    %c0_11 = arith.constant 0 : index
    %c0_12 = arith.constant 0 : index
    %c0_13 = arith.constant 0 : index
    %13 = vector.load %arg6[%c0_11, %c0_12, %c0_13] : memref<2x1x32xf32, #tpu.memory_space<vmem>>, vector<1x1x32xf32>
    %14 = vector.shape_cast %13 : vector<1x1x32xf32> to vector<1x32xf32>
    %cst_14 = arith.constant dense<0.000000e+00> : vector<20xf32>
    %15 = vector.multi_reduction <add>, %10, %cst_14 [1] : vector<20x32xf32> to vector<20xf32>
    %16 = vector.shape_cast %15 : vector<20xf32> to vector<20x1xf32>
    %cst_15 = arith.constant 3.200000e+01 : f32
    %17 = vector.broadcast %cst_15 : f32 to vector<20x1xf32>
    %18 = arith.divf %16, %17 : vector<20x1xf32>
    %19 = vector.broadcast %18 : vector<20x1xf32> to vector<20x32xf32>
    %20 = arith.subf %10, %19 : vector<20x32xf32>
    %21 = arith.mulf %20, %20 : vector<20x32xf32>
    %cst_16 = arith.constant dense<0.000000e+00> : vector<20xf32>
    %22 = vector.multi_reduction <add>, %21, %cst_16 [1] : vector<20x32xf32> to vector<20xf32>
    %23 = vector.shape_cast %22 : vector<20xf32> to vector<20x1xf32>
    %cst_17 = arith.constant 3.200000e+01 : f32
    %24 = vector.broadcast %cst_17 : f32 to vector<20x1xf32>
    %25 = arith.divf %23, %24 : vector<20x1xf32>
    %26 = vector.broadcast %18 : vector<20x1xf32> to vector<20x32xf32>
    %27 = arith.subf %10, %26 : vector<20x32xf32>
    %cst_18 = arith.constant 9.99999974E-6 : f32
    %28 = vector.broadcast %cst_18 : f32 to vector<20x1xf32>
    %29 = arith.addf %25, %28 : vector<20x1xf32>
    %30 = math.rsqrt %29 : vector<20x1xf32>
    %31 = vector.broadcast %30 : vector<20x1xf32> to vector<20x32xf32>
    %32 = arith.mulf %27, %31 : vector<20x32xf32>
    %33 = vector.broadcast %12 : vector<1x32xf32> to vector<20x32xf32>
    %34 = arith.mulf %32, %33 : vector<20x32xf32>
    %35 = vector.broadcast %14 : vector<1x32xf32> to vector<20x32xf32>
    %36 = arith.addf %34, %35 : vector<20x32xf32>
    %c0_19 = arith.constant 0 : index
    %c0_20 = arith.constant 0 : index
    %c0_21 = arith.constant 0 : index
    %37 = vector.load %arg7[%c0_19, %c0_20, %c0_21] : memref<2x32x96xf32, #tpu.memory_space<vmem>>, vector<1x32x96xf32>
    %38 = vector.shape_cast %37 : vector<1x32x96xf32> to vector<32x96xf32>
    %39 = arith.truncf %36 : vector<20x32xf32> to vector<20x32xbf16>
    %40 = arith.truncf %38 : vector<32x96xf32> to vector<32x96xbf16>
    %cst_22 = arith.constant dense<0.000000e+00> : vector<20x96xf32>
    %41 = tpu.matmul %39, %40, %cst_22 {dimension_numbers = #tpu.dot_dimension_numbers<[1], [0], [0], [1], [0, 0, 1, 1], [], []>} : vector<20x32xbf16>, vector<32x96xbf16>, vector<20x96xf32> -> vector<20x96xf32>
    %c0_23 = arith.constant 0 : index
    %c0_24 = arith.constant 0 : index
    %c0_25 = arith.constant 0 : index
    %42 = vector.load %arg8[%c0_23, %c0_24, %c0_25] : memref<2x1x96xf32, #tpu.memory_space<vmem>>, vector<1x1x96xf32>
    %43 = vector.shape_cast %42 : vector<1x1x96xf32> to vector<1x96xf32>
    %44 = vector.broadcast %43 : vector<1x96xf32> to vector<20x96xf32>
    %45 = arith.addf %41, %44 : vector<20x96xf32>
    %46 = vector.extract_strided_slice %45 {offsets = [0, 0], sizes = [20, 8], strides = [1, 1]} : vector<20x96xf32> to vector<20x8xf32>
    %47 = vector.extract_strided_slice %45 {offsets = [0, 32], sizes = [20, 8], strides = [1, 1]} : vector<20x96xf32> to vector<20x8xf32>
    %48 = vector.extract_strided_slice %45 {offsets = [0, 64], sizes = [20, 8], strides = [1, 1]} : vector<20x96xf32> to vector<20x8xf32>
    %49 = arith.truncf %46 : vector<20x8xf32> to vector<20x8xbf16>
    %50 = arith.truncf %47 : vector<20x8xf32> to vector<20x8xbf16>
    %cst_26 = arith.constant dense<0.000000e+00> : vector<20x20xf32>
    %51 = tpu.matmul %49, %50, %cst_26 {dimension_numbers = #tpu.dot_dimension_numbers<[1], [1], [0], [0], [0, 0, 1, 0], [], []>} : vector<20x8xbf16>, vector<20x8xbf16>, vector<20x20xf32> -> vector<20x20xf32>
    %cst_27 = arith.constant 0.353553385 : f32
    %52 = vector.broadcast %cst_27 : f32 to vector<20x20xf32>
    %53 = arith.mulf %51, %52 : vector<20x20xf32>
    %cst_28 = arith.constant dense<0xFF800000> : vector<20xf32>
    %54 = vector.multi_reduction <maximumf>, %53, %cst_28 [1] : vector<20x20xf32> to vector<20xf32>
    %55 = vector.shape_cast %54 : vector<20xf32> to vector<20x1xf32>
    %56 = vector.broadcast %55 : vector<20x1xf32> to vector<20x20xf32>
    %57 = arith.subf %53, %56 : vector<20x20xf32>
    %58 = math.exp %57 : vector<20x20xf32>
    %cst_29 = arith.constant dense<0.000000e+00> : vector<20xf32>
    %59 = vector.multi_reduction <add>, %58, %cst_29 [1] : vector<20x20xf32> to vector<20xf32>
    %60 = vector.shape_cast %59 : vector<20xf32> to vector<20x1xf32>
    %61 = tpu.reciprocal %60 {approx = true} : vector<20x1xf32> -> vector<20x1xf32>
    %62 = vector.broadcast %61 : vector<20x1xf32> to vector<20x20xf32>
    %63 = arith.mulf %58, %62 : vector<20x20xf32>
    %64 = arith.truncf %63 : vector<20x20xf32> to vector<20x20xbf16>
    %65 = arith.truncf %48 : vector<20x8xf32> to vector<20x8xbf16>
    %cst_30 = arith.constant dense<0.000000e+00> : vector<20x8xf32>
    %66 = tpu.matmul %64, %65, %cst_30 {dimension_numbers = #tpu.dot_dimension_numbers<[1], [0], [0], [1], [0, 0, 1, 1], [], []>} : vector<20x20xbf16>, vector<20x8xbf16>, vector<20x8xf32> -> vector<20x8xf32>
    %67 = vector.extract_strided_slice %45 {offsets = [0, 8], sizes = [20, 8], strides = [1, 1]} : vector<20x96xf32> to vector<20x8xf32>
    %68 = vector.extract_strided_slice %45 {offsets = [0, 40], sizes = [20, 8], strides = [1, 1]} : vector<20x96xf32> to vector<20x8xf32>
    %69 = vector.extract_strided_slice %45 {offsets = [0, 72], sizes = [20, 8], strides = [1, 1]} : vector<20x96xf32> to vector<20x8xf32>
    %70 = arith.truncf %67 : vector<20x8xf32> to vector<20x8xbf16>
    %71 = arith.truncf %68 : vector<20x8xf32> to vector<20x8xbf16>
    %cst_31 = arith.constant dense<0.000000e+00> : vector<20x20xf32>
    %72 = tpu.matmul %70, %71, %cst_31 {dimension_numbers = #tpu.dot_dimension_numbers<[1], [1], [0], [0], [0, 0, 1, 0], [], []>} : vector<20x8xbf16>, vector<20x8xbf16>, vector<20x20xf32> -> vector<20x20xf32>
    %cst_32 = arith.constant 0.353553385 : f32
    %73 = vector.broadcast %cst_32 : f32 to vector<20x20xf32>
    %74 = arith.mulf %72, %73 : vector<20x20xf32>
    %cst_33 = arith.constant dense<0xFF800000> : vector<20xf32>
    %75 = vector.multi_reduction <maximumf>, %74, %cst_33 [1] : vector<20x20xf32> to vector<20xf32>
    %76 = vector.shape_cast %75 : vector<20xf32> to vector<20x1xf32>
    %77 = vector.broadcast %76 : vector<20x1xf32> to vector<20x20xf32>
    %78 = arith.subf %74, %77 : vector<20x20xf32>
    %79 = math.exp %78 : vector<20x20xf32>
    %cst_34 = arith.constant dense<0.000000e+00> : vector<20xf32>
    %80 = vector.multi_reduction <add>, %79, %cst_34 [1] : vector<20x20xf32> to vector<20xf32>
    %81 = vector.shape_cast %80 : vector<20xf32> to vector<20x1xf32>
    %82 = tpu.reciprocal %81 {approx = true} : vector<20x1xf32> -> vector<20x1xf32>
    %83 = vector.broadcast %82 : vector<20x1xf32> to vector<20x20xf32>
    %84 = arith.mulf %79, %83 : vector<20x20xf32>
    %85 = arith.truncf %84 : vector<20x20xf32> to vector<20x20xbf16>
    %86 = arith.truncf %69 : vector<20x8xf32> to vector<20x8xbf16>
    %cst_35 = arith.constant dense<0.000000e+00> : vector<20x8xf32>
    %87 = tpu.matmul %85, %86, %cst_35 {dimension_numbers = #tpu.dot_dimension_numbers<[1], [0], [0], [1], [0, 0, 1, 1], [], []>} : vector<20x20xbf16>, vector<20x8xbf16>, vector<20x8xf32> -> vector<20x8xf32>
    %88 = vector.extract_strided_slice %45 {offsets = [0, 16], sizes = [20, 8], strides = [1, 1]} : vector<20x96xf32> to vector<20x8xf32>
    %89 = vector.extract_strided_slice %45 {offsets = [0, 48], sizes = [20, 8], strides = [1, 1]} : vector<20x96xf32> to vector<20x8xf32>
    %90 = vector.extract_strided_slice %45 {offsets = [0, 80], sizes = [20, 8], strides = [1, 1]} : vector<20x96xf32> to vector<20x8xf32>
    %91 = arith.truncf %88 : vector<20x8xf32> to vector<20x8xbf16>
    %92 = arith.truncf %89 : vector<20x8xf32> to vector<20x8xbf16>
    %cst_36 = arith.constant dense<0.000000e+00> : vector<20x20xf32>
    %93 = tpu.matmul %91, %92, %cst_36 {dimension_numbers = #tpu.dot_dimension_numbers<[1], [1], [0], [0], [0, 0, 1, 0], [], []>} : vector<20x8xbf16>, vector<20x8xbf16>, vector<20x20xf32> -> vector<20x20xf32>
    %cst_37 = arith.constant 0.353553385 : f32
    %94 = vector.broadcast %cst_37 : f32 to vector<20x20xf32>
    %95 = arith.mulf %93, %94 : vector<20x20xf32>
    %cst_38 = arith.constant dense<0xFF800000> : vector<20xf32>
    %96 = vector.multi_reduction <maximumf>, %95, %cst_38 [1] : vector<20x20xf32> to vector<20xf32>
    %97 = vector.shape_cast %96 : vector<20xf32> to vector<20x1xf32>
    %98 = vector.broadcast %97 : vector<20x1xf32> to vector<20x20xf32>
    %99 = arith.subf %95, %98 : vector<20x20xf32>
    %100 = math.exp %99 : vector<20x20xf32>
    %cst_39 = arith.constant dense<0.000000e+00> : vector<20xf32>
    %101 = vector.multi_reduction <add>, %100, %cst_39 [1] : vector<20x20xf32> to vector<20xf32>
    %102 = vector.shape_cast %101 : vector<20xf32> to vector<20x1xf32>
    %103 = tpu.reciprocal %102 {approx = true} : vector<20x1xf32> -> vector<20x1xf32>
    %104 = vector.broadcast %103 : vector<20x1xf32> to vector<20x20xf32>
    %105 = arith.mulf %100, %104 : vector<20x20xf32>
    %106 = arith.truncf %105 : vector<20x20xf32> to vector<20x20xbf16>
    %107 = arith.truncf %90 : vector<20x8xf32> to vector<20x8xbf16>
    %cst_40 = arith.constant dense<0.000000e+00> : vector<20x8xf32>
    %108 = tpu.matmul %106, %107, %cst_40 {dimension_numbers = #tpu.dot_dimension_numbers<[1], [0], [0], [1], [0, 0, 1, 1], [], []>} : vector<20x20xbf16>, vector<20x8xbf16>, vector<20x8xf32> -> vector<20x8xf32>
    %109 = vector.extract_strided_slice %45 {offsets = [0, 24], sizes = [20, 8], strides = [1, 1]} : vector<20x96xf32> to vector<20x8xf32>
    %110 = vector.extract_strided_slice %45 {offsets = [0, 56], sizes = [20, 8], strides = [1, 1]} : vector<20x96xf32> to vector<20x8xf32>
    %111 = vector.extract_strided_slice %45 {offsets = [0, 88], sizes = [20, 8], strides = [1, 1]} : vector<20x96xf32> to vector<20x8xf32>
    %112 = arith.truncf %109 : vector<20x8xf32> to vector<20x8xbf16>
    %113 = arith.truncf %110 : vector<20x8xf32> to vector<20x8xbf16>
    %cst_41 = arith.constant dense<0.000000e+00> : vector<20x20xf32>
    %114 = tpu.matmul %112, %113, %cst_41 {dimension_numbers = #tpu.dot_dimension_numbers<[1], [1], [0], [0], [0, 0, 1, 0], [], []>} : vector<20x8xbf16>, vector<20x8xbf16>, vector<20x20xf32> -> vector<20x20xf32>
    %cst_42 = arith.constant 0.353553385 : f32
    %115 = vector.broadcast %cst_42 : f32 to vector<20x20xf32>
    %116 = arith.mulf %114, %115 : vector<20x20xf32>
    %cst_43 = arith.constant dense<0xFF800000> : vector<20xf32>
    %117 = vector.multi_reduction <maximumf>, %116, %cst_43 [1] : vector<20x20xf32> to vector<20xf32>
    %118 = vector.shape_cast %117 : vector<20xf32> to vector<20x1xf32>
    %119 = vector.broadcast %118 : vector<20x1xf32> to vector<20x20xf32>
    %120 = arith.subf %116, %119 : vector<20x20xf32>
    %121 = math.exp %120 : vector<20x20xf32>
    %cst_44 = arith.constant dense<0.000000e+00> : vector<20xf32>
    %122 = vector.multi_reduction <add>, %121, %cst_44 [1] : vector<20x20xf32> to vector<20xf32>
    %123 = vector.shape_cast %122 : vector<20xf32> to vector<20x1xf32>
    %124 = tpu.reciprocal %123 {approx = true} : vector<20x1xf32> -> vector<20x1xf32>
    %125 = vector.broadcast %124 : vector<20x1xf32> to vector<20x20xf32>
    %126 = arith.mulf %121, %125 : vector<20x20xf32>
    %127 = arith.truncf %126 : vector<20x20xf32> to vector<20x20xbf16>
    %128 = arith.truncf %111 : vector<20x8xf32> to vector<20x8xbf16>
    %cst_45 = arith.constant dense<0.000000e+00> : vector<20x8xf32>
    %129 = tpu.matmul %127, %128, %cst_45 {dimension_numbers = #tpu.dot_dimension_numbers<[1], [0], [0], [1], [0, 0, 1, 1], [], []>} : vector<20x20xbf16>, vector<20x8xbf16>, vector<20x8xf32> -> vector<20x8xf32>
    %130 = tpu.concatenate %66, %87, %108, %129 in 1 : vector<20x8xf32>, vector<20x8xf32>, vector<20x8xf32>, vector<20x8xf32> -> vector<20x32xf32>
    %c0_46 = arith.constant 0 : index
    %c0_47 = arith.constant 0 : index
    %c0_48 = arith.constant 0 : index
    %131 = vector.load %arg9[%c0_46, %c0_47, %c0_48] : memref<2x32x32xf32, #tpu.memory_space<vmem>>, vector<1x32x32xf32>
    %132 = vector.shape_cast %131 : vector<1x32x32xf32> to vector<32x32xf32>
    %133 = arith.truncf %130 : vector<20x32xf32> to vector<20x32xbf16>
    %134 = arith.truncf %132 : vector<32x32xf32> to vector<32x32xbf16>
    %cst_49 = arith.constant dense<0.000000e+00> : vector<20x32xf32>
    %135 = tpu.matmul %133, %134, %cst_49 {dimension_numbers = #tpu.dot_dimension_numbers<[1], [0], [0], [1], [0, 0, 1, 1], [], []>} : vector<20x32xbf16>, vector<32x32xbf16>, vector<20x32xf32> -> vector<20x32xf32>
    %c0_50 = arith.constant 0 : index
    %c0_51 = arith.constant 0 : index
    %c0_52 = arith.constant 0 : index
    %136 = vector.load %arg10[%c0_50, %c0_51, %c0_52] : memref<2x1x32xf32, #tpu.memory_space<vmem>>, vector<1x1x32xf32>
    %137 = vector.shape_cast %136 : vector<1x1x32xf32> to vector<1x32xf32>
    %138 = vector.broadcast %137 : vector<1x32xf32> to vector<20x32xf32>
    %139 = arith.addf %135, %138 : vector<20x32xf32>
    %140 = arith.addf %10, %139 : vector<20x32xf32>
    %c0_53 = arith.constant 0 : index
    %c0_54 = arith.constant 0 : index
    %c0_55 = arith.constant 0 : index
    %141 = vector.load %arg11[%c0_53, %c0_54, %c0_55] : memref<2x1x32xf32, #tpu.memory_space<vmem>>, vector<1x1x32xf32>
    %142 = vector.shape_cast %141 : vector<1x1x32xf32> to vector<1x32xf32>
    %c0_56 = arith.constant 0 : index
    %c0_57 = arith.constant 0 : index
    %c0_58 = arith.constant 0 : index
    %143 = vector.load %arg12[%c0_56, %c0_57, %c0_58] : memref<2x1x32xf32, #tpu.memory_space<vmem>>, vector<1x1x32xf32>
    %144 = vector.shape_cast %143 : vector<1x1x32xf32> to vector<1x32xf32>
    %cst_59 = arith.constant dense<0.000000e+00> : vector<20xf32>
    %145 = vector.multi_reduction <add>, %140, %cst_59 [1] : vector<20x32xf32> to vector<20xf32>
    %146 = vector.shape_cast %145 : vector<20xf32> to vector<20x1xf32>
    %cst_60 = arith.constant 3.200000e+01 : f32
    %147 = vector.broadcast %cst_60 : f32 to vector<20x1xf32>
    %148 = arith.divf %146, %147 : vector<20x1xf32>
    %149 = vector.broadcast %148 : vector<20x1xf32> to vector<20x32xf32>
    %150 = arith.subf %140, %149 : vector<20x32xf32>
    %151 = arith.mulf %150, %150 : vector<20x32xf32>
    %cst_61 = arith.constant dense<0.000000e+00> : vector<20xf32>
    %152 = vector.multi_reduction <add>, %151, %cst_61 [1] : vector<20x32xf32> to vector<20xf32>
    %153 = vector.shape_cast %152 : vector<20xf32> to vector<20x1xf32>
    %cst_62 = arith.constant 3.200000e+01 : f32
    %154 = vector.broadcast %cst_62 : f32 to vector<20x1xf32>
    %155 = arith.divf %153, %154 : vector<20x1xf32>
    %156 = vector.broadcast %148 : vector<20x1xf32> to vector<20x32xf32>
    %157 = arith.subf %140, %156 : vector<20x32xf32>
    %cst_63 = arith.constant 9.99999974E-6 : f32
    %158 = vector.broadcast %cst_63 : f32 to vector<20x1xf32>
    %159 = arith.addf %155, %158 : vector<20x1xf32>
    %160 = math.rsqrt %159 : vector<20x1xf32>
    %161 = vector.broadcast %160 : vector<20x1xf32> to vector<20x32xf32>
    %162 = arith.mulf %157, %161 : vector<20x32xf32>
    %163 = vector.broadcast %142 : vector<1x32xf32> to vector<20x32xf32>
    %164 = arith.mulf %162, %163 : vector<20x32xf32>
    %165 = vector.broadcast %144 : vector<1x32xf32> to vector<20x32xf32>
    %166 = arith.addf %164, %165 : vector<20x32xf32>
    %c0_64 = arith.constant 0 : index
    %c0_65 = arith.constant 0 : index
    %c0_66 = arith.constant 0 : index
    %167 = vector.load %arg13[%c0_64, %c0_65, %c0_66] : memref<2x32x64xf32, #tpu.memory_space<vmem>>, vector<1x32x64xf32>
    %168 = vector.shape_cast %167 : vector<1x32x64xf32> to vector<32x64xf32>
    %169 = arith.truncf %166 : vector<20x32xf32> to vector<20x32xbf16>
    %170 = arith.truncf %168 : vector<32x64xf32> to vector<32x64xbf16>
    %cst_67 = arith.constant dense<0.000000e+00> : vector<20x64xf32>
    %171 = tpu.matmul %169, %170, %cst_67 {dimension_numbers = #tpu.dot_dimension_numbers<[1], [0], [0], [1], [0, 0, 1, 1], [], []>} : vector<20x32xbf16>, vector<32x64xbf16>, vector<20x64xf32> -> vector<20x64xf32>
    %c0_68 = arith.constant 0 : index
    %c0_69 = arith.constant 0 : index
    %c0_70 = arith.constant 0 : index
    %172 = vector.load %arg14[%c0_68, %c0_69, %c0_70] : memref<2x1x64xf32, #tpu.memory_space<vmem>>, vector<1x1x64xf32>
    %173 = vector.shape_cast %172 : vector<1x1x64xf32> to vector<1x64xf32>
    %174 = vector.broadcast %173 : vector<1x64xf32> to vector<20x64xf32>
    %175 = arith.addf %171, %174 : vector<20x64xf32>
    %176 = arith.mulf %175, %175 : vector<20x64xf32>
    %177 = arith.mulf %175, %176 : vector<20x64xf32>
    %cst_71 = arith.constant 4.471500e-02 : f32
    %178 = vector.broadcast %cst_71 : f32 to vector<20x64xf32>
    %179 = arith.mulf %178, %177 : vector<20x64xf32>
    %180 = arith.addf %175, %179 : vector<20x64xf32>
    %cst_72 = arith.constant 0.797884583 : f32
    %181 = vector.broadcast %cst_72 : f32 to vector<20x64xf32>
    %182 = arith.mulf %181, %180 : vector<20x64xf32>
    %183 = math.tanh %182 : vector<20x64xf32>
    %cst_73 = arith.constant 1.000000e+00 : f32
    %184 = vector.broadcast %cst_73 : f32 to vector<20x64xf32>
    %185 = arith.addf %184, %183 : vector<20x64xf32>
    %cst_74 = arith.constant 5.000000e-01 : f32
    %186 = vector.broadcast %cst_74 : f32 to vector<20x64xf32>
    %187 = arith.mulf %186, %185 : vector<20x64xf32>
    %188 = arith.mulf %175, %187 : vector<20x64xf32>
    %c0_75 = arith.constant 0 : index
    %c0_76 = arith.constant 0 : index
    %c0_77 = arith.constant 0 : index
    %189 = vector.load %arg15[%c0_75, %c0_76, %c0_77] : memref<2x64x32xf32, #tpu.memory_space<vmem>>, vector<1x64x32xf32>
    %190 = vector.shape_cast %189 : vector<1x64x32xf32> to vector<64x32xf32>
    %191 = arith.truncf %188 : vector<20x64xf32> to vector<20x64xbf16>
    %192 = arith.truncf %190 : vector<64x32xf32> to vector<64x32xbf16>
    %cst_78 = arith.constant dense<0.000000e+00> : vector<20x32xf32>
    %193 = tpu.matmul %191, %192, %cst_78 {dimension_numbers = #tpu.dot_dimension_numbers<[1], [0], [0], [1], [0, 0, 1, 1], [], []>} : vector<20x64xbf16>, vector<64x32xbf16>, vector<20x32xf32> -> vector<20x32xf32>
    %c0_79 = arith.constant 0 : index
    %c0_80 = arith.constant 0 : index
    %c0_81 = arith.constant 0 : index
    %194 = vector.load %arg16[%c0_79, %c0_80, %c0_81] : memref<2x1x32xf32, #tpu.memory_space<vmem>>, vector<1x1x32xf32>
    %195 = vector.shape_cast %194 : vector<1x1x32xf32> to vector<1x32xf32>
    %196 = vector.broadcast %195 : vector<1x32xf32> to vector<20x32xf32>
    %197 = arith.addf %193, %196 : vector<20x32xf32>
    %198 = arith.addf %140, %197 : vector<20x32xf32>
    %c1 = arith.constant 1 : index
    %c0_82 = arith.constant 0 : index
    %c0_83 = arith.constant 0 : index
    %199 = vector.load %arg5[%c1, %c0_82, %c0_83] : memref<2x1x32xf32, #tpu.memory_space<vmem>>, vector<1x1x32xf32>
    %200 = vector.shape_cast %199 : vector<1x1x32xf32> to vector<1x32xf32>
    %c1_84 = arith.constant 1 : index
    %c0_85 = arith.constant 0 : index
    %c0_86 = arith.constant 0 : index
    %201 = vector.load %arg6[%c1_84, %c0_85, %c0_86] : memref<2x1x32xf32, #tpu.memory_space<vmem>>, vector<1x1x32xf32>
    %202 = vector.shape_cast %201 : vector<1x1x32xf32> to vector<1x32xf32>
    %cst_87 = arith.constant dense<0.000000e+00> : vector<20xf32>
    %203 = vector.multi_reduction <add>, %198, %cst_87 [1] : vector<20x32xf32> to vector<20xf32>
    %204 = vector.shape_cast %203 : vector<20xf32> to vector<20x1xf32>
    %cst_88 = arith.constant 3.200000e+01 : f32
    %205 = vector.broadcast %cst_88 : f32 to vector<20x1xf32>
    %206 = arith.divf %204, %205 : vector<20x1xf32>
    %207 = vector.broadcast %206 : vector<20x1xf32> to vector<20x32xf32>
    %208 = arith.subf %198, %207 : vector<20x32xf32>
    %209 = arith.mulf %208, %208 : vector<20x32xf32>
    %cst_89 = arith.constant dense<0.000000e+00> : vector<20xf32>
    %210 = vector.multi_reduction <add>, %209, %cst_89 [1] : vector<20x32xf32> to vector<20xf32>
    %211 = vector.shape_cast %210 : vector<20xf32> to vector<20x1xf32>
    %cst_90 = arith.constant 3.200000e+01 : f32
    %212 = vector.broadcast %cst_90 : f32 to vector<20x1xf32>
    %213 = arith.divf %211, %212 : vector<20x1xf32>
    %214 = vector.broadcast %206 : vector<20x1xf32> to vector<20x32xf32>
    %215 = arith.subf %198, %214 : vector<20x32xf32>
    %cst_91 = arith.constant 9.99999974E-6 : f32
    %216 = vector.broadcast %cst_91 : f32 to vector<20x1xf32>
    %217 = arith.addf %213, %216 : vector<20x1xf32>
    %218 = math.rsqrt %217 : vector<20x1xf32>
    %219 = vector.broadcast %218 : vector<20x1xf32> to vector<20x32xf32>
    %220 = arith.mulf %215, %219 : vector<20x32xf32>
    %221 = vector.broadcast %200 : vector<1x32xf32> to vector<20x32xf32>
    %222 = arith.mulf %220, %221 : vector<20x32xf32>
    %223 = vector.broadcast %202 : vector<1x32xf32> to vector<20x32xf32>
    %224 = arith.addf %222, %223 : vector<20x32xf32>
    %c1_92 = arith.constant 1 : index
    %c0_93 = arith.constant 0 : index
    %c0_94 = arith.constant 0 : index
    %225 = vector.load %arg7[%c1_92, %c0_93, %c0_94] : memref<2x32x96xf32, #tpu.memory_space<vmem>>, vector<1x32x96xf32>
    %226 = vector.shape_cast %225 : vector<1x32x96xf32> to vector<32x96xf32>
    %227 = arith.truncf %224 : vector<20x32xf32> to vector<20x32xbf16>
    %228 = arith.truncf %226 : vector<32x96xf32> to vector<32x96xbf16>
    %cst_95 = arith.constant dense<0.000000e+00> : vector<20x96xf32>
    %229 = tpu.matmul %227, %228, %cst_95 {dimension_numbers = #tpu.dot_dimension_numbers<[1], [0], [0], [1], [0, 0, 1, 1], [], []>} : vector<20x32xbf16>, vector<32x96xbf16>, vector<20x96xf32> -> vector<20x96xf32>
    %c1_96 = arith.constant 1 : index
    %c0_97 = arith.constant 0 : index
    %c0_98 = arith.constant 0 : index
    %230 = vector.load %arg8[%c1_96, %c0_97, %c0_98] : memref<2x1x96xf32, #tpu.memory_space<vmem>>, vector<1x1x96xf32>
    %231 = vector.shape_cast %230 : vector<1x1x96xf32> to vector<1x96xf32>
    %232 = vector.broadcast %231 : vector<1x96xf32> to vector<20x96xf32>
    %233 = arith.addf %229, %232 : vector<20x96xf32>
    %234 = vector.extract_strided_slice %233 {offsets = [0, 0], sizes = [20, 8], strides = [1, 1]} : vector<20x96xf32> to vector<20x8xf32>
    %235 = vector.extract_strided_slice %233 {offsets = [0, 32], sizes = [20, 8], strides = [1, 1]} : vector<20x96xf32> to vector<20x8xf32>
    %236 = vector.extract_strided_slice %233 {offsets = [0, 64], sizes = [20, 8], strides = [1, 1]} : vector<20x96xf32> to vector<20x8xf32>
    %237 = arith.truncf %234 : vector<20x8xf32> to vector<20x8xbf16>
    %238 = arith.truncf %235 : vector<20x8xf32> to vector<20x8xbf16>
    %cst_99 = arith.constant dense<0.000000e+00> : vector<20x20xf32>
    %239 = tpu.matmul %237, %238, %cst_99 {dimension_numbers = #tpu.dot_dimension_numbers<[1], [1], [0], [0], [0, 0, 1, 0], [], []>} : vector<20x8xbf16>, vector<20x8xbf16>, vector<20x20xf32> -> vector<20x20xf32>
    %cst_100 = arith.constant 0.353553385 : f32
    %240 = vector.broadcast %cst_100 : f32 to vector<20x20xf32>
    %241 = arith.mulf %239, %240 : vector<20x20xf32>
    %cst_101 = arith.constant dense<0xFF800000> : vector<20xf32>
    %242 = vector.multi_reduction <maximumf>, %241, %cst_101 [1] : vector<20x20xf32> to vector<20xf32>
    %243 = vector.shape_cast %242 : vector<20xf32> to vector<20x1xf32>
    %244 = vector.broadcast %243 : vector<20x1xf32> to vector<20x20xf32>
    %245 = arith.subf %241, %244 : vector<20x20xf32>
    %246 = math.exp %245 : vector<20x20xf32>
    %cst_102 = arith.constant dense<0.000000e+00> : vector<20xf32>
    %247 = vector.multi_reduction <add>, %246, %cst_102 [1] : vector<20x20xf32> to vector<20xf32>
    %248 = vector.shape_cast %247 : vector<20xf32> to vector<20x1xf32>
    %249 = tpu.reciprocal %248 {approx = true} : vector<20x1xf32> -> vector<20x1xf32>
    %250 = vector.broadcast %249 : vector<20x1xf32> to vector<20x20xf32>
    %251 = arith.mulf %246, %250 : vector<20x20xf32>
    %252 = arith.truncf %251 : vector<20x20xf32> to vector<20x20xbf16>
    %253 = arith.truncf %236 : vector<20x8xf32> to vector<20x8xbf16>
    %cst_103 = arith.constant dense<0.000000e+00> : vector<20x8xf32>
    %254 = tpu.matmul %252, %253, %cst_103 {dimension_numbers = #tpu.dot_dimension_numbers<[1], [0], [0], [1], [0, 0, 1, 1], [], []>} : vector<20x20xbf16>, vector<20x8xbf16>, vector<20x8xf32> -> vector<20x8xf32>
    %255 = vector.extract_strided_slice %233 {offsets = [0, 8], sizes = [20, 8], strides = [1, 1]} : vector<20x96xf32> to vector<20x8xf32>
    %256 = vector.extract_strided_slice %233 {offsets = [0, 40], sizes = [20, 8], strides = [1, 1]} : vector<20x96xf32> to vector<20x8xf32>
    %257 = vector.extract_strided_slice %233 {offsets = [0, 72], sizes = [20, 8], strides = [1, 1]} : vector<20x96xf32> to vector<20x8xf32>
    %258 = arith.truncf %255 : vector<20x8xf32> to vector<20x8xbf16>
    %259 = arith.truncf %256 : vector<20x8xf32> to vector<20x8xbf16>
    %cst_104 = arith.constant dense<0.000000e+00> : vector<20x20xf32>
    %260 = tpu.matmul %258, %259, %cst_104 {dimension_numbers = #tpu.dot_dimension_numbers<[1], [1], [0], [0], [0, 0, 1, 0], [], []>} : vector<20x8xbf16>, vector<20x8xbf16>, vector<20x20xf32> -> vector<20x20xf32>
    %cst_105 = arith.constant 0.353553385 : f32
    %261 = vector.broadcast %cst_105 : f32 to vector<20x20xf32>
    %262 = arith.mulf %260, %261 : vector<20x20xf32>
    %cst_106 = arith.constant dense<0xFF800000> : vector<20xf32>
    %263 = vector.multi_reduction <maximumf>, %262, %cst_106 [1] : vector<20x20xf32> to vector<20xf32>
    %264 = vector.shape_cast %263 : vector<20xf32> to vector<20x1xf32>
    %265 = vector.broadcast %264 : vector<20x1xf32> to vector<20x20xf32>
    %266 = arith.subf %262, %265 : vector<20x20xf32>
    %267 = math.exp %266 : vector<20x20xf32>
    %cst_107 = arith.constant dense<0.000000e+00> : vector<20xf32>
    %268 = vector.multi_reduction <add>, %267, %cst_107 [1] : vector<20x20xf32> to vector<20xf32>
    %269 = vector.shape_cast %268 : vector<20xf32> to vector<20x1xf32>
    %270 = tpu.reciprocal %269 {approx = true} : vector<20x1xf32> -> vector<20x1xf32>
    %271 = vector.broadcast %270 : vector<20x1xf32> to vector<20x20xf32>
    %272 = arith.mulf %267, %271 : vector<20x20xf32>
    %273 = arith.truncf %272 : vector<20x20xf32> to vector<20x20xbf16>
    %274 = arith.truncf %257 : vector<20x8xf32> to vector<20x8xbf16>
    %cst_108 = arith.constant dense<0.000000e+00> : vector<20x8xf32>
    %275 = tpu.matmul %273, %274, %cst_108 {dimension_numbers = #tpu.dot_dimension_numbers<[1], [0], [0], [1], [0, 0, 1, 1], [], []>} : vector<20x20xbf16>, vector<20x8xbf16>, vector<20x8xf32> -> vector<20x8xf32>
    %276 = vector.extract_strided_slice %233 {offsets = [0, 16], sizes = [20, 8], strides = [1, 1]} : vector<20x96xf32> to vector<20x8xf32>
    %277 = vector.extract_strided_slice %233 {offsets = [0, 48], sizes = [20, 8], strides = [1, 1]} : vector<20x96xf32> to vector<20x8xf32>
    %278 = vector.extract_strided_slice %233 {offsets = [0, 80], sizes = [20, 8], strides = [1, 1]} : vector<20x96xf32> to vector<20x8xf32>
    %279 = arith.truncf %276 : vector<20x8xf32> to vector<20x8xbf16>
    %280 = arith.truncf %277 : vector<20x8xf32> to vector<20x8xbf16>
    %cst_109 = arith.constant dense<0.000000e+00> : vector<20x20xf32>
    %281 = tpu.matmul %279, %280, %cst_109 {dimension_numbers = #tpu.dot_dimension_numbers<[1], [1], [0], [0], [0, 0, 1, 0], [], []>} : vector<20x8xbf16>, vector<20x8xbf16>, vector<20x20xf32> -> vector<20x20xf32>
    %cst_110 = arith.constant 0.353553385 : f32
    %282 = vector.broadcast %cst_110 : f32 to vector<20x20xf32>
    %283 = arith.mulf %281, %282 : vector<20x20xf32>
    %cst_111 = arith.constant dense<0xFF800000> : vector<20xf32>
    %284 = vector.multi_reduction <maximumf>, %283, %cst_111 [1] : vector<20x20xf32> to vector<20xf32>
    %285 = vector.shape_cast %284 : vector<20xf32> to vector<20x1xf32>
    %286 = vector.broadcast %285 : vector<20x1xf32> to vector<20x20xf32>
    %287 = arith.subf %283, %286 : vector<20x20xf32>
    %288 = math.exp %287 : vector<20x20xf32>
    %cst_112 = arith.constant dense<0.000000e+00> : vector<20xf32>
    %289 = vector.multi_reduction <add>, %288, %cst_112 [1] : vector<20x20xf32> to vector<20xf32>
    %290 = vector.shape_cast %289 : vector<20xf32> to vector<20x1xf32>
    %291 = tpu.reciprocal %290 {approx = true} : vector<20x1xf32> -> vector<20x1xf32>
    %292 = vector.broadcast %291 : vector<20x1xf32> to vector<20x20xf32>
    %293 = arith.mulf %288, %292 : vector<20x20xf32>
    %294 = arith.truncf %293 : vector<20x20xf32> to vector<20x20xbf16>
    %295 = arith.truncf %278 : vector<20x8xf32> to vector<20x8xbf16>
    %cst_113 = arith.constant dense<0.000000e+00> : vector<20x8xf32>
    %296 = tpu.matmul %294, %295, %cst_113 {dimension_numbers = #tpu.dot_dimension_numbers<[1], [0], [0], [1], [0, 0, 1, 1], [], []>} : vector<20x20xbf16>, vector<20x8xbf16>, vector<20x8xf32> -> vector<20x8xf32>
    %297 = vector.extract_strided_slice %233 {offsets = [0, 24], sizes = [20, 8], strides = [1, 1]} : vector<20x96xf32> to vector<20x8xf32>
    %298 = vector.extract_strided_slice %233 {offsets = [0, 56], sizes = [20, 8], strides = [1, 1]} : vector<20x96xf32> to vector<20x8xf32>
    %299 = vector.extract_strided_slice %233 {offsets = [0, 88], sizes = [20, 8], strides = [1, 1]} : vector<20x96xf32> to vector<20x8xf32>
    %300 = arith.truncf %297 : vector<20x8xf32> to vector<20x8xbf16>
    %301 = arith.truncf %298 : vector<20x8xf32> to vector<20x8xbf16>
    %cst_114 = arith.constant dense<0.000000e+00> : vector<20x20xf32>
    %302 = tpu.matmul %300, %301, %cst_114 {dimension_numbers = #tpu.dot_dimension_numbers<[1], [1], [0], [0], [0, 0, 1, 0], [], []>} : vector<20x8xbf16>, vector<20x8xbf16>, vector<20x20xf32> -> vector<20x20xf32>
    %cst_115 = arith.constant 0.353553385 : f32
    %303 = vector.broadcast %cst_115 : f32 to vector<20x20xf32>
    %304 = arith.mulf %302, %303 : vector<20x20xf32>
    %cst_116 = arith.constant dense<0xFF800000> : vector<20xf32>
    %305 = vector.multi_reduction <maximumf>, %304, %cst_116 [1] : vector<20x20xf32> to vector<20xf32>
    %306 = vector.shape_cast %305 : vector<20xf32> to vector<20x1xf32>
    %307 = vector.broadcast %306 : vector<20x1xf32> to vector<20x20xf32>
    %308 = arith.subf %304, %307 : vector<20x20xf32>
    %309 = math.exp %308 : vector<20x20xf32>
    %cst_117 = arith.constant dense<0.000000e+00> : vector<20xf32>
    %310 = vector.multi_reduction <add>, %309, %cst_117 [1] : vector<20x20xf32> to vector<20xf32>
    %311 = vector.shape_cast %310 : vector<20xf32> to vector<20x1xf32>
    %312 = tpu.reciprocal %311 {approx = true} : vector<20x1xf32> -> vector<20x1xf32>
    %313 = vector.broadcast %312 : vector<20x1xf32> to vector<20x20xf32>
    %314 = arith.mulf %309, %313 : vector<20x20xf32>
    %315 = arith.truncf %314 : vector<20x20xf32> to vector<20x20xbf16>
    %316 = arith.truncf %299 : vector<20x8xf32> to vector<20x8xbf16>
    %cst_118 = arith.constant dense<0.000000e+00> : vector<20x8xf32>
    %317 = tpu.matmul %315, %316, %cst_118 {dimension_numbers = #tpu.dot_dimension_numbers<[1], [0], [0], [1], [0, 0, 1, 1], [], []>} : vector<20x20xbf16>, vector<20x8xbf16>, vector<20x8xf32> -> vector<20x8xf32>
    %318 = tpu.concatenate %254, %275, %296, %317 in 1 : vector<20x8xf32>, vector<20x8xf32>, vector<20x8xf32>, vector<20x8xf32> -> vector<20x32xf32>
    %c1_119 = arith.constant 1 : index
    %c0_120 = arith.constant 0 : index
    %c0_121 = arith.constant 0 : index
    %319 = vector.load %arg9[%c1_119, %c0_120, %c0_121] : memref<2x32x32xf32, #tpu.memory_space<vmem>>, vector<1x32x32xf32>
    %320 = vector.shape_cast %319 : vector<1x32x32xf32> to vector<32x32xf32>
    %321 = arith.truncf %318 : vector<20x32xf32> to vector<20x32xbf16>
    %322 = arith.truncf %320 : vector<32x32xf32> to vector<32x32xbf16>
    %cst_122 = arith.constant dense<0.000000e+00> : vector<20x32xf32>
    %323 = tpu.matmul %321, %322, %cst_122 {dimension_numbers = #tpu.dot_dimension_numbers<[1], [0], [0], [1], [0, 0, 1, 1], [], []>} : vector<20x32xbf16>, vector<32x32xbf16>, vector<20x32xf32> -> vector<20x32xf32>
    %c1_123 = arith.constant 1 : index
    %c0_124 = arith.constant 0 : index
    %c0_125 = arith.constant 0 : index
    %324 = vector.load %arg10[%c1_123, %c0_124, %c0_125] : memref<2x1x32xf32, #tpu.memory_space<vmem>>, vector<1x1x32xf32>
    %325 = vector.shape_cast %324 : vector<1x1x32xf32> to vector<1x32xf32>
    %326 = vector.broadcast %325 : vector<1x32xf32> to vector<20x32xf32>
    %327 = arith.addf %323, %326 : vector<20x32xf32>
    %328 = arith.addf %198, %327 : vector<20x32xf32>
    %c1_126 = arith.constant 1 : index
    %c0_127 = arith.constant 0 : index
    %c0_128 = arith.constant 0 : index
    %329 = vector.load %arg11[%c1_126, %c0_127, %c0_128] : memref<2x1x32xf32, #tpu.memory_space<vmem>>, vector<1x1x32xf32>
    %330 = vector.shape_cast %329 : vector<1x1x32xf32> to vector<1x32xf32>
    %c1_129 = arith.constant 1 : index
    %c0_130 = arith.constant 0 : index
    %c0_131 = arith.constant 0 : index
    %331 = vector.load %arg12[%c1_129, %c0_130, %c0_131] : memref<2x1x32xf32, #tpu.memory_space<vmem>>, vector<1x1x32xf32>
    %332 = vector.shape_cast %331 : vector<1x1x32xf32> to vector<1x32xf32>
    %cst_132 = arith.constant dense<0.000000e+00> : vector<20xf32>
    %333 = vector.multi_reduction <add>, %328, %cst_132 [1] : vector<20x32xf32> to vector<20xf32>
    %334 = vector.shape_cast %333 : vector<20xf32> to vector<20x1xf32>
    %cst_133 = arith.constant 3.200000e+01 : f32
    %335 = vector.broadcast %cst_133 : f32 to vector<20x1xf32>
    %336 = arith.divf %334, %335 : vector<20x1xf32>
    %337 = vector.broadcast %336 : vector<20x1xf32> to vector<20x32xf32>
    %338 = arith.subf %328, %337 : vector<20x32xf32>
    %339 = arith.mulf %338, %338 : vector<20x32xf32>
    %cst_134 = arith.constant dense<0.000000e+00> : vector<20xf32>
    %340 = vector.multi_reduction <add>, %339, %cst_134 [1] : vector<20x32xf32> to vector<20xf32>
    %341 = vector.shape_cast %340 : vector<20xf32> to vector<20x1xf32>
    %cst_135 = arith.constant 3.200000e+01 : f32
    %342 = vector.broadcast %cst_135 : f32 to vector<20x1xf32>
    %343 = arith.divf %341, %342 : vector<20x1xf32>
    %344 = vector.broadcast %336 : vector<20x1xf32> to vector<20x32xf32>
    %345 = arith.subf %328, %344 : vector<20x32xf32>
    %cst_136 = arith.constant 9.99999974E-6 : f32
    %346 = vector.broadcast %cst_136 : f32 to vector<20x1xf32>
    %347 = arith.addf %343, %346 : vector<20x1xf32>
    %348 = math.rsqrt %347 : vector<20x1xf32>
    %349 = vector.broadcast %348 : vector<20x1xf32> to vector<20x32xf32>
    %350 = arith.mulf %345, %349 : vector<20x32xf32>
    %351 = vector.broadcast %330 : vector<1x32xf32> to vector<20x32xf32>
    %352 = arith.mulf %350, %351 : vector<20x32xf32>
    %353 = vector.broadcast %332 : vector<1x32xf32> to vector<20x32xf32>
    %354 = arith.addf %352, %353 : vector<20x32xf32>
    %c1_137 = arith.constant 1 : index
    %c0_138 = arith.constant 0 : index
    %c0_139 = arith.constant 0 : index
    %355 = vector.load %arg13[%c1_137, %c0_138, %c0_139] : memref<2x32x64xf32, #tpu.memory_space<vmem>>, vector<1x32x64xf32>
    %356 = vector.shape_cast %355 : vector<1x32x64xf32> to vector<32x64xf32>
    %357 = arith.truncf %354 : vector<20x32xf32> to vector<20x32xbf16>
    %358 = arith.truncf %356 : vector<32x64xf32> to vector<32x64xbf16>
    %cst_140 = arith.constant dense<0.000000e+00> : vector<20x64xf32>
    %359 = tpu.matmul %357, %358, %cst_140 {dimension_numbers = #tpu.dot_dimension_numbers<[1], [0], [0], [1], [0, 0, 1, 1], [], []>} : vector<20x32xbf16>, vector<32x64xbf16>, vector<20x64xf32> -> vector<20x64xf32>
    %c1_141 = arith.constant 1 : index
    %c0_142 = arith.constant 0 : index
    %c0_143 = arith.constant 0 : index
    %360 = vector.load %arg14[%c1_141, %c0_142, %c0_143] : memref<2x1x64xf32, #tpu.memory_space<vmem>>, vector<1x1x64xf32>
    %361 = vector.shape_cast %360 : vector<1x1x64xf32> to vector<1x64xf32>
    %362 = vector.broadcast %361 : vector<1x64xf32> to vector<20x64xf32>
    %363 = arith.addf %359, %362 : vector<20x64xf32>
    %364 = arith.mulf %363, %363 : vector<20x64xf32>
    %365 = arith.mulf %363, %364 : vector<20x64xf32>
    %cst_144 = arith.constant 4.471500e-02 : f32
    %366 = vector.broadcast %cst_144 : f32 to vector<20x64xf32>
    %367 = arith.mulf %366, %365 : vector<20x64xf32>
    %368 = arith.addf %363, %367 : vector<20x64xf32>
    %cst_145 = arith.constant 0.797884583 : f32
    %369 = vector.broadcast %cst_145 : f32 to vector<20x64xf32>
    %370 = arith.mulf %369, %368 : vector<20x64xf32>
    %371 = math.tanh %370 : vector<20x64xf32>
    %cst_146 = arith.constant 1.000000e+00 : f32
    %372 = vector.broadcast %cst_146 : f32 to vector<20x64xf32>
    %373 = arith.addf %372, %371 : vector<20x64xf32>
    %cst_147 = arith.constant 5.000000e-01 : f32
    %374 = vector.broadcast %cst_147 : f32 to vector<20x64xf32>
    %375 = arith.mulf %374, %373 : vector<20x64xf32>
    %376 = arith.mulf %363, %375 : vector<20x64xf32>
    %c1_148 = arith.constant 1 : index
    %c0_149 = arith.constant 0 : index
    %c0_150 = arith.constant 0 : index
    %377 = vector.load %arg15[%c1_148, %c0_149, %c0_150] : memref<2x64x32xf32, #tpu.memory_space<vmem>>, vector<1x64x32xf32>
    %378 = vector.shape_cast %377 : vector<1x64x32xf32> to vector<64x32xf32>
    %379 = arith.truncf %376 : vector<20x64xf32> to vector<20x64xbf16>
    %380 = arith.truncf %378 : vector<64x32xf32> to vector<64x32xbf16>
    %cst_151 = arith.constant dense<0.000000e+00> : vector<20x32xf32>
    %381 = tpu.matmul %379, %380, %cst_151 {dimension_numbers = #tpu.dot_dimension_numbers<[1], [0], [0], [1], [0, 0, 1, 1], [], []>} : vector<20x64xbf16>, vector<64x32xbf16>, vector<20x32xf32> -> vector<20x32xf32>
    %c1_152 = arith.constant 1 : index
    %c0_153 = arith.constant 0 : index
    %c0_154 = arith.constant 0 : index
    %382 = vector.load %arg16[%c1_152, %c0_153, %c0_154] : memref<2x1x32xf32, #tpu.memory_space<vmem>>, vector<1x1x32xf32>
    %383 = vector.shape_cast %382 : vector<1x1x32xf32> to vector<1x32xf32>
    %384 = vector.broadcast %383 : vector<1x32xf32> to vector<20x32xf32>
    %385 = arith.addf %381, %384 : vector<20x32xf32>
    %386 = arith.addf %328, %385 : vector<20x32xf32>
    %c0_155 = arith.constant 0 : index
    %c0_156 = arith.constant 0 : index
    %c0_157 = arith.constant 0 : index
    %387 = vector.load %arg30[%c0_155, %c0_156, %c0_157] : memref<1x20x32xf32, #tpu.memory_space<vmem>>, vector<1x20x32xf32>
    %388 = vector.shape_cast %387 : vector<1x20x32xf32> to vector<20x32xf32>
    %389 = vector.shape_cast %386 : vector<20x32xf32> to vector<1x20x32xf32>
    tpu.vector_store %arg30[%c0_155, %c0_156, %c0_157], %389 {strides = array<i32>} : memref<1x20x32xf32, #tpu.memory_space<vmem>>, vector<1x20x32xf32>,
    %cst_158 = arith.constant dense<0.000000e+00> : vector<32xf32>
    %390 = vector.multi_reduction <add>, %386, %cst_158 [0] : vector<20x32xf32> to vector<32xf32>
    %391 = vector.shape_cast %390 : vector<32xf32> to vector<1x32xf32>
    %cst_159 = arith.constant 2.000000e+01 : f32
    %392 = vector.broadcast %cst_159 : f32 to vector<1x32xf32>
    %393 = arith.divf %391, %392 : vector<1x32xf32>
    %c0_160 = arith.constant 0 : index
    %c0_161 = arith.constant 0 : index
    %394 = vector.load %arg26[%c0_160, %c0_161] : memref<32x32xf32, #tpu.memory_space<vmem>>, vector<32x32xf32>
    %395 = arith.truncf %393 : vector<1x32xf32> to vector<1x32xbf16>
    %396 = arith.truncf %394 : vector<32x32xf32> to vector<32x32xbf16>
    %cst_162 = arith.constant dense<0.000000e+00> : vector<1x32xf32>
    %397 = tpu.matmul %395, %396, %cst_162 {dimension_numbers = #tpu.dot_dimension_numbers<[1], [0], [0], [1], [0, 0, 1, 1], [], []>} : vector<1x32xbf16>, vector<32x32xbf16>, vector<1x32xf32> -> vector<1x32xf32>
    %c0_163 = arith.constant 0 : index
    %c0_164 = arith.constant 0 : index
    %398 = vector.load %arg27[%c0_163, %c0_164] : memref<1x32xf32, #tpu.memory_space<vmem>>, vector<1x32xf32>
    %399 = arith.addf %397, %398 : vector<1x32xf32>
    %cst_165 = arith.constant 0.000000e+00 : f32
    %400 = vector.broadcast %cst_165 : f32 to vector<1x32xf32>
    %401 = arith.maximumf %399, %400 : vector<1x32xf32>
    %c0_166 = arith.constant 0 : index
    %c0_167 = arith.constant 0 : index
    %402 = vector.load %arg28[%c0_166, %c0_167] : memref<32x1xf32, #tpu.memory_space<vmem>>, vector<32x1xf32>
    %403 = arith.truncf %401 : vector<1x32xf32> to vector<1x32xbf16>
    %404 = arith.truncf %402 : vector<32x1xf32> to vector<32x1xbf16>
    %cst_168 = arith.constant dense<0.000000e+00> : vector<1x1xf32>
    %405 = tpu.matmul %403, %404, %cst_168 {dimension_numbers = #tpu.dot_dimension_numbers<[1], [0], [0], [1], [0, 0, 1, 1], [], []>} : vector<1x32xbf16>, vector<32x1xbf16>, vector<1x1xf32> -> vector<1x1xf32>
    %c0_169 = arith.constant 0 : index
    %c0_170 = arith.constant 0 : index
    %406 = vector.load %arg29[%c0_169, %c0_170] : memref<1x1xf32, #tpu.memory_space<vmem>>, vector<1x1xf32>
    %407 = arith.addf %405, %406 : vector<1x1xf32>
    %c0_171 = arith.constant 0 : index
    %c0_172 = arith.constant 0 : index
    %c0_173 = arith.constant 0 : index
    %408 = vector.load %arg33[%c0_171, %c0_172, %c0_173] : memref<1x1x1xf32, #tpu.memory_space<vmem>>, vector<1x1x1xf32>
    %409 = vector.shape_cast %408 : vector<1x1x1xf32> to vector<1x1xf32>
    %410 = vector.shape_cast %407 : vector<1x1xf32> to vector<1x1x1xf32>
    tpu.vector_store %arg33[%c0_171, %c0_172, %c0_173], %410 {strides = array<i32>} : memref<1x1x1xf32, #tpu.memory_space<vmem>>, vector<1x1x1xf32>,
    %c0_174 = arith.constant 0 : index
    %c0_175 = arith.constant 0 : index
    %411 = vector.load %arg17[%c0_174, %c0_175] : memref<1x32xf32, #tpu.memory_space<vmem>>, vector<1x32xf32>
    %c0_176 = arith.constant 0 : index
    %c0_177 = arith.constant 0 : index
    %412 = vector.load %arg18[%c0_176, %c0_177] : memref<1x32xf32, #tpu.memory_space<vmem>>, vector<1x32xf32>
    %cst_178 = arith.constant dense<0.000000e+00> : vector<20xf32>
    %413 = vector.multi_reduction <add>, %386, %cst_178 [1] : vector<20x32xf32> to vector<20xf32>
    %414 = vector.shape_cast %413 : vector<20xf32> to vector<20x1xf32>
    %cst_179 = arith.constant 3.200000e+01 : f32
    %415 = vector.broadcast %cst_179 : f32 to vector<20x1xf32>
    %416 = arith.divf %414, %415 : vector<20x1xf32>
    %417 = vector.broadcast %416 : vector<20x1xf32> to vector<20x32xf32>
    %418 = arith.subf %386, %417 : vector<20x32xf32>
    %419 = arith.mulf %418, %418 : vector<20x32xf32>
    %cst_180 = arith.constant dense<0.000000e+00> : vector<20xf32>
    %420 = vector.multi_reduction <add>, %419, %cst_180 [1] : vector<20x32xf32> to vector<20xf32>
    %421 = vector.shape_cast %420 : vector<20xf32> to vector<20x1xf32>
    %cst_181 = arith.constant 3.200000e+01 : f32
    %422 = vector.broadcast %cst_181 : f32 to vector<20x1xf32>
    %423 = arith.divf %421, %422 : vector<20x1xf32>
    %424 = vector.broadcast %416 : vector<20x1xf32> to vector<20x32xf32>
    %425 = arith.subf %386, %424 : vector<20x32xf32>
    %cst_182 = arith.constant 9.99999974E-6 : f32
    %426 = vector.broadcast %cst_182 : f32 to vector<20x1xf32>
    %427 = arith.addf %423, %426 : vector<20x1xf32>
    %428 = math.rsqrt %427 : vector<20x1xf32>
    %429 = vector.broadcast %428 : vector<20x1xf32> to vector<20x32xf32>
    %430 = arith.mulf %425, %429 : vector<20x32xf32>
    %431 = vector.broadcast %411 : vector<1x32xf32> to vector<20x32xf32>
    %432 = arith.mulf %430, %431 : vector<20x32xf32>
    %433 = vector.broadcast %412 : vector<1x32xf32> to vector<20x32xf32>
    %434 = arith.addf %432, %433 : vector<20x32xf32>
    %cst_183 = arith.constant 0.000000e+00 : f32
    %435 = vector.broadcast %cst_183 : f32 to vector<16x32xf32>
    %c0_184 = arith.constant 0 : index
    %c0_185 = arith.constant 0 : index
    %c0_186 = arith.constant 0 : index
    %436 = vector.load %arg19[%c0_184, %c0_185, %c0_186] : memref<9x32x32xf32, #tpu.memory_space<vmem>>, vector<1x32x32xf32>
    %437 = vector.shape_cast %436 : vector<1x32x32xf32> to vector<32x32xf32>
    %438 = arith.truncf %434 : vector<20x32xf32> to vector<20x32xbf16>
    %439 = arith.truncf %437 : vector<32x32xf32> to vector<32x32xbf16>
    %cst_187 = arith.constant dense<0.000000e+00> : vector<20x32xf32>
    %440 = tpu.matmul %438, %439, %cst_187 {dimension_numbers = #tpu.dot_dimension_numbers<[1], [0], [0], [1], [0, 0, 1, 1], [], []>} : vector<20x32xbf16>, vector<32x32xbf16>, vector<20x32xf32> -> vector<20x32xf32>
    %c0_188 = arith.constant 0 : index
    %c0_189 = arith.constant 0 : index
    %c0_190 = arith.constant 0 : index
    %441 = vector.load %arg23[%c0_188, %c0_189, %c0_190] : memref<9x16x20xf32, #tpu.memory_space<vmem>>, vector<1x16x20xf32>
    %442 = vector.shape_cast %441 : vector<1x16x20xf32> to vector<16x20xf32>
    %443 = arith.truncf %442 : vector<16x20xf32> to vector<16x20xbf16>
    %444 = arith.truncf %440 : vector<20x32xf32> to vector<20x32xbf16>
    %cst_191 = arith.constant dense<0.000000e+00> : vector<16x32xf32>
    %445 = tpu.matmul %443, %444, %cst_191 {dimension_numbers = #tpu.dot_dimension_numbers<[1], [0], [0], [1], [0, 0, 1, 1], [], []>} : vector<16x20xbf16>, vector<20x32xbf16>, vector<16x32xf32> -> vector<16x32xf32>
    %446 = arith.addf %435, %445 : vector<16x32xf32>
    %c1_192 = arith.constant 1 : index
    %c0_193 = arith.constant 0 : index
    %c0_194 = arith.constant 0 : index
    %447 = vector.load %arg19[%c1_192, %c0_193, %c0_194] : memref<9x32x32xf32, #tpu.memory_space<vmem>>, vector<1x32x32xf32>
    %448 = vector.shape_cast %447 : vector<1x32x32xf32> to vector<32x32xf32>
    %449 = arith.truncf %434 : vector<20x32xf32> to vector<20x32xbf16>
    %450 = arith.truncf %448 : vector<32x32xf32> to vector<32x32xbf16>
    %cst_195 = arith.constant dense<0.000000e+00> : vector<20x32xf32>
    %451 = tpu.matmul %449, %450, %cst_195 {dimension_numbers = #tpu.dot_dimension_numbers<[1], [0], [0], [1], [0, 0, 1, 1], [], []>} : vector<20x32xbf16>, vector<32x32xbf16>, vector<20x32xf32> -> vector<20x32xf32>
    %c1_196 = arith.constant 1 : index
    %c0_197 = arith.constant 0 : index
    %c0_198 = arith.constant 0 : index
    %452 = vector.load %arg23[%c1_196, %c0_197, %c0_198] : memref<9x16x20xf32, #tpu.memory_space<vmem>>, vector<1x16x20xf32>
    %453 = vector.shape_cast %452 : vector<1x16x20xf32> to vector<16x20xf32>
    %454 = arith.truncf %453 : vector<16x20xf32> to vector<16x20xbf16>
    %455 = arith.truncf %451 : vector<20x32xf32> to vector<20x32xbf16>
    %cst_199 = arith.constant dense<0.000000e+00> : vector<16x32xf32>
    %456 = tpu.matmul %454, %455, %cst_199 {dimension_numbers = #tpu.dot_dimension_numbers<[1], [0], [0], [1], [0, 0, 1, 1], [], []>} : vector<16x20xbf16>, vector<20x32xbf16>, vector<16x32xf32> -> vector<16x32xf32>
    %457 = arith.addf %446, %456 : vector<16x32xf32>
    %c2 = arith.constant 2 : index
    %c0_200 = arith.constant 0 : index
    %c0_201 = arith.constant 0 : index
    %458 = vector.load %arg19[%c2, %c0_200, %c0_201] : memref<9x32x32xf32, #tpu.memory_space<vmem>>, vector<1x32x32xf32>
    %459 = vector.shape_cast %458 : vector<1x32x32xf32> to vector<32x32xf32>
    %460 = arith.truncf %434 : vector<20x32xf32> to vector<20x32xbf16>
    %461 = arith.truncf %459 : vector<32x32xf32> to vector<32x32xbf16>
    %cst_202 = arith.constant dense<0.000000e+00> : vector<20x32xf32>
    %462 = tpu.matmul %460, %461, %cst_202 {dimension_numbers = #tpu.dot_dimension_numbers<[1], [0], [0], [1], [0, 0, 1, 1], [], []>} : vector<20x32xbf16>, vector<32x32xbf16>, vector<20x32xf32> -> vector<20x32xf32>
    %c2_203 = arith.constant 2 : index
    %c0_204 = arith.constant 0 : index
    %c0_205 = arith.constant 0 : index
    %463 = vector.load %arg23[%c2_203, %c0_204, %c0_205] : memref<9x16x20xf32, #tpu.memory_space<vmem>>, vector<1x16x20xf32>
    %464 = vector.shape_cast %463 : vector<1x16x20xf32> to vector<16x20xf32>
    %465 = arith.truncf %464 : vector<16x20xf32> to vector<16x20xbf16>
    %466 = arith.truncf %462 : vector<20x32xf32> to vector<20x32xbf16>
    %cst_206 = arith.constant dense<0.000000e+00> : vector<16x32xf32>
    %467 = tpu.matmul %465, %466, %cst_206 {dimension_numbers = #tpu.dot_dimension_numbers<[1], [0], [0], [1], [0, 0, 1, 1], [], []>} : vector<16x20xbf16>, vector<20x32xbf16>, vector<16x32xf32> -> vector<16x32xf32>
    %468 = arith.addf %457, %467 : vector<16x32xf32>
    %c3 = arith.constant 3 : index
    %c0_207 = arith.constant 0 : index
    %c0_208 = arith.constant 0 : index
    %469 = vector.load %arg19[%c3, %c0_207, %c0_208] : memref<9x32x32xf32, #tpu.memory_space<vmem>>, vector<1x32x32xf32>
    %470 = vector.shape_cast %469 : vector<1x32x32xf32> to vector<32x32xf32>
    %471 = arith.truncf %434 : vector<20x32xf32> to vector<20x32xbf16>
    %472 = arith.truncf %470 : vector<32x32xf32> to vector<32x32xbf16>
    %cst_209 = arith.constant dense<0.000000e+00> : vector<20x32xf32>
    %473 = tpu.matmul %471, %472, %cst_209 {dimension_numbers = #tpu.dot_dimension_numbers<[1], [0], [0], [1], [0, 0, 1, 1], [], []>} : vector<20x32xbf16>, vector<32x32xbf16>, vector<20x32xf32> -> vector<20x32xf32>
    %c3_210 = arith.constant 3 : index
    %c0_211 = arith.constant 0 : index
    %c0_212 = arith.constant 0 : index
    %474 = vector.load %arg23[%c3_210, %c0_211, %c0_212] : memref<9x16x20xf32, #tpu.memory_space<vmem>>, vector<1x16x20xf32>
    %475 = vector.shape_cast %474 : vector<1x16x20xf32> to vector<16x20xf32>
    %476 = arith.truncf %475 : vector<16x20xf32> to vector<16x20xbf16>
    %477 = arith.truncf %473 : vector<20x32xf32> to vector<20x32xbf16>
    %cst_213 = arith.constant dense<0.000000e+00> : vector<16x32xf32>
    %478 = tpu.matmul %476, %477, %cst_213 {dimension_numbers = #tpu.dot_dimension_numbers<[1], [0], [0], [1], [0, 0, 1, 1], [], []>} : vector<16x20xbf16>, vector<20x32xbf16>, vector<16x32xf32> -> vector<16x32xf32>
    %479 = arith.addf %468, %478 : vector<16x32xf32>
    %c4 = arith.constant 4 : index
    %c0_214 = arith.constant 0 : index
    %c0_215 = arith.constant 0 : index
    %480 = vector.load %arg19[%c4, %c0_214, %c0_215] : memref<9x32x32xf32, #tpu.memory_space<vmem>>, vector<1x32x32xf32>
    %481 = vector.shape_cast %480 : vector<1x32x32xf32> to vector<32x32xf32>
    %482 = arith.truncf %434 : vector<20x32xf32> to vector<20x32xbf16>
    %483 = arith.truncf %481 : vector<32x32xf32> to vector<32x32xbf16>
    %cst_216 = arith.constant dense<0.000000e+00> : vector<20x32xf32>
    %484 = tpu.matmul %482, %483, %cst_216 {dimension_numbers = #tpu.dot_dimension_numbers<[1], [0], [0], [1], [0, 0, 1, 1], [], []>} : vector<20x32xbf16>, vector<32x32xbf16>, vector<20x32xf32> -> vector<20x32xf32>
    %c4_217 = arith.constant 4 : index
    %c0_218 = arith.constant 0 : index
    %c0_219 = arith.constant 0 : index
    %485 = vector.load %arg23[%c4_217, %c0_218, %c0_219] : memref<9x16x20xf32, #tpu.memory_space<vmem>>, vector<1x16x20xf32>
    %486 = vector.shape_cast %485 : vector<1x16x20xf32> to vector<16x20xf32>
    %487 = arith.truncf %486 : vector<16x20xf32> to vector<16x20xbf16>
    %488 = arith.truncf %484 : vector<20x32xf32> to vector<20x32xbf16>
    %cst_220 = arith.constant dense<0.000000e+00> : vector<16x32xf32>
    %489 = tpu.matmul %487, %488, %cst_220 {dimension_numbers = #tpu.dot_dimension_numbers<[1], [0], [0], [1], [0, 0, 1, 1], [], []>} : vector<16x20xbf16>, vector<20x32xbf16>, vector<16x32xf32> -> vector<16x32xf32>
    %490 = arith.addf %479, %489 : vector<16x32xf32>
    %c5 = arith.constant 5 : index
    %c0_221 = arith.constant 0 : index
    %c0_222 = arith.constant 0 : index
    %491 = vector.load %arg19[%c5, %c0_221, %c0_222] : memref<9x32x32xf32, #tpu.memory_space<vmem>>, vector<1x32x32xf32>
    %492 = vector.shape_cast %491 : vector<1x32x32xf32> to vector<32x32xf32>
    %493 = arith.truncf %434 : vector<20x32xf32> to vector<20x32xbf16>
    %494 = arith.truncf %492 : vector<32x32xf32> to vector<32x32xbf16>
    %cst_223 = arith.constant dense<0.000000e+00> : vector<20x32xf32>
    %495 = tpu.matmul %493, %494, %cst_223 {dimension_numbers = #tpu.dot_dimension_numbers<[1], [0], [0], [1], [0, 0, 1, 1], [], []>} : vector<20x32xbf16>, vector<32x32xbf16>, vector<20x32xf32> -> vector<20x32xf32>
    %c5_224 = arith.constant 5 : index
    %c0_225 = arith.constant 0 : index
    %c0_226 = arith.constant 0 : index
    %496 = vector.load %arg23[%c5_224, %c0_225, %c0_226] : memref<9x16x20xf32, #tpu.memory_space<vmem>>, vector<1x16x20xf32>
    %497 = vector.shape_cast %496 : vector<1x16x20xf32> to vector<16x20xf32>
    %498 = arith.truncf %497 : vector<16x20xf32> to vector<16x20xbf16>
    %499 = arith.truncf %495 : vector<20x32xf32> to vector<20x32xbf16>
    %cst_227 = arith.constant dense<0.000000e+00> : vector<16x32xf32>
    %500 = tpu.matmul %498, %499, %cst_227 {dimension_numbers = #tpu.dot_dimension_numbers<[1], [0], [0], [1], [0, 0, 1, 1], [], []>} : vector<16x20xbf16>, vector<20x32xbf16>, vector<16x32xf32> -> vector<16x32xf32>
    %501 = arith.addf %490, %500 : vector<16x32xf32>
    %c6 = arith.constant 6 : index
    %c0_228 = arith.constant 0 : index
    %c0_229 = arith.constant 0 : index
    %502 = vector.load %arg19[%c6, %c0_228, %c0_229] : memref<9x32x32xf32, #tpu.memory_space<vmem>>, vector<1x32x32xf32>
    %503 = vector.shape_cast %502 : vector<1x32x32xf32> to vector<32x32xf32>
    %504 = arith.truncf %434 : vector<20x32xf32> to vector<20x32xbf16>
    %505 = arith.truncf %503 : vector<32x32xf32> to vector<32x32xbf16>
    %cst_230 = arith.constant dense<0.000000e+00> : vector<20x32xf32>
    %506 = tpu.matmul %504, %505, %cst_230 {dimension_numbers = #tpu.dot_dimension_numbers<[1], [0], [0], [1], [0, 0, 1, 1], [], []>} : vector<20x32xbf16>, vector<32x32xbf16>, vector<20x32xf32> -> vector<20x32xf32>
    %c6_231 = arith.constant 6 : index
    %c0_232 = arith.constant 0 : index
    %c0_233 = arith.constant 0 : index
    %507 = vector.load %arg23[%c6_231, %c0_232, %c0_233] : memref<9x16x20xf32, #tpu.memory_space<vmem>>, vector<1x16x20xf32>
    %508 = vector.shape_cast %507 : vector<1x16x20xf32> to vector<16x20xf32>
    %509 = arith.truncf %508 : vector<16x20xf32> to vector<16x20xbf16>
    %510 = arith.truncf %506 : vector<20x32xf32> to vector<20x32xbf16>
    %cst_234 = arith.constant dense<0.000000e+00> : vector<16x32xf32>
    %511 = tpu.matmul %509, %510, %cst_234 {dimension_numbers = #tpu.dot_dimension_numbers<[1], [0], [0], [1], [0, 0, 1, 1], [], []>} : vector<16x20xbf16>, vector<20x32xbf16>, vector<16x32xf32> -> vector<16x32xf32>
    %512 = arith.addf %501, %511 : vector<16x32xf32>
    %c7 = arith.constant 7 : index
    %c0_235 = arith.constant 0 : index
    %c0_236 = arith.constant 0 : index
    %513 = vector.load %arg19[%c7, %c0_235, %c0_236] : memref<9x32x32xf32, #tpu.memory_space<vmem>>, vector<1x32x32xf32>
    %514 = vector.shape_cast %513 : vector<1x32x32xf32> to vector<32x32xf32>
    %515 = arith.truncf %434 : vector<20x32xf32> to vector<20x32xbf16>
    %516 = arith.truncf %514 : vector<32x32xf32> to vector<32x32xbf16>
    %cst_237 = arith.constant dense<0.000000e+00> : vector<20x32xf32>
    %517 = tpu.matmul %515, %516, %cst_237 {dimension_numbers = #tpu.dot_dimension_numbers<[1], [0], [0], [1], [0, 0, 1, 1], [], []>} : vector<20x32xbf16>, vector<32x32xbf16>, vector<20x32xf32> -> vector<20x32xf32>
    %c7_238 = arith.constant 7 : index
    %c0_239 = arith.constant 0 : index
    %c0_240 = arith.constant 0 : index
    %518 = vector.load %arg23[%c7_238, %c0_239, %c0_240] : memref<9x16x20xf32, #tpu.memory_space<vmem>>, vector<1x16x20xf32>
    %519 = vector.shape_cast %518 : vector<1x16x20xf32> to vector<16x20xf32>
    %520 = arith.truncf %519 : vector<16x20xf32> to vector<16x20xbf16>
    %521 = arith.truncf %517 : vector<20x32xf32> to vector<20x32xbf16>
    %cst_241 = arith.constant dense<0.000000e+00> : vector<16x32xf32>
    %522 = tpu.matmul %520, %521, %cst_241 {dimension_numbers = #tpu.dot_dimension_numbers<[1], [0], [0], [1], [0, 0, 1, 1], [], []>} : vector<16x20xbf16>, vector<20x32xbf16>, vector<16x32xf32> -> vector<16x32xf32>
    %523 = arith.addf %512, %522 : vector<16x32xf32>
    %c8 = arith.constant 8 : index
    %c0_242 = arith.constant 0 : index
    %c0_243 = arith.constant 0 : index
    %524 = vector.load %arg19[%c8, %c0_242, %c0_243] : memref<9x32x32xf32, #tpu.memory_space<vmem>>, vector<1x32x32xf32>
    %525 = vector.shape_cast %524 : vector<1x32x32xf32> to vector<32x32xf32>
    %526 = arith.truncf %434 : vector<20x32xf32> to vector<20x32xbf16>
    %527 = arith.truncf %525 : vector<32x32xf32> to vector<32x32xbf16>
    %cst_244 = arith.constant dense<0.000000e+00> : vector<20x32xf32>
    %528 = tpu.matmul %526, %527, %cst_244 {dimension_numbers = #tpu.dot_dimension_numbers<[1], [0], [0], [1], [0, 0, 1, 1], [], []>} : vector<20x32xbf16>, vector<32x32xbf16>, vector<20x32xf32> -> vector<20x32xf32>
    %c8_245 = arith.constant 8 : index
    %c0_246 = arith.constant 0 : index
    %c0_247 = arith.constant 0 : index
    %529 = vector.load %arg23[%c8_245, %c0_246, %c0_247] : memref<9x16x20xf32, #tpu.memory_space<vmem>>, vector<1x16x20xf32>
    %530 = vector.shape_cast %529 : vector<1x16x20xf32> to vector<16x20xf32>
    %531 = arith.truncf %530 : vector<16x20xf32> to vector<16x20xbf16>
    %532 = arith.truncf %528 : vector<20x32xf32> to vector<20x32xbf16>
    %cst_248 = arith.constant dense<0.000000e+00> : vector<16x32xf32>
    %533 = tpu.matmul %531, %532, %cst_248 {dimension_numbers = #tpu.dot_dimension_numbers<[1], [0], [0], [1], [0, 0, 1, 1], [], []>} : vector<16x20xbf16>, vector<20x32xbf16>, vector<16x32xf32> -> vector<16x32xf32>
    %534 = arith.addf %523, %533 : vector<16x32xf32>
    %c0_249 = arith.constant 0 : index
    %c0_250 = arith.constant 0 : index
    %535 = vector.load %arg20[%c0_249, %c0_250] : memref<1x32xf32, #tpu.memory_space<vmem>>, vector<1x32xf32>
    %536 = vector.broadcast %535 : vector<1x32xf32> to vector<16x32xf32>
    %537 = arith.addf %534, %536 : vector<16x32xf32>
    %cst_251 = arith.constant 0.000000e+00 : f32
    %538 = vector.broadcast %cst_251 : f32 to vector<16x32xf32>
    %539 = arith.maximumf %537, %538 : vector<16x32xf32>
    %c0_252 = arith.constant 0 : index
    %c0_253 = arith.constant 0 : index
    %540 = vector.load %arg21[%c0_252, %c0_253] : memref<32x2xf32, #tpu.memory_space<vmem>>, vector<32x2xf32>
    %541 = arith.truncf %539 : vector<16x32xf32> to vector<16x32xbf16>
    %542 = arith.truncf %540 : vector<32x2xf32> to vector<32x2xbf16>
    %cst_254 = arith.constant dense<0.000000e+00> : vector<16x2xf32>
    %543 = tpu.matmul %541, %542, %cst_254 {dimension_numbers = #tpu.dot_dimension_numbers<[1], [0], [0], [1], [0, 0, 1, 1], [], []>} : vector<16x32xbf16>, vector<32x2xbf16>, vector<16x2xf32> -> vector<16x2xf32>
    %c0_255 = arith.constant 0 : index
    %c0_256 = arith.constant 0 : index
    %544 = vector.load %arg22[%c0_255, %c0_256] : memref<1x2xf32, #tpu.memory_space<vmem>>, vector<1x2xf32>
    %545 = vector.broadcast %544 : vector<1x2xf32> to vector<16x2xf32>
    %546 = arith.addf %543, %545 : vector<16x2xf32>
    %c0_257 = arith.constant 0 : index
    %c0_258 = arith.constant 0 : index
    %c0_259 = arith.constant 0 : index
    %547 = vector.load %arg31[%c0_257, %c0_258, %c0_259] : memref<1x16x2xf32, #tpu.memory_space<vmem>>, vector<1x16x2xf32>
    %548 = vector.shape_cast %547 : vector<1x16x2xf32> to vector<16x2xf32>
    %549 = vector.shape_cast %546 : vector<16x2xf32> to vector<1x16x2xf32>
    tpu.vector_store %arg31[%c0_257, %c0_258, %c0_259], %549 {strides = array<i32>} : memref<1x16x2xf32, #tpu.memory_space<vmem>>, vector<1x16x2xf32>,
    %cst_260 = arith.constant dense<0xFF800000> : vector<2xf32>
    %550 = vector.multi_reduction <maximumf>, %546, %cst_260 [0] : vector<16x2xf32> to vector<2xf32>
    %551 = vector.shape_cast %550 : vector<2xf32> to vector<1x2xf32>
    %552 = vector.broadcast %551 : vector<1x2xf32> to vector<16x2xf32>
    %553 = arith.subf %546, %552 : vector<16x2xf32>
    %554 = math.exp %553 : vector<16x2xf32>
    %cst_261 = arith.constant dense<0.000000e+00> : vector<2xf32>
    %555 = vector.multi_reduction <add>, %554, %cst_261 [0] : vector<16x2xf32> to vector<2xf32>
    %556 = vector.shape_cast %555 : vector<2xf32> to vector<1x2xf32>
    %557 = tpu.reciprocal %556 {approx = true} : vector<1x2xf32> -> vector<1x2xf32>
    %558 = vector.broadcast %557 : vector<1x2xf32> to vector<16x2xf32>
    %559 = arith.mulf %554, %558 : vector<16x2xf32>
    %c0_262 = arith.constant 0 : index
    %c0_263 = arith.constant 0 : index
    %560 = vector.load %arg24[%c0_262, %c0_263] : memref<16x1xf32, #tpu.memory_space<vmem>>, vector<16x1xf32>
    %561 = vector.broadcast %560 : vector<16x1xf32> to vector<16x2xf32>
    %562 = arith.mulf %559, %561 : vector<16x2xf32>
    %cst_264 = arith.constant dense<0.000000e+00> : vector<2xf32>
    %563 = vector.multi_reduction <add>, %562, %cst_264 [0] : vector<16x2xf32> to vector<2xf32>
    %564 = vector.shape_cast %563 : vector<2xf32> to vector<1x2xf32>
    %c0_265 = arith.constant 0 : index
    %c0_266 = arith.constant 0 : index
    %565 = vector.load %arg25[%c0_265, %c0_266] : memref<16x1xf32, #tpu.memory_space<vmem>>, vector<16x1xf32>
    %566 = vector.broadcast %565 : vector<16x1xf32> to vector<16x2xf32>
    %567 = arith.mulf %559, %566 : vector<16x2xf32>
    %cst_267 = arith.constant dense<0.000000e+00> : vector<2xf32>
    %568 = vector.multi_reduction <add>, %567, %cst_267 [0] : vector<16x2xf32> to vector<2xf32>
    %569 = vector.shape_cast %568 : vector<2xf32> to vector<1x2xf32>
    %570 = tpu.concatenate %564, %569 in 0 : vector<1x2xf32>, vector<1x2xf32> -> vector<2x2xf32>
    %c0_268 = arith.constant 0 : index
    %c0_269 = arith.constant 0 : index
    %c0_270 = arith.constant 0 : index
    %571 = vector.load %arg32[%c0_268, %c0_269, %c0_270] : memref<1x2x2xf32, #tpu.memory_space<vmem>>, vector<1x2x2xf32>
    %572 = vector.shape_cast %571 : vector<1x2x2xf32> to vector<2x2xf32>
    %573 = vector.shape_cast %570 : vector<2x2xf32> to vector<1x2x2xf32>
    tpu.vector_store %arg32[%c0_268, %c0_269, %c0_270], %573 {strides = array<i32>} : memref<1x2x2xf32, #tpu.memory_space<vmem>>, vector<1x2x2xf32>,
    return
  }
  func.func @transform_0(%arg0: i32) -> (i32, i32, i32) {
    %c0_i32 = arith.constant 0 : i32
    %c0_i32_0 = arith.constant 0 : i32
    %c0_i32_1 = arith.constant 0 : i32
    return %arg0, %c0_i32, %c0_i32_0 : i32, i32, i32
  }
  func.func @transform_1(%arg0: i32) -> (i32, i32) {
    %c0_i32 = arith.constant 0 : i32
    %c0_i32_0 = arith.constant 0 : i32
    %c0_i32_1 = arith.constant 0 : i32
    return %c0_i32, %c0_i32_0 : i32, i32
  }
  func.func @transform_2(%arg0: i32) -> (i32, i32) {
    %c0_i32 = arith.constant 0 : i32
    %c0_i32_0 = arith.constant 0 : i32
    %c0_i32_1 = arith.constant 0 : i32
    return %c0_i32, %c0_i32_0 : i32, i32
  }
  func.func @transform_3(%arg0: i32) -> (i32, i32) {
    %c0_i32 = arith.constant 0 : i32
    %c0_i32_0 = arith.constant 0 : i32
    %c0_i32_1 = arith.constant 0 : i32
    return %c0_i32, %c0_i32_0 : i32, i32
  }
  func.func @transform_4(%arg0: i32) -> (i32, i32, i32) {
    %c0_i32 = arith.constant 0 : i32
    %c0_i32_0 = arith.constant 0 : i32
    %c0_i32_1 = arith.constant 0 : i32
    %c0_i32_2 = arith.constant 0 : i32
    return %c0_i32, %c0_i32_0, %c0_i32_1 : i32, i32, i32
  }
  func.func @transform_5(%arg0: i32) -> (i32, i32, i32) {
    %c0_i32 = arith.constant 0 : i32
    %c0_i32_0 = arith.constant 0 : i32
    %c0_i32_1 = arith.constant 0 : i32
    %c0_i32_2 = arith.constant 0 : i32
    return %c0_i32, %c0_i32_0, %c0_i32_1 : i32, i32, i32
  }
  func.func @transform_6(%arg0: i32) -> (i32, i32, i32) {
    %c0_i32 = arith.constant 0 : i32
    %c0_i32_0 = arith.constant 0 : i32
    %c0_i32_1 = arith.constant 0 : i32
    %c0_i32_2 = arith.constant 0 : i32
    return %c0_i32, %c0_i32_0, %c0_i32_1 : i32, i32, i32
  }
  func.func @transform_7(%arg0: i32) -> (i32, i32, i32) {
    %c0_i32 = arith.constant 0 : i32
    %c0_i32_0 = arith.constant 0 : i32
    %c0_i32_1 = arith.constant 0 : i32
    %c0_i32_2 = arith.constant 0 : i32
    return %c0_i32, %c0_i32_0, %c0_i32_1 : i32, i32, i32
  }
  func.func @transform_8(%arg0: i32) -> (i32, i32, i32) {
    %c0_i32 = arith.constant 0 : i32
    %c0_i32_0 = arith.constant 0 : i32
    %c0_i32_1 = arith.constant 0 : i32
    %c0_i32_2 = arith.constant 0 : i32
    return %c0_i32, %c0_i32_0, %c0_i32_1 : i32, i32, i32
  }
  func.func @transform_9(%arg0: i32) -> (i32, i32, i32) {
    %c0_i32 = arith.constant 0 : i32
    %c0_i32_0 = arith.constant 0 : i32
    %c0_i32_1 = arith.constant 0 : i32
    %c0_i32_2 = arith.constant 0 : i32
    return %c0_i32, %c0_i32_0, %c0_i32_1 : i32, i32, i32
  }
  func.func @transform_10(%arg0: i32) -> (i32, i32, i32) {
    %c0_i32 = arith.constant 0 : i32
    %c0_i32_0 = arith.constant 0 : i32
    %c0_i32_1 = arith.constant 0 : i32
    %c0_i32_2 = arith.constant 0 : i32
    return %c0_i32, %c0_i32_0, %c0_i32_1 : i32, i32, i32
  }
  func.func @transform_11(%arg0: i32) -> (i32, i32, i32) {
    %c0_i32 = arith.constant 0 : i32
    %c0_i32_0 = arith.constant 0 : i32
    %c0_i32_1 = arith.constant 0 : i32
    %c0_i32_2 = arith.constant 0 : i32
    return %c0_i32, %c0_i32_0, %c0_i32_1 : i32, i32, i32
  }
  func.func @transform_12(%arg0: i32) -> (i32, i32, i32) {
    %c0_i32 = arith.constant 0 : i32
    %c0_i32_0 = arith.constant 0 : i32
    %c0_i32_1 = arith.constant 0 : i32
    %c0_i32_2 = arith.constant 0 : i32
    return %c0_i32, %c0_i32_0, %c0_i32_1 : i32, i32, i32
  }
  func.func @transform_13(%arg0: i32) -> (i32, i32, i32) {
    %c0_i32 = arith.constant 0 : i32
    %c0_i32_0 = arith.constant 0 : i32
    %c0_i32_1 = arith.constant 0 : i32
    %c0_i32_2 = arith.constant 0 : i32
    return %c0_i32, %c0_i32_0, %c0_i32_1 : i32, i32, i32
  }
  func.func @transform_14(%arg0: i32) -> (i32, i32, i32) {
    %c0_i32 = arith.constant 0 : i32
    %c0_i32_0 = arith.constant 0 : i32
    %c0_i32_1 = arith.constant 0 : i32
    %c0_i32_2 = arith.constant 0 : i32
    return %c0_i32, %c0_i32_0, %c0_i32_1 : i32, i32, i32
  }
  func.func @transform_15(%arg0: i32) -> (i32, i32, i32) {
    %c0_i32 = arith.constant 0 : i32
    %c0_i32_0 = arith.constant 0 : i32
    %c0_i32_1 = arith.constant 0 : i32
    %c0_i32_2 = arith.constant 0 : i32
    return %c0_i32, %c0_i32_0, %c0_i32_1 : i32, i32, i32
  }
  func.func @transform_16(%arg0: i32) -> (i32, i32) {
    %c0_i32 = arith.constant 0 : i32
    %c0_i32_0 = arith.constant 0 : i32
    %c0_i32_1 = arith.constant 0 : i32
    return %c0_i32, %c0_i32_0 : i32, i32
  }
  func.func @transform_17(%arg0: i32) -> (i32, i32) {
    %c0_i32 = arith.constant 0 : i32
    %c0_i32_0 = arith.constant 0 : i32
    %c0_i32_1 = arith.constant 0 : i32
    return %c0_i32, %c0_i32_0 : i32, i32
  }
  func.func @transform_18(%arg0: i32) -> (i32, i32, i32) {
    %c0_i32 = arith.constant 0 : i32
    %c0_i32_0 = arith.constant 0 : i32
    %c0_i32_1 = arith.constant 0 : i32
    %c0_i32_2 = arith.constant 0 : i32
    return %c0_i32, %c0_i32_0, %c0_i32_1 : i32, i32, i32
  }
  func.func @transform_19(%arg0: i32) -> (i32, i32) {
    %c0_i32 = arith.constant 0 : i32
    %c0_i32_0 = arith.constant 0 : i32
    %c0_i32_1 = arith.constant 0 : i32
    return %c0_i32, %c0_i32_0 : i32, i32
  }
  func.func @transform_20(%arg0: i32) -> (i32, i32) {
    %c0_i32 = arith.constant 0 : i32
    %c0_i32_0 = arith.constant 0 : i32
    %c0_i32_1 = arith.constant 0 : i32
    return %c0_i32, %c0_i32_0 : i32, i32
  }
  func.func @transform_21(%arg0: i32) -> (i32, i32) {
    %c0_i32 = arith.constant 0 : i32
    %c0_i32_0 = arith.constant 0 : i32
    %c0_i32_1 = arith.constant 0 : i32
    return %c0_i32, %c0_i32_0 : i32, i32
  }
  func.func @transform_22(%arg0: i32) -> (i32, i32, i32) {
    %c0_i32 = arith.constant 0 : i32
    %c0_i32_0 = arith.constant 0 : i32
    %c0_i32_1 = arith.constant 0 : i32
    %c0_i32_2 = arith.constant 0 : i32
    return %c0_i32, %c0_i32_0, %c0_i32_1 : i32, i32, i32
  }
  func.func @transform_23(%arg0: i32) -> (i32, i32) {
    %c0_i32 = arith.constant 0 : i32
    %c0_i32_0 = arith.constant 0 : i32
    %c0_i32_1 = arith.constant 0 : i32
    return %c0_i32, %c0_i32_0 : i32, i32
  }
  func.func @transform_24(%arg0: i32) -> (i32, i32) {
    %c0_i32 = arith.constant 0 : i32
    %c0_i32_0 = arith.constant 0 : i32
    %c0_i32_1 = arith.constant 0 : i32
    return %c0_i32, %c0_i32_0 : i32, i32
  }
  func.func @transform_25(%arg0: i32) -> (i32, i32) {
    %c0_i32 = arith.constant 0 : i32
    %c0_i32_0 = arith.constant 0 : i32
    %c0_i32_1 = arith.constant 0 : i32
    return %c0_i32, %c0_i32_0 : i32, i32
  }
  func.func @transform_26(%arg0: i32) -> (i32, i32) {
    %c0_i32 = arith.constant 0 : i32
    %c0_i32_0 = arith.constant 0 : i32
    %c0_i32_1 = arith.constant 0 : i32
    return %c0_i32, %c0_i32_0 : i32, i32
  }
  func.func @transform_27(%arg0: i32) -> (i32, i32) {
    %c0_i32 = arith.constant 0 : i32
    %c0_i32_0 = arith.constant 0 : i32
    %c0_i32_1 = arith.constant 0 : i32
    return %c0_i32, %c0_i32_0 : i32, i32
  }
  func.func @transform_28(%arg0: i32) -> (i32, i32) {
    %c0_i32 = arith.constant 0 : i32
    %c0_i32_0 = arith.constant 0 : i32
    %c0_i32_1 = arith.constant 0 : i32
    return %c0_i32, %c0_i32_0 : i32, i32
  }
  func.func @transform_29(%arg0: i32) -> (i32, i32, i32) {
    %c0_i32 = arith.constant 0 : i32
    %c0_i32_0 = arith.constant 0 : i32
    %c0_i32_1 = arith.constant 0 : i32
    return %arg0, %c0_i32, %c0_i32_0 : i32, i32, i32
  }
  func.func @transform_30(%arg0: i32) -> (i32, i32, i32) {
    %c0_i32 = arith.constant 0 : i32
    %c0_i32_0 = arith.constant 0 : i32
    %c0_i32_1 = arith.constant 0 : i32
    return %arg0, %c0_i32, %c0_i32_0 : i32, i32, i32
  }
  func.func @transform_31(%arg0: i32) -> (i32, i32, i32) {
    %c0_i32 = arith.constant 0 : i32
    %c0_i32_0 = arith.constant 0 : i32
    %c0_i32_1 = arith.constant 0 : i32
    return %arg0, %c0_i32, %c0_i32_0 : i32, i32, i32
  }
  func.func @transform_32(%arg0: i32) -> (i32, i32, i32) {
    %c0_i32 = arith.constant 0 : i32
    %c0_i32_0 = arith.constant 0 : i32
    %c0_i32_1 = arith.constant 0 : i32
    return %arg0, %c0_i32, %c0_i32_0 : i32, i32, i32
  }
}

</mosaic_0001>

<llo_original>
// kernel: focustrack_forward.1
$region0: #{focustrack_forward.1}
  #allocation0 [shape = 'u32[]', space=smem, size = 0x4, offset = 0x4, fixed_abs, tag = 'smem constant byte address 0x4 - core index']
  #allocation1 [shape = 'u32[72,128]{1,0:T(1,128)}', space=vmem, size = 0x9000, scoped, tag = 'internal scratch']
  #allocation2 [shape = 'f32[1,1]{1,0:T(1,128)S(1)}', space=vmem, size = 0x200, scoped, tag = 'scoped memory for focustrack_forward.1']
  %s0 = inlined_call_operand.smem [shape: u32[33], index: -1, kind: input, shape index: {}]
  %s1 = sld [smem:[%s0]]
  %s2 = scalar_lea.smem %s0, 1
  %s3 = sld [smem:[%s2]]
  %s4 = scalar_lea.smem %s0, 2
  %s5 = sld [smem:[%s4]]
  %s6 = scalar_lea.smem %s0, 3
  %s7 = sld [smem:[%s6]]
  %s8 = scalar_lea.smem %s0, 4
  %s9 = sld [smem:[%s8]]
  %s10 = scalar_lea.smem %s0, 5
  %s11 = sld [smem:[%s10]]
  %s12 = scalar_lea.smem %s0, 6
  %s13 = sld [smem:[%s12]]
  %s14 = scalar_lea.smem %s0, 7
  %s15 = sld [smem:[%s14]]
  %s16 = scalar_lea.smem %s0, 8
  %s17 = sld [smem:[%s16]]
  %s18 = scalar_lea.smem %s0, 9
  %s19 = sld [smem:[%s18]]
  %s20 = scalar_lea.smem %s0, 10
  %s21 = sld [smem:[%s20]]
  %s22 = scalar_lea.smem %s0, 11
  %s23 = sld [smem:[%s22]]
  %s24 = scalar_lea.smem %s0, 12
  %s25 = sld [smem:[%s24]]
  %s26 = scalar_lea.smem %s0, 13
  %s27 = sld [smem:[%s26]]
  %s28 = scalar_lea.smem %s0, 14
  %s29 = sld [smem:[%s28]]
  %s30 = scalar_lea.smem %s0, 15
  %s31 = sld [smem:[%s30]]
  %s32 = scalar_lea.smem %s0, 16
  %s33 = sld [smem:[%s32]]
  %s34 = scalar_lea.smem %s0, 17
  %s35 = sld [smem:[%s34]]
  %s36 = scalar_lea.smem %s0, 18
  %s37 = sld [smem:[%s36]]
  %s38 = scalar_lea.smem %s0, 19
  %s39 = sld [smem:[%s38]]
  %s40 = scalar_lea.smem %s0, 20
  %s41 = sld [smem:[%s40]]
  %s42 = scalar_lea.smem %s0, 21
  %s43 = sld [smem:[%s42]]
  %s44 = scalar_lea.smem %s0, 22
  %s45 = sld [smem:[%s44]]
  %s46 = scalar_lea.smem %s0, 23
  %s47 = sld [smem:[%s46]]
  %s48 = scalar_lea.smem %s0, 24
  %s49 = sld [smem:[%s48]]
  %s50 = scalar_lea.smem %s0, 25
  %s51 = sld [smem:[%s50]]
  %s52 = scalar_lea.smem %s0, 26
  %s53 = sld [smem:[%s52]]
  %s54 = scalar_lea.smem %s0, 27
  %s55 = sld [smem:[%s54]]
  %s56 = scalar_lea.smem %s0, 28
  %s57 = sld [smem:[%s56]]
  %s58 = scalar_lea.smem %s0, 29
  %s59 = sld [smem:[%s58]]
  %s60 = scalar_lea.smem %s0, 30
  %s61 = sld [smem:[%s60]]
  %s62 = scalar_lea.smem %s0, 31
  %s63 = sld [smem:[%s62]]
  %s64 = scalar_lea.smem %s0, 32
  %s65 = sld [smem:[%s64]]
  %66 = xla_tuple %s59, %s61, %s63, %s65
  %s67 = sld [smem:[#allocation0]]
  $region173: #{focustrack_forward.1} parent=0
    _
  %s69 = ssub.s32 1, %s67
  %s70 = scalar_select 0, %s69, %s67
  %v71 = vstv %s57
  %72 = vst [vmem:[#allocation2] sm:$0x1] %v71
  loop: start=0, step=1, limit=4
  $region2: #{focustrack_forward.1} parent=0 // loop_pre_header
    _
  $region3: #{focustrack_forward.1} parent=0 // loop_header
    %s74 = sphi 0, %s78
    %p75 = scmp.ge.s32.totalorder %s74, 4
    %s84 = sphi 0, %s86
    %s87 = sphi 0, %s84
    %s88 = sphi 0, %s87
    %s104 = sphi 0, %s88
    %s108 = sphi 0, %s108
    %s110 = sphi 0, %s108
    %s111 = sphi 0, %s110
    %s125 = sphi 0, %s111
    %s129 = sphi 0, %s129
    %s131 = sphi 0, %s129
    %s132 = sphi 0, %s131
    %s146 = sphi 0, %s132
    %s150 = sphi 0, %s150
    %s152 = sphi 0, %s150
    %s153 = sphi 0, %s152
    %s167 = sphi 0, %s153
    %s171 = sphi 0, %s171
    %s173 = sphi 0, %s171
    %s174 = sphi 0, %s173
    %s188 = sphi 0, %s174
    %s192 = sphi 0, %s192
    %s194 = sphi 0, %s192
    %s195 = sphi 0, %s194
    %s209 = sphi 0, %s195
    %s213 = sphi 0, %s213
    %s215 = sphi 0, %s213
    %s216 = sphi 0, %s215
    %s230 = sphi 0, %s216
    %s234 = sphi 0, %s234
    %s236 = sphi 0, %s234
    %s237 = sphi 0, %s236
    %s251 = sphi 0, %s237
    %s255 = sphi 0, %s255
    %s257 = sphi 0, %s255
    %s258 = sphi 0, %s257
    %s272 = sphi 0, %s258
    %s276 = sphi 0, %s276
    %s278 = sphi 0, %s276
    %s279 = sphi 0, %s278
    %s293 = sphi 0, %s279
    %s297 = sphi 0, %s297
    %s299 = sphi 0, %s297
    %s300 = sphi 0, %s299
    %s314 = sphi 0, %s300
    %s318 = sphi 0, %s318
    %s320 = sphi 0, %s318
    %s321 = sphi 0, %s320
    %s335 = sphi 0, %s321
    %s339 = sphi 0, %s339
    %s341 = sphi 0, %s339
    %s342 = sphi 0, %s341
    %s356 = sphi 0, %s342
    %s360 = sphi 0, %s360
    %s362 = sphi 0, %s360
    %s363 = sphi 0, %s362
    %s377 = sphi 0, %s363
    %s381 = sphi 0, %s381
    %s383 = sphi 0, %s381
    %s384 = sphi 0, %s383
    %s398 = sphi 0, %s384
    %s402 = sphi 0, %s402
    %s404 = sphi 0, %s402
    %s405 = sphi 0, %s404
    %s419 = sphi 0, %s405
    %s423 = sphi 0, %s423
    %s425 = sphi 0, %s423
    %s426 = sphi 0, %s425
    %s440 = sphi 0, %s426
    %s444 = sphi 0, %s444
    %s446 = sphi 0, %s444
    %s447 = sphi 0, %s446
    %s461 = sphi 0, %s447
    %s465 = sphi 0, %s465
    %s467 = sphi 0, %s465
    %s468 = sphi 0, %s467
    %s482 = sphi 0, %s468
    %s486 = sphi 0, %s486
    %s488 = sphi 0, %s486
    %s489 = sphi 0, %s488
    %s503 = sphi 0, %s489
    %s507 = sphi 0, %s507
    %s509 = sphi 0, %s507
    %s510 = sphi 0, %s509
    %s524 = sphi 0, %s510
    %s528 = sphi 0, %s528
    %s530 = sphi 0, %s528
    %s531 = sphi 0, %s530
    %s545 = sphi 0, %s531
    %s549 = sphi 0, %s549
    %s551 = sphi 0, %s549
    %s552 = sphi 0, %s551
    %s566 = sphi 0, %s552
    %s570 = sphi 0, %s570
    %s572 = sphi 0, %s570
    %s573 = sphi 0, %s572
    %s587 = sphi 0, %s573
    %s591 = sphi 0, %s591
    %s593 = sphi 0, %s591
    %s594 = sphi 0, %s593
    %s608 = sphi 0, %s594
    %s612 = sphi 0, %s612
    %s614 = sphi 0, %s612
    %s615 = sphi 0, %s614
    %s629 = sphi 0, %s615
    %s633 = sphi 0, %s633
    %s635 = sphi 0, %s633
    %s636 = sphi 0, %s635
    %s650 = sphi 0, %s636
    %s654 = sphi 0, %s654
    %s656 = sphi 0, %s654
    %s657 = sphi 0, %s656
    %s671 = sphi 0, %s657
    %s675 = sphi 0, %s675
    %s677 = sphi 0, %s675
    %s678 = sphi 0, %s677
    %s692 = sphi 0, %s678
    %s698 = sphi 0, %s700
    %s701 = sphi 0, %s698
    %s702 = sphi 0, %s701
    %s718 = sphi 0, %s702
    %s724 = sphi 0, %s726
    %s727 = sphi 0, %s724
    %s728 = sphi 0, %s727
    %s744 = sphi 0, %s728
    %s750 = sphi 0, %s752
    %s753 = sphi 0, %s750
    %s754 = sphi 0, %s753
    %s770 = sphi 0, %s754
    %s776 = sphi 0, %s778
    %s779 = sphi 0, %s776
    %s780 = sphi 0, %s779
    %s796 = sphi 0, %s780
  $region4: #{focustrack_forward.1} parent=0 // loop_header_branch
    %77 = sbr.rel (%p75) target = $region8
  $region5: #{focustrack_forward.1} parent=0 // loop_body
    %s79 = ssub.s32 %s74, 1
    %s80 = ssub.s32 %s74, 2
    %s81 = sadd.s32 %s74, 1
    %s82 = ssub.s32 %s74, %s81
    %p83 = scmp.eq.s32.totalorder %s82, 0
    %s85 = sadd.s32 %s84, 1
    %s86 = scalar_select %p83, %s84, %s85
    %p89 = pneg %p83
    %p90 = scmp.eq.s32.totalorder %s74, 1
    %p91 = por %p89, %p90
    %p92 = scmp.ne.s32.totalorder %s84, %s87
    %p93 = scmp.eq.s32.totalorder %s74, 0
    %p94 = por %p92, %p93
    %p95 = scmp.ne.s32.totalorder %s84, %s87
    %p96 = scmp.eq.s32.totalorder %s79, 1
    %p97 = por %p95, %p96
    %p98 = scmp.ne.s32.totalorder %s87, %s88
    %p99 = scmp.eq.s32.totalorder %s79, 0
    %p100 = por %p98, %p99
    %p101 = scmp.ne.s32.totalorder %s87, %s88
    %p102 = scmp.eq.s32.totalorder %s80, 1
    %p103 = por %p101, %p102
    %p105 = scmp.ne.s32.totalorder %s88, %s104
    %p106 = scmp.eq.s32.totalorder %s80, 0
    %p107 = por %p105, %p106
    %s109 = sadd.s32 %s108, 1
    %p112 = scmp.eq.s32.totalorder %s74, 1
    %p113 = scmp.ne.s32.totalorder %s108, %s110
    %p114 = scmp.eq.s32.totalorder %s74, 0
    %p115 = por %p113, %p114
    %p116 = scmp.ne.s32.totalorder %s108, %s110
    %p117 = scmp.eq.s32.totalorder %s79, 1
    %p118 = por %p116, %p117
    %p119 = scmp.ne.s32.totalorder %s110, %s111
    %p120 = scmp.eq.s32.totalorder %s79, 0
    %p121 = por %p119, %p120
    %p122 = scmp.ne.s32.totalorder %s110, %s111
    %p123 = scmp.eq.s32.totalorder %s80, 1
    %p124 = por %p122, %p123
    %p126 = scmp.ne.s32.totalorder %s111, %s125
    %p127 = scmp.eq.s32.totalorder %s80, 0
    %p128 = por %p126, %p127
    %s130 = sadd.s32 %s129, 1
    %p133 = scmp.eq.s32.totalorder %s74, 1
    %p134 = scmp.ne.s32.totalorder %s129, %s131
    %p135 = scmp.eq.s32.totalorder %s74, 0
    %p136 = por %p134, %p135
    %p137 = scmp.ne.s32.totalorder %s129, %s131
    %p138 = scmp.eq.s32.totalorder %s79, 1
    %p139 = por %p137, %p138
    %p140 = scmp.ne.s32.totalorder %s131, %s132
    %p141 = scmp.eq.s32.totalorder %s79, 0
    %p142 = por %p140, %p141
    %p143 = scmp.ne.s32.totalorder %s131, %s132
    %p144 = scmp.eq.s32.totalorder %s80, 1
    %p145 = por %p143, %p144
    %p147 = scmp.ne.s32.totalorder %s132, %s146
    %p148 = scmp.eq.s32.totalorder %s80, 0
    %p149 = por %p147, %p148
    %s151 = sadd.s32 %s150, 1
    %p154 = scmp.eq.s32.totalorder %s74, 1
    %p155 = scmp.ne.s32.totalorder %s150, %s152
    %p156 = scmp.eq.s32.totalorder %s74, 0
    %p157 = por %p155, %p156
    %p158 = scmp.ne.s32.totalorder %s150, %s152
    %p159 = scmp.eq.s32.totalorder %s79, 1
    %p160 = por %p158, %p159
    %p161 = scmp.ne.s32.totalorder %s152, %s153
    %p162 = scmp.eq.s32.totalorder %s79, 0
    %p163 = por %p161, %p162
    %p164 = scmp.ne.s32.totalorder %s152, %s153
    %p165 = scmp.eq.s32.totalorder %s80, 1
    %p166 = por %p164, %p165
    %p168 = scmp.ne.s32.totalorder %s153, %s167
    %p169 = scmp.eq.s32.totalorder %s80, 0
    %p170 = por %p168, %p169
    %s172 = sadd.s32 %s171, 1
    %p175 = scmp.eq.s32.totalorder %s74, 1
    %p176 = scmp.ne.s32.totalorder %s171, %s173
    %p177 = scmp.eq.s32.totalorder %s74, 0
    %p178 = por %p176, %p177
    %p179 = scmp.ne.s32.totalorder %s171, %s173
    %p180 = scmp.eq.s32.totalorder %s79, 1
    %p181 = por %p179, %p180
    %p182 = scmp.ne.s32.totalorder %s173, %s174
    %p183 = scmp.eq.s32.totalorder %s79, 0
    %p184 = por %p182, %p183
    %p185 = scmp.ne.s32.totalorder %s173, %s174
    %p186 = scmp.eq.s32.totalorder %s80, 1
    %p187 = por %p185, %p186
    %p189 = scmp.ne.s32.totalorder %s174, %s188
    %p190 = scmp.eq.s32.totalorder %s80, 0
    %p191 = por %p189, %p190
    %s193 = sadd.s32 %s192, 1
    %p196 = scmp.eq.s32.totalorder %s74, 1
    %p197 = scmp.ne.s32.totalorder %s192, %s194
    %p198 = scmp.eq.s32.totalorder %s74, 0
    %p199 = por %p197, %p198
    %p200 = scmp.ne.s32.totalorder %s192, %s194
    %p201 = scmp.eq.s32.totalorder %s79, 1
    %p202 = por %p200, %p201
    %p203 = scmp.ne.s32.totalorder %s194, %s195
    %p204 = scmp.eq.s32.totalorder %s79, 0
    %p205 = por %p203, %p204
    %p206 = scmp.ne.s32.totalorder %s194, %s195
    %p207 = scmp.eq.s32.totalorder %s80, 1
    %p208 = por %p206, %p207
    %p210 = scmp.ne.s32.totalorder %s195, %s209
    %p211 = scmp.eq.s32.totalorder %s80, 0
    %p212 = por %p210, %p211
    %s214 = sadd.s32 %s213, 1
    %p217 = scmp.eq.s32.totalorder %s74, 1
    %p218 = scmp.ne.s32.totalorder %s213, %s215
    %p219 = scmp.eq.s32.totalorder %s74, 0
    %p220 = por %p218, %p219
    %p221 = scmp.ne.s32.totalorder %s213, %s215
    %p222 = scmp.eq.s32.totalorder %s79, 1
    %p223 = por %p221, %p222
    %p224 = scmp.ne.s32.totalorder %s215, %s216
    %p225 = scmp.eq.s32.totalorder %s79, 0
    %p226 = por %p224, %p225
    %p227 = scmp.ne.s32.totalorder %s215, %s216
    %p228 = scmp.eq.s32.totalorder %s80, 1
    %p229 = por %p227, %p228
    %p231 = scmp.ne.s32.totalorder %s216, %s230
    %p232 = scmp.eq.s32.totalorder %s80, 0
    %p233 = por %p231, %p232
    %s235 = sadd.s32 %s234, 1
    %p238 = scmp.eq.s32.totalorder %s74, 1
    %p239 = scmp.ne.s32.totalorder %s234, %s236
    %p240 = scmp.eq.s32.totalorder %s74, 0
    %p241 = por %p239, %p240
    %p242 = scmp.ne.s32.totalorder %s234, %s236
    %p243 = scmp.eq.s32.totalorder %s79, 1
    %p244 = por %p242, %p243
    %p245 = scmp.ne.s32.totalorder %s236, %s237
    %p246 = scmp.eq.s32.totalorder %s79, 0
    %p247 = por %p245, %p246
    %p248 = scmp.ne.s32.totalorder %s236, %s237
    %p249 = scmp.eq.s32.totalorder %s80, 1
    %p250 = por %p248, %p249
    %p252 = scmp.ne.s32.totalorder %s237, %s251
    %p253 = scmp.eq.s32.totalorder %s80, 0
    %p254 = por %p252, %p253
    %s256 = sadd.s32 %s255, 1
    %p259 = scmp.eq.s32.totalorder %s74, 1
    %p260 = scmp.ne.s32.totalorder %s255, %s257
    %p261 = scmp.eq.s32.totalorder %s74, 0
    %p262 = por %p260, %p261
    %p263 = scmp.ne.s32.totalorder %s255, %s257
    %p264 = scmp.eq.s32.totalorder %s79, 1
    %p265 = por %p263, %p264
    %p266 = scmp.ne.s32.totalorder %s257, %s258
    %p267 = scmp.eq.s32.totalorder %s79, 0
    %p268 = por %p266, %p267
    %p269 = scmp.ne.s32.totalorder %s257, %s258
    %p270 = scmp.eq.s32.totalorder %s80, 1
    %p271 = por %p269, %p270
    %p273 = scmp.ne.s32.totalorder %s258, %s272
    %p274 = scmp.eq.s32.totalorder %s80, 0
    %p275 = por %p273, %p274
    %s277 = sadd.s32 %s276, 1
    %p280 = scmp.eq.s32.totalorder %s74, 1
    %p281 = scmp.ne.s32.totalorder %s276, %s278
    %p282 = scmp.eq.s32.totalorder %s74, 0
    %p283 = por %p281, %p282
    %p284 = scmp.ne.s32.totalorder %s276, %s278
    %p285 = scmp.eq.s32.totalorder %s79, 1
    %p286 = por %p284, %p285
    %p287 = scmp.ne.s32.totalorder %s278, %s279
    %p288 = scmp.eq.s32.totalorder %s79, 0
    %p289 = por %p287, %p288
    %p290 = scmp.ne.s32.totalorder %s278, %s279
    %p291 = scmp.eq.s32.totalorder %s80, 1
    %p292 = por %p290, %p291
    %p294 = scmp.ne.s32.totalorder %s279, %s293
    %p295 = scmp.eq.s32.totalorder %s80, 0
    %p296 = por %p294, %p295
    %s298 = sadd.s32 %s297, 1
    %p301 = scmp.eq.s32.totalorder %s74, 1
    %p302 = scmp.ne.s32.totalorder %s297, %s299
    %p303 = scmp.eq.s32.totalorder %s74, 0
    %p304 = por %p302, %p303
    %p305 = scmp.ne.s32.totalorder %s297, %s299
    %p306 = scmp.eq.s32.totalorder %s79, 1
    %p307 = por %p305, %p306
    %p308 = scmp.ne.s32.totalorder %s299, %s300
    %p309 = scmp.eq.s32.totalorder %s79, 0
    %p310 = por %p308, %p309
    %p311 = scmp.ne.s32.totalorder %s299, %s300
    %p312 = scmp.eq.s32.totalorder %s80, 1
    %p313 = por %p311, %p312
    %p315 = scmp.ne.s32.totalorder %s300, %s314
    %p316 = scmp.eq.s32.totalorder %s80, 0
    %p317 = por %p315, %p316
    %s319 = sadd.s32 %s318, 1
    %p322 = scmp.eq.s32.totalorder %s74, 1
    %p323 = scmp.ne.s32.totalorder %s318, %s320
    %p324 = scmp.eq.s32.totalorder %s74, 0
    %p325 = por %p323, %p324
    %p326 = scmp.ne.s32.totalorder %s318, %s320
    %p327 = scmp.eq.s32.totalorder %s79, 1
    %p328 = por %p326, %p327
    %p329 = scmp.ne.s32.totalorder %s320, %s321
    %p330 = scmp.eq.s32.totalorder %s79, 0
    %p331 = por %p329, %p330
    %p332 = scmp.ne.s32.totalorder %s320, %s321
    %p333 = scmp.eq.s32.totalorder %s80, 1
    %p334 = por %p332, %p333
    %p336 = scmp.ne.s32.totalorder %s321, %s335
    %p337 = scmp.eq.s32.totalorder %s80, 0
    %p338 = por %p336, %p337
    %s340 = sadd.s32 %s339, 1
    %p343 = scmp.eq.s32.totalorder %s74, 1
    %p344 = scmp.ne.s32.totalorder %s339, %s341
    %p345 = scmp.eq.s32.totalorder %s74, 0
    %p346 = por %p344, %p345
    %p347 = scmp.ne.s32.totalorder %s339, %s341
    %p348 = scmp.eq.s32.totalorder %s79, 1
    %p349 = por %p347, %p348
    %p350 = scmp.ne.s32.totalorder %s341, %s342
    %p351 = scmp.eq.s32.totalorder %s79, 0
    %p352 = por %p350, %p351
    %p353 = scmp.ne.s32.totalorder %s341, %s342
    %p354 = scmp.eq.s32.totalorder %s80, 1
    %p355 = por %p353, %p354
    %p357 = scmp.ne.s32.totalorder %s342, %s356
    %p358 = scmp.eq.s32.totalorder %s80, 0
    %p359 = por %p357, %p358
    %s361 = sadd.s32 %s360, 1
    %p364 = scmp.eq.s32.totalorder %s74, 1
    %p365 = scmp.ne.s32.totalorder %s360, %s362
    %p366 = scmp.eq.s32.totalorder %s74, 0
    %p367 = por %p365, %p366
    %p368 = scmp.ne.s32.totalorder %s360, %s362
    %p369 = scmp.eq.s32.totalorder %s79, 1
    %p370 = por %p368, %p369
    %p371 = scmp.ne.s32.totalorder %s362, %s363
    %p372 = scmp.eq.s32.totalorder %s79, 0
    %p373 = por %p371, %p372
    %p374 = scmp.ne.s32.totalorder %s362, %s363
    %p375 = scmp.eq.s32.totalorder %s80, 1
    %p376 = por %p374, %p375
    %p378 = scmp.ne.s32.totalorder %s363, %s377
    %p379 = scmp.eq.s32.totalorder %s80, 0
    %p380 = por %p378, %p379
    %s382 = sadd.s32 %s381, 1
    %p385 = scmp.eq.s32.totalorder %s74, 1
    %p386 = scmp.ne.s32.totalorder %s381, %s383
    %p387 = scmp.eq.s32.totalorder %s74, 0
    %p388 = por %p386, %p387
    %p389 = scmp.ne.s32.totalorder %s381, %s383
    %p390 = scmp.eq.s32.totalorder %s79, 1
    %p391 = por %p389, %p390
    %p392 = scmp.ne.s32.totalorder %s383, %s384
    %p393 = scmp.eq.s32.totalorder %s79, 0
    %p394 = por %p392, %p393
    %p395 = scmp.ne.s32.totalorder %s383, %s384
    %p396 = scmp.eq.s32.totalorder %s80, 1
    %p397 = por %p395, %p396
    %p399 = scmp.ne.s32.totalorder %s384, %s398
    %p400 = scmp.eq.s32.totalorder %s80, 0
    %p401 = por %p399, %p400
    %s403 = sadd.s32 %s402, 1
    %p406 = scmp.eq.s32.totalorder %s74, 1
    %p407 = scmp.ne.s32.totalorder %s402, %s404
    %p408 = scmp.eq.s32.totalorder %s74, 0
    %p409 = por %p407, %p408
    %p410 = scmp.ne.s32.totalorder %s402, %s404
    %p411 = scmp.eq.s32.totalorder %s79, 1
    %p412 = por %p410, %p411
    %p413 = scmp.ne.s32.totalorder %s404, %s405
    %p414 = scmp.eq.s32.totalorder %s79, 0
    %p415 = por %p413, %p414
    %p416 = scmp.ne.s32.totalorder %s404, %s405
    %p417 = scmp.eq.s32.totalorder %s80, 1
    %p418 = por %p416, %p417
    %p420 = scmp.ne.s32.totalorder %s405, %s419
    %p421 = scmp.eq.s32.totalorder %s80, 0
    %p422 = por %p420, %p421
    %s424 = sadd.s32 %s423, 1
    %p427 = scmp.eq.s32.totalorder %s74, 1
    %p428 = scmp.ne.s32.totalorder %s423, %s425
    %p429 = scmp.eq.s32.totalorder %s74, 0
    %p430 = por %p428, %p429
    %p431 = scmp.ne.s32.totalorder %s423, %s425
    %p432 = scmp.eq.s32.totalorder %s79, 1
    %p433 = por %p431, %p432
    %p434 = scmp.ne.s32.totalorder %s425, %s426
    %p435 = scmp.eq.s32.totalorder %s79, 0
    %p436 = por %p434, %p435
    %p437 = scmp.ne.s32.totalorder %s425, %s426
    %p438 = scmp.eq.s32.totalorder %s80, 1
    %p439 = por %p437, %p438
    %p441 = scmp.ne.s32.totalorder %s426, %s440
    %p442 = scmp.eq.s32.totalorder %s80, 0
    %p443 = por %p441, %p442
    %s445 = sadd.s32 %s444, 1
    %p448 = scmp.eq.s32.totalorder %s74, 1
    %p449 = scmp.ne.s32.totalorder %s444, %s446
    %p450 = scmp.eq.s32.totalorder %s74, 0
    %p451 = por %p449, %p450
    %p452 = scmp.ne.s32.totalorder %s444, %s446
    %p453 = scmp.eq.s32.totalorder %s79, 1
    %p454 = por %p452, %p453
    %p455 = scmp.ne.s32.totalorder %s446, %s447
    %p456 = scmp.eq.s32.totalorder %s79, 0
    %p457 = por %p455, %p456
    %p458 = scmp.ne.s32.totalorder %s446, %s447
    %p459 = scmp.eq.s32.totalorder %s80, 1
    %p460 = por %p458, %p459
    %p462 = scmp.ne.s32.totalorder %s447, %s461
    %p463 = scmp.eq.s32.totalorder %s80, 0
    %p464 = por %p462, %p463
    %s466 = sadd.s32 %s465, 1
    %p469 = scmp.eq.s32.totalorder %s74, 1
    %p470 = scmp.ne.s32.totalorder %s465, %s467
    %p471 = scmp.eq.s32.totalorder %s74, 0
    %p472 = por %p470, %p471
    %p473 = scmp.ne.s32.totalorder %s465, %s467
    %p474 = scmp.eq.s32.totalorder %s79, 1
    %p475 = por %p473, %p474
    %p476 = scmp.ne.s32.totalorder %s467, %s468
    %p477 = scmp.eq.s32.totalorder %s79, 0
    %p478 = por %p476, %p477
    %p479 = scmp.ne.s32.totalorder %s467, %s468
    %p480 = scmp.eq.s32.totalorder %s80, 1
    %p481 = por %p479, %p480
    %p483 = scmp.ne.s32.totalorder %s468, %s482
    %p484 = scmp.eq.s32.totalorder %s80, 0
    %p485 = por %p483, %p484
    %s487 = sadd.s32 %s486, 1
    %p490 = scmp.eq.s32.totalorder %s74, 1
    %p491 = scmp.ne.s32.totalorder %s486, %s488
    %p492 = scmp.eq.s32.totalorder %s74, 0
    %p493 = por %p491, %p492
    %p494 = scmp.ne.s32.totalorder %s486, %s488
    %p495 = scmp.eq.s32.totalorder %s79, 1
    %p496 = por %p494, %p495
    %p497 = scmp.ne.s32.totalorder %s488, %s489
    %p498 = scmp.eq.s32.totalorder %s79, 0
    %p499 = por %p497, %p498
    %p500 = scmp.ne.s32.totalorder %s488, %s489
    %p501 = scmp.eq.s32.totalorder %s80, 1
    %p502 = por %p500, %p501
    %p504 = scmp.ne.s32.totalorder %s489, %s503
    %p505 = scmp.eq.s32.totalorder %s80, 0
    %p506 = por %p504, %p505
    %s508 = sadd.s32 %s507, 1
    %p511 = scmp.eq.s32.totalorder %s74, 1
    %p512 = scmp.ne.s32.totalorder %s507, %s509
    %p513 = scmp.eq.s32.totalorder %s74, 0
    %p514 = por %p512, %p513
    %p515 = scmp.ne.s32.totalorder %s507, %s509
    %p516 = scmp.eq.s32.totalorder %s79, 1
    %p517 = por %p515, %p516
    %p518 = scmp.ne.s32.totalorder %s509, %s510
    %p519 = scmp.eq.s32.totalorder %s79, 0
    %p520 = por %p518, %p519
    %p521 = scmp.ne.s32.totalorder %s509, %s510
    %p522 = scmp.eq.s32.totalorder %s80, 1
    %p523 = por %p521, %p522
    %p525 = scmp.ne.s32.totalorder %s510, %s524
    %p526 = scmp.eq.s32.totalorder %s80, 0
    %p527 = por %p525, %p526
    %s529 = sadd.s32 %s528, 1
    %p532 = scmp.eq.s32.totalorder %s74, 1
    %p533 = scmp.ne.s32.totalorder %s528, %s530
    %p534 = scmp.eq.s32.totalorder %s74, 0
    %p535 = por %p533, %p534
    %p536 = scmp.ne.s32.totalorder %s528, %s530
    %p537 = scmp.eq.s32.totalorder %s79, 1
    %p538 = por %p536, %p537
    %p539 = scmp.ne.s32.totalorder %s530, %s531
    %p540 = scmp.eq.s32.totalorder %s79, 0
    %p541 = por %p539, %p540
    %p542 = scmp.ne.s32.totalorder %s530, %s531
    %p543 = scmp.eq.s32.totalorder %s80, 1
    %p544 = por %p542, %p543
    %p546 = scmp.ne.s32.totalorder %s531, %s545
    %p547 = scmp.eq.s32.totalorder %s80, 0
    %p548 = por %p546, %p547
    %s550 = sadd.s32 %s549, 1
    %p553 = scmp.eq.s32.totalorder %s74, 1
    %p554 = scmp.ne.s32.totalorder %s549, %s551
    %p555 = scmp.eq.s32.totalorder %s74, 0
    %p556 = por %p554, %p555
    %p557 = scmp.ne.s32.totalorder %s549, %s551
    %p558 = scmp.eq.s32.totalorder %s79, 1
    %p559 = por %p557, %p558
    %p560 = scmp.ne.s32.totalorder %s551, %s552
    %p561 = scmp.eq.s32.totalorder %s79, 0
    %p562 = por %p560, %p561
    %p563 = scmp.ne.s32.totalorder %s551, %s552
    %p564 = scmp.eq.s32.totalorder %s80, 1
    %p565 = por %p563, %p564
    %p567 = scmp.ne.s32.totalorder %s552, %s566
    %p568 = scmp.eq.s32.totalorder %s80, 0
    %p569 = por %p567, %p568
    %s571 = sadd.s32 %s570, 1
    %p574 = scmp.eq.s32.totalorder %s74, 1
    %p575 = scmp.ne.s32.totalorder %s570, %s572
    %p576 = scmp.eq.s32.totalorder %s74, 0
    %p577 = por %p575, %p576
    %p578 = scmp.ne.s32.totalorder %s570, %s572
    %p579 = scmp.eq.s32.totalorder %s79, 1
    %p580 = por %p578, %p579
    %p581 = scmp.ne.s32.totalorder %s572, %s573
    %p582 = scmp.eq.s32.totalorder %s79, 0
    %p583 = por %p581, %p582
    %p584 = scmp.ne.s32.totalorder %s572, %s573
    %p585 = scmp.eq.s32.totalorder %s80, 1
    %p586 = por %p584, %p585
    %p588 = scmp.ne.s32.totalorder %s573, %s587
    %p589 = scmp.eq.s32.totalorder %s80, 0
    %p590 = por %p588, %p589
    %s592 = sadd.s32 %s591, 1
    %p595 = scmp.eq.s32.totalorder %s74, 1
    %p596 = scmp.ne.s32.totalorder %s591, %s593
    %p597 = scmp.eq.s32.totalorder %s74, 0
    %p598 = por %p596, %p597
    %p599 = scmp.ne.s32.totalorder %s591, %s593
    %p600 = scmp.eq.s32.totalorder %s79, 1
    %p601 = por %p599, %p600
    %p602 = scmp.ne.s32.totalorder %s593, %s594
    %p603 = scmp.eq.s32.totalorder %s79, 0
    %p604 = por %p602, %p603
    %p605 = scmp.ne.s32.totalorder %s593, %s594
    %p606 = scmp.eq.s32.totalorder %s80, 1
    %p607 = por %p605, %p606
    %p609 = scmp.ne.s32.totalorder %s594, %s608
    %p610 = scmp.eq.s32.totalorder %s80, 0
    %p611 = por %p609, %p610
    %s613 = sadd.s32 %s612, 1
    %p616 = scmp.eq.s32.totalorder %s74, 1
    %p617 = scmp.ne.s32.totalorder %s612, %s614
    %p618 = scmp.eq.s32.totalorder %s74, 0
    %p619 = por %p617, %p618
    %p620 = scmp.ne.s32.totalorder %s612, %s614
    %p621 = scmp.eq.s32.totalorder %s79, 1
    %p622 = por %p620, %p621
    %p623 = scmp.ne.s32.totalorder %s614, %s615
    %p624 = scmp.eq.s32.totalorder %s79, 0
    %p625 = por %p623, %p624
    %p626 = scmp.ne.s32.totalorder %s614, %s615
    %p627 = scmp.eq.s32.totalorder %s80, 1
    %p628 = por %p626, %p627
    %p630 = scmp.ne.s32.totalorder %s615, %s629
    %p631 = scmp.eq.s32.totalorder %s80, 0
    %p632 = por %p630, %p631
    %s634 = sadd.s32 %s633, 1
    %p637 = scmp.eq.s32.totalorder %s74, 1
    %p638 = scmp.ne.s32.totalorder %s633, %s635
    %p639 = scmp.eq.s32.totalorder %s74, 0
    %p640 = por %p638, %p639
    %p641 = scmp.ne.s32.totalorder %s633, %s635
    %p642 = scmp.eq.s32.totalorder %s79, 1
    %p643 = por %p641, %p642
    %p644 = scmp.ne.s32.totalorder %s635, %s636
    %p645 = scmp.eq.s32.totalorder %s79, 0
    %p646 = por %p644, %p645
    %p647 = scmp.ne.s32.totalorder %s635, %s636
    %p648 = scmp.eq.s32.totalorder %s80, 1
    %p649 = por %p647, %p648
    %p651 = scmp.ne.s32.totalorder %s636, %s650
    %p652 = scmp.eq.s32.totalorder %s80, 0
    %p653 = por %p651, %p652
    %s655 = sadd.s32 %s654, 1
    %p658 = scmp.eq.s32.totalorder %s74, 1
    %p659 = scmp.ne.s32.totalorder %s654, %s656
    %p660 = scmp.eq.s32.totalorder %s74, 0
    %p661 = por %p659, %p660
    %p662 = scmp.ne.s32.totalorder %s654, %s656
    %p663 = scmp.eq.s32.totalorder %s79, 1
    %p664 = por %p662, %p663
    %p665 = scmp.ne.s32.totalorder %s656, %s657
    %p666 = scmp.eq.s32.totalorder %s79, 0
    %p667 = por %p665, %p666
    %p668 = scmp.ne.s32.totalorder %s656, %s657
    %p669 = scmp.eq.s32.totalorder %s80, 1
    %p670 = por %p668, %p669
    %p672 = scmp.ne.s32.totalorder %s657, %s671
    %p673 = scmp.eq.s32.totalorder %s80, 0
    %p674 = por %p672, %p673
    %s676 = sadd.s32 %s675, 1
    %p679 = scmp.eq.s32.totalorder %s74, 1
    %p680 = scmp.ne.s32.totalorder %s675, %s677
    %p681 = scmp.eq.s32.totalorder %s74, 0
    %p682 = por %p680, %p681
    %p683 = scmp.ne.s32.totalorder %s675, %s677
    %p684 = scmp.eq.s32.totalorder %s79, 1
    %p685 = por %p683, %p684
    %p686 = scmp.ne.s32.totalorder %s677, %s678
    %p687 = scmp.eq.s32.totalorder %s79, 0
    %p688 = por %p686, %p687
    %p689 = scmp.ne.s32.totalorder %s677, %s678
    %p690 = scmp.eq.s32.totalorder %s80, 1
    %p691 = por %p689, %p690
    %p693 = scmp.ne.s32.totalorder %s678, %s692
    %p694 = scmp.eq.s32.totalorder %s80, 0
    %p695 = por %p693, %p694
    %s696 = ssub.s32 %s74, %s81
    %p697 = scmp.eq.s32.totalorder %s696, 0
    %s699 = sadd.s32 %s698, 1
    %s700 = scalar_select %p697, %s698, %s699
    %p703 = pneg %p697
    %p704 = scmp.eq.s32.totalorder %s74, 1
    %p705 = por %p703, %p704
    %p706 = scmp.ne.s32.totalorder %s698, %s701
    %p707 = scmp.eq.s32.totalorder %s74, 0
    %p708 = por %p706, %p707
    %p709 = scmp.ne.s32.totalorder %s698, %s701
    %p710 = scmp.eq.s32.totalorder %s79, 1
    %p711 = por %p709, %p710
    %p712 = scmp.ne.s32.totalorder %s701, %s702
    %p713 = scmp.eq.s32.totalorder %s79, 0
    %p714 = por %p712, %p713
    %p715 = scmp.ne.s32.totalorder %s701, %s702
    %p716 = scmp.eq.s32.totalorder %s80, 1
    %p717 = por %p715, %p716
    %p719 = scmp.ne.s32.totalorder %s702, %s718
    %p720 = scmp.eq.s32.totalorder %s80, 0
    %p721 = por %p719, %p720
    %s722 = ssub.s32 %s74, %s81
    %p723 = scmp.eq.s32.totalorder %s722, 0
    %s725 = sadd.s32 %s724, 1
    %s726 = scalar_select %p723, %s724, %s725
    %p729 = pneg %p723
    %p730 = scmp.eq.s32.totalorder %s74, 1
    %p731 = por %p729, %p730
    %p732 = scmp.ne.s32.totalorder %s724, %s727
    %p733 = scmp.eq.s32.totalorder %s74, 0
    %p734 = por %p732, %p733
    %p735 = scmp.ne.s32.totalorder %s724, %s727
    %p736 = scmp.eq.s32.totalorder %s79, 1
    %p737 = por %p735, %p736
    %p738 = scmp.ne.s32.totalorder %s727, %s728
    %p739 = scmp.eq.s32.totalorder %s79, 0
    %p740 = por %p738, %p739
    %p741 = scmp.ne.s32.totalorder %s727, %s728
    %p742 = scmp.eq.s32.totalorder %s80, 1
    %p743 = por %p741, %p742
    %p745 = scmp.ne.s32.totalorder %s728, %s744
    %p746 = scmp.eq.s32.totalorder %s80, 0
    %p747 = por %p745, %p746
    %s748 = ssub.s32 %s74, %s81
    %p749 = scmp.eq.s32.totalorder %s748, 0
    %s751 = sadd.s32 %s750, 1
    %s752 = scalar_select %p749, %s750, %s751
    %p755 = pneg %p749
    %p756 = scmp.eq.s32.totalorder %s74, 1
    %p757 = por %p755, %p756
    %p758 = scmp.ne.s32.totalorder %s750, %s753
    %p759 = scmp.eq.s32.totalorder %s74, 0
    %p760 = por %p758, %p759
    %p761 = scmp.ne.s32.totalorder %s750, %s753
    %p762 = scmp.eq.s32.totalorder %s79, 1
    %p763 = por %p761, %p762
    %p764 = scmp.ne.s32.totalorder %s753, %s754
    %p765 = scmp.eq.s32.totalorder %s79, 0
    %p766 = por %p764, %p765
    %p767 = scmp.ne.s32.totalorder %s753, %s754
    %p768 = scmp.eq.s32.totalorder %s80, 1
    %p769 = por %p767, %p768
    %p771 = scmp.ne.s32.totalorder %s754, %s770
    %p772 = scmp.eq.s32.totalorder %s80, 0
    %p773 = por %p771, %p772
    %s774 = ssub.s32 %s74, %s81
    %p775 = scmp.eq.s32.totalorder %s774, 0
    %s777 = sadd.s32 %s776, 1
    %s778 = scalar_select %p775, %s776, %s777
    %p781 = pneg %p775
    %p782 = scmp.eq.s32.totalorder %s74, 1
    %p783 = por %p781, %p782
    %p784 = scmp.ne.s32.totalorder %s776, %s779
    %p785 = scmp.eq.s32.totalorder %s74, 0
    %p786 = por %p784, %p785
    %p787 = scmp.ne.s32.totalorder %s776, %s779
    %p788 = scmp.eq.s32.totalorder %s79, 1
    %p789 = por %p787, %p788
    %p790 = scmp.ne.s32.totalorder %s779, %s780
    %p791 = scmp.eq.s32.totalorder %s79, 0
    %p792 = por %p790, %p791
    %p793 = scmp.ne.s32.totalorder %s779, %s780
    %p794 = scmp.eq.s32.totalorder %s80, 1
    %p795 = por %p793, %p794
    %p797 = scmp.ne.s32.totalorder %s780, %s796
    %p798 = scmp.eq.s32.totalorder %s80, 0
    %p799 = por %p797, %p798
    %p800 = scmp.le.s32.totalorder 1, %s74
    %p801 = scmp.lt.s32.totalorder %s74, 3
    %p802 = pnand %p800, %p801
    %p803 = pneg %p802
    // Predicated region
    $region9: #{focustrack_forward.1} parent=5 // pred_check
      _
    $region10: #{focustrack_forward.1} parent=5 // pred_check_branch
      %805 = sbr.rel (%p802) target = $region12
    $region11: #{focustrack_forward.1} parent=5 // pred_region
      %s806 = ssub.s32 %s74, 1
      // Predicated region
      $region13: #{focustrack_forward.1} parent=11 // pred_check
        %p807 = pneg %p121
      $region14: #{focustrack_forward.1} parent=11 // pred_check_branch
        %809 = sbr.rel (%p807) target = $region16
      $region15: #{focustrack_forward.1} parent=11 // pred_region
        _
      $region16: #{focustrack_forward.1} parent=11 // pred_fallthru
        _
      // Predicated region
      $region17: #{focustrack_forward.1} parent=11 // pred_check
        %p810 = pneg %p142
      $region18: #{focustrack_forward.1} parent=11 // pred_check_branch
        %812 = sbr.rel (%p810) target = $region20
      $region19: #{focustrack_forward.1} parent=11 // pred_region
        _
      $region20: #{focustrack_forward.1} parent=11 // pred_fallthru
        _
      // Predicated region
      $region21: #{focustrack_forward.1} parent=11 // pred_check
        %p813 = pneg %p163
      $region22: #{focustrack_forward.1} parent=11 // pred_check_branch
        %815 = sbr.rel (%p813) target = $region24
      $region23: #{focustrack_forward.1} parent=11 // pred_region
        _
      $region24: #{focustrack_forward.1} parent=11 // pred_fallthru
        _
      // Predicated region
      $region25: #{focustrack_forward.1} parent=11 // pred_check
        %p816 = pneg %p184
      $region26: #{focustrack_forward.1} parent=11 // pred_check_branch
        %818 = sbr.rel (%p816) target = $region28
      $region27: #{focustrack_forward.1} parent=11 // pred_region
        _
      $region28: #{focustrack_forward.1} parent=11 // pred_fallthru
        _
      // Predicated region
      $region29: #{focustrack_forward.1} parent=11 // pred_check
        %p819 = pneg %p205
      $region30: #{focustrack_forward.1} parent=11 // pred_check_branch
        %821 = sbr.rel (%p819) target = $region32
      $region31: #{focustrack_forward.1} parent=11 // pred_region
        _
      $region32: #{focustrack_forward.1} parent=11 // pred_fallthru
        _
      // Predicated region
      $region33: #{focustrack_forward.1} parent=11 // pred_check
        %p822 = pneg %p226
      $region34: #{focustrack_forward.1} parent=11 // pred_check_branch
        %824 = sbr.rel (%p822) target = $region36
      $region35: #{focustrack_forward.1} parent=11 // pred_region
        _
      $region36: #{focustrack_forward.1} parent=11 // pred_fallthru
        _
      // Predicated region
      $region37: #{focustrack_forward.1} parent=11 // pred_check
        %p825 = pneg %p247
      $region38: #{focustrack_forward.1} parent=11 // pred_check_branch
        %827 = sbr.rel (%p825) target = $region40
      $region39: #{focustrack_forward.1} parent=11 // pred_region
        _
      $region40: #{focustrack_forward.1} parent=11 // pred_fallthru
        _
      // Predicated region
      $region41: #{focustrack_forward.1} parent=11 // pred_check
        %p828 = pneg %p268
      $region42: #{focustrack_forward.1} parent=11 // pred_check_branch
        %830 = sbr.rel (%p828) target = $region44
      $region43: #{focustrack_forward.1} parent=11 // pred_region
        _
      $region44: #{focustrack_forward.1} parent=11 // pred_fallthru
        _
      // Predicated region
      $region45: #{focustrack_forward.1} parent=11 // pred_check
        %p831 = pneg %p289
      $region46: #{focustrack_forward.1} parent=11 // pred_check_branch
        %833 = sbr.rel (%p831) target = $region48
      $region47: #{focustrack_forward.1} parent=11 // pred_region
        _
      $region48: #{focustrack_forward.1} parent=11 // pred_fallthru
        _
      // Predicated region
      $region49: #{focustrack_forward.1} parent=11 // pred_check
        %p834 = pneg %p310
      $region50: #{focustrack_forward.1} parent=11 // pred_check_branch
        %836 = sbr.rel (%p834) target = $region52
      $region51: #{focustrack_forward.1} parent=11 // pred_region
        _
      $region52: #{focustrack_forward.1} parent=11 // pred_fallthru
        _
      // Predicated region
      $region53: #{focustrack_forward.1} parent=11 // pred_check
        %p837 = pneg %p331
      $region54: #{focustrack_forward.1} parent=11 // pred_check_branch
        %839 = sbr.rel (%p837) target = $region56
      $region55: #{focustrack_forward.1} parent=11 // pred_region
        _
      $region56: #{focustrack_forward.1} parent=11 // pred_fallthru
        _
      // Predicated region
      $region57: #{focustrack_forward.1} parent=11 // pred_check
        %p840 = pneg %p352
      $region58: #{focustrack_forward.1} parent=11 // pred_check_branch
        %842 = sbr.rel (%p840) target = $region60
      $region59: #{focustrack_forward.1} parent=11 // pred_region
        _
      $region60: #{focustrack_forward.1} parent=11 // pred_fallthru
        _
      // Predicated region
      $region61: #{focustrack_forward.1} parent=11 // pred_check
        %p843 = pneg %p373
      $region62: #{focustrack_forward.1} parent=11 // pred_check_branch
        %845 = sbr.rel (%p843) target = $region64
      $region63: #{focustrack_forward.1} parent=11 // pred_region
        _
      $region64: #{focustrack_forward.1} parent=11 // pred_fallthru
        _
      // Predicated region
      $region65: #{focustrack_forward.1} parent=11 // pred_check
        %p846 = pneg %p394
      $region66: #{focustrack_forward.1} parent=11 // pred_check_branch
        %848 = sbr.rel (%p846) target = $region68
      $region67: #{focustrack_forward.1} parent=11 // pred_region
        _
      $region68: #{focustrack_forward.1} parent=11 // pred_fallthru
        _
      // Predicated region
      $region69: #{focustrack_forward.1} parent=11 // pred_check
        %p849 = pneg %p415
      $region70: #{focustrack_forward.1} parent=11 // pred_check_branch
        %851 = sbr.rel (%p849) target = $region72
      $region71: #{focustrack_forward.1} parent=11 // pred_region
        _
      $region72: #{focustrack_forward.1} parent=11 // pred_fallthru
        _
      // Predicated region
      $region73: #{focustrack_forward.1} parent=11 // pred_check
        %p852 = pneg %p436
      $region74: #{focustrack_forward.1} parent=11 // pred_check_branch
        %854 = sbr.rel (%p852) target = $region76
      $region75: #{focustrack_forward.1} parent=11 // pred_region
        _
      $region76: #{focustrack_forward.1} parent=11 // pred_fallthru
        _
      // Predicated region
      $region77: #{focustrack_forward.1} parent=11 // pred_check
        %p855 = pneg %p457
      $region78: #{focustrack_forward.1} parent=11 // pred_check_branch
        %857 = sbr.rel (%p855) target = $region80
      $region79: #{focustrack_forward.1} parent=11 // pred_region
        _
      $region80: #{focustrack_forward.1} parent=11 // pred_fallthru
        _
      // Predicated region
      $region81: #{focustrack_forward.1} parent=11 // pred_check
        %p858 = pneg %p478
      $region82: #{focustrack_forward.1} parent=11 // pred_check_branch
        %860 = sbr.rel (%p858) target = $region84
      $region83: #{focustrack_forward.1} parent=11 // pred_region
        _
      $region84: #{focustrack_forward.1} parent=11 // pred_fallthru
        _
      // Predicated region
      $region85: #{focustrack_forward.1} parent=11 // pred_check
        %p861 = pneg %p499
      $region86: #{focustrack_forward.1} parent=11 // pred_check_branch
        %863 = sbr.rel (%p861) target = $region88
      $region87: #{focustrack_forward.1} parent=11 // pred_region
        _
      $region88: #{focustrack_forward.1} parent=11 // pred_fallthru
        _
      // Predicated region
      $region89: #{focustrack_forward.1} parent=11 // pred_check
        %p864 = pneg %p520
      $region90: #{focustrack_forward.1} parent=11 // pred_check_branch
        %866 = sbr.rel (%p864) target = $region92
      $region91: #{focustrack_forward.1} parent=11 // pred_region
        _
      $region92: #{focustrack_forward.1} parent=11 // pred_fallthru
        _
      // Predicated region
      $region93: #{focustrack_forward.1} parent=11 // pred_check
        %p867 = pneg %p541
      $region94: #{focustrack_forward.1} parent=11 // pred_check_branch
        %869 = sbr.rel (%p867) target = $region96
      $region95: #{focustrack_forward.1} parent=11 // pred_region
        _
      $region96: #{focustrack_forward.1} parent=11 // pred_fallthru
        _
      // Predicated region
      $region97: #{focustrack_forward.1} parent=11 // pred_check
        %p870 = pneg %p562
      $region98: #{focustrack_forward.1} parent=11 // pred_check_branch
        %872 = sbr.rel (%p870) target = $region100
      $region99: #{focustrack_forward.1} parent=11 // pred_region
        _
      $region100: #{focustrack_forward.1} parent=11 // pred_fallthru
        _
      // Predicated region
      $region101: #{focustrack_forward.1} parent=11 // pred_check
        %p873 = pneg %p583
      $region102: #{focustrack_forward.1} parent=11 // pred_check_branch
        %875 = sbr.rel (%p873) target = $region104
      $region103: #{focustrack_forward.1} parent=11 // pred_region
        _
      $region104: #{focustrack_forward.1} parent=11 // pred_fallthru
        _
      // Predicated region
      $region105: #{focustrack_forward.1} parent=11 // pred_check
        %p876 = pneg %p604
      $region106: #{focustrack_forward.1} parent=11 // pred_check_branch
        %878 = sbr.rel (%p876) target = $region108
      $region107: #{focustrack_forward.1} parent=11 // pred_region
        _
      $region108: #{focustrack_forward.1} parent=11 // pred_fallthru
        _
      // Predicated region
      $region109: #{focustrack_forward.1} parent=11 // pred_check
        %p879 = pneg %p625
      $region110: #{focustrack_forward.1} parent=11 // pred_check_branch
        %881 = sbr.rel (%p879) target = $region112
      $region111: #{focustrack_forward.1} parent=11 // pred_region
        _
      $region112: #{focustrack_forward.1} parent=11 // pred_fallthru
        _
      // Predicated region
      $region113: #{focustrack_forward.1} parent=11 // pred_check
        %p882 = pneg %p646
      $region114: #{focustrack_forward.1} parent=11 // pred_check_branch
        %884 = sbr.rel (%p882) target = $region116
      $region115: #{focustrack_forward.1} parent=11 // pred_region
        _
      $region116: #{focustrack_forward.1} parent=11 // pred_fallthru
        _
      // Predicated region
      $region117: #{focustrack_forward.1} parent=11 // pred_check
        %p885 = pneg %p667
      $region118: #{focustrack_forward.1} parent=11 // pred_check_branch
        %887 = sbr.rel (%p885) target = $region120
      $region119: #{focustrack_forward.1} parent=11 // pred_region
        _
      $region120: #{focustrack_forward.1} parent=11 // pred_fallthru
        _
      // Predicated region
      $region121: #{focustrack_forward.1} parent=11 // pred_check
        %p888 = pneg %p688
      $region122: #{focustrack_forward.1} parent=11 // pred_check_branch
        %890 = sbr.rel (%p888) target = $region124
      $region123: #{focustrack_forward.1} parent=11 // pred_region
        _
      $region124: #{focustrack_forward.1} parent=11 // pred_fallthru
        _
    $region12: #{focustrack_forward.1} parent=5 // pred_fallthru
      _
    %p891 = scmp.lt.s32.totalorder %s74, 2
    // Predicated region
    $region125: #{focustrack_forward.1} parent=5 // pred_check
      %p892 = pneg %p891
    $region126: #{focustrack_forward.1} parent=5 // pred_check_branch
      %894 = sbr.rel (%p892) target = $region128
    $region127: #{focustrack_forward.1} parent=5 // pred_region
      // Predicated region
      $region129: #{focustrack_forward.1} parent=127 // pred_check
        %p895 = pneg %p94
      $region130: #{focustrack_forward.1} parent=127 // pred_check_branch
        %897 = sbr.rel (%p895) target = $region132
      $region131: #{focustrack_forward.1} parent=127 // pred_region
        %p898 = scmp.lt.s32.totalorder %s74, 1
        %s899 = scalar_select %p898, %s74, 1
        %s900 = smul.addr %s899, 18
        %s901 = smul.addr %s900, 8
        %s902 = scalar_lea.vmem %s1, %s901
      $region132: #{focustrack_forward.1} parent=127 // pred_fallthru
        _
    $region128: #{focustrack_forward.1} parent=5 // pred_fallthru
      _
    %p903 = scmp.le.s32.totalorder 1, %s74
    %p904 = scmp.lt.s32.totalorder %s74, 3
    %p905 = pnand %p903, %p904
    %p906 = pneg %p905
    // Predicated region
    $region133: #{focustrack_forward.1} parent=5 // pred_check
      _
    $region134: #{focustrack_forward.1} parent=5 // pred_check_branch
      %908 = sbr.rel (%p905) target = $region136
    $region135: #{focustrack_forward.1} parent=5 // pred_region
      %s909 = ssub.s32 %s74, 1
      %p910 = scmp.lt.s32.totalorder %s79, 1
      %s911 = scalar_select %p910, %s79, 1
      %s912 = smul.addr %s911, 18
      %s913 = smul.addr %s912, 8
      %s914 = scalar_lea.vmem %s1, %s913
      %p915 = pneg %p100
      %p916 = pneg %p97
      %p917 = pneg %p121
      %p918 = pneg %p118
      %p919 = pneg %p142
      %p920 = pneg %p139
      %p921 = pneg %p163
      %p922 = pneg %p160
      %p923 = pneg %p184
      %p924 = pneg %p181
      %p925 = pneg %p205
      %p926 = pneg %p202
      %p927 = pneg %p226
      %p928 = pneg %p223
      %p929 = pneg %p247
      %p930 = pneg %p244
      %p931 = pneg %p268
      %p932 = pneg %p265
      %p933 = pneg %p289
      %p934 = pneg %p286
      %p935 = pneg %p310
      %p936 = pneg %p307
      %p937 = pneg %p331
      %p938 = pneg %p328
      %p939 = pneg %p352
      %p940 = pneg %p349
      %p941 = pneg %p373
      %p942 = pneg %p370
      %p943 = pneg %p394
      %p944 = pneg %p391
      %p945 = pneg %p415
      %p946 = pneg %p412
      %p947 = pneg %p436
      %p948 = pneg %p433
      %p949 = pneg %p457
      %p950 = pneg %p454
      %p951 = pneg %p478
      %p952 = pneg %p475
      %p953 = pneg %p499
      %p954 = pneg %p496
      %p955 = pneg %p520
      %p956 = pneg %p517
      %p957 = pneg %p541
      %p958 = pneg %p538
      %p959 = pneg %p562
      %p960 = pneg %p559
      %p961 = pneg %p583
      %p962 = pneg %p580
      %p963 = pneg %p604
      %p964 = pneg %p601
      %p965 = pneg %p625
      %p966 = pneg %p622
      %p967 = pneg %p646
      %p968 = pneg %p643
      %p969 = pneg %p667
      %p970 = pneg %p664
      %p971 = pneg %p688
      %p972 = pneg %p685
      %p973 = pneg %p714
      %p974 = pneg %p711
      %p975 = scmp.lt.s32.totalorder %s79, 1
      %s976 = scalar_select %p975, %s79, 1
      %s977 = smul.addr %s976, 3
      %s978 = smul.addr %s977, 8
      %s979 = scalar_lea.vmem %s59, %s978
      %p980 = pneg %p740
      %p981 = pneg %p737
      %p982 = scmp.lt.s32.totalorder %s79, 1
      %s983 = scalar_select %p982, %s79, 1
      %s984 = smul.addr %s983, 2
      %s985 = smul.addr %s984, 8
      %s986 = scalar_lea.vmem %s61, %s985
      %p987 = pneg %p766
      %p988 = pneg %p763
      %p989 = scmp.lt.s32.totalorder %s79, 1
      %s990 = scalar_select %p989, %s79, 1
      %s991 = smul.addr %s990, 2
      %s992 = scalar_lea.vmem %s63, %s991
      %p993 = pneg %p792
      %p994 = pneg %p789
      %p995 = scmp.lt.s32.totalorder %s79, 1
      %s996 = scalar_select %p995, %s79, 1
      %s997 = scalar_lea.vmem %s65, %s996
      %p998 = scmp.lt.s32.totalorder %s79, 1
      %s999 = scalar_select %p998, %s79, 1
      %s1000 = smul.addr %s999, 18
      %s1001 = smul.addr %s1000, 8
      %s1002 = scalar_lea.vmem %s1, %s1001
      %p1003 = scmp.lt.s32.totalorder %s79, 1
      %s1004 = scalar_select %p1003, %s79, 1
      %s1005 = smul.addr %s1004, 3
      %s1006 = smul.addr %s1005, 8
      %s1007 = scalar_lea.vmem %s59, %s1006
      %p1008 = scmp.lt.s32.totalorder %s79, 1
      %s1009 = scalar_select %p1008, %s79, 1
      %s1010 = smul.addr %s1009, 2
      %s1011 = smul.addr %s1010, 8
      %s1012 = scalar_lea.vmem %s61, %s1011
      %p1013 = scmp.lt.s32.totalorder %s79, 1
      %s1014 = scalar_select %p1013, %s79, 1
      %s1015 = smul.addr %s1014, 2
      %s1016 = scalar_lea.vmem %s63, %s1015
      %p1017 = scmp.lt.s32.totalorder %s79, 1
      %s1018 = scalar_select %p1017, %s79, 1
      %s1019 = scalar_lea.vmem %s65, %s1018
      %v1021 = vld [vmem:[%s1002] sm:$0xff]
      %v1022 = vld [vmem:[%s1002 + $0x8] sm:$0xff]
      %v1023 = vld [vmem:[%s1002 + $0x10] sm:$0xff]
      %v1024 = vld [vmem:[%s1002 + $0x18] sm:$0xff]
      %v1025 = vld [vmem:[%s1002 + $0x20] sm:$0xff]
      %v1026 = vld [vmem:[%s1002 + $0x28] sm:$0xff]
      %v1027 = vld [vmem:[%s1002 + $0x30] sm:$0xff]
      %v1028 = vld [vmem:[%s1002 + $0x38] sm:$0xff]
      %v1029 = vld [vmem:[%s1002 + $0x40] sm:$0xff]
      %v1030 = vld [vmem:[%s1002 + $0x48] sm:$0xff]
      %v1031 = vld [vmem:[%s1002 + $0x50] sm:$0xff]
      %v1032 = vld [vmem:[%s1002 + $0x58] sm:$0xff]
      %v1033 = vld [vmem:[%s1002 + $0x60] sm:$0xf]
      %v1034 = vld [vmem:[%s1002 + $0x68] sm:$0xf]
      %v1035 = vld [vmem:[%s1002 + $0x70] sm:$0xf]
      %v1036 = vld [vmem:[%s1002 + $0x78] sm:$0xf]
      %v1037 = vld [vmem:[%s1002 + $0x80] sm:$0xf]
      %v1038 = vld [vmem:[%s1002 + $0x88] sm:$0xf]
      %v1039 = vld [vmem:[%s5] sm:$0xff]
      %v1040 = vld [vmem:[%s5 + $0x8] sm:$0xff]
      %v1041 = vld [vmem:[%s5 + $0x10] sm:$0xff]
      %v1042 = vld [vmem:[%s5 + $0x18] sm:$0xff]
      %v1043 = vld [vmem:[%s5 + $0x20] sm:$0xff]
      %v1044 = vld [vmem:[%s5 + $0x28] sm:$0xff]
      %v1045 = vld [vmem:[%s5 + $0x30] sm:$0xff]
      %v1046 = vld [vmem:[%s5 + $0x38] sm:$0xff]
      %v1047 = vld [vmem:[%s5 + $0x40] sm:$0xff]
      %v1048 = vld [vmem:[%s5 + $0x48] sm:$0xff]
      %v1049 = vld [vmem:[%s5 + $0x50] sm:$0xff]
      %v1050 = vld [vmem:[%s5 + $0x58] sm:$0xff]
      %v1051 = vld [vmem:[%s5 + $0x60] sm:$0xff]
      %v1052 = vld [vmem:[%s5 + $0x68] sm:$0xff]
      %v1053 = vld [vmem:[%s5 + $0x70] sm:$0xff]
      %v1054 = vld [vmem:[%s5 + $0x78] sm:$0xff]
      %v1055 = vld [vmem:[%s5 + $0x80] sm:$0xff]
      %v1056 = vld [vmem:[%s5 + $0x88] sm:$0xff]
      %v1057 = vld [vmem:[%s5 + $0x90] sm:$0xff]
      %v1058 = vld [vmem:[%s5 + $0x98] sm:$0xff]
      %v1059 = vld [vmem:[%s5 + $0xa0] sm:$0xff]
      %v1060 = vld [vmem:[%s5 + $0xa8] sm:$0xff]
      %v1061 = vld [vmem:[%s5 + $0xb0] sm:$0xff]
      %v1062 = vld [vmem:[%s5 + $0xb8] sm:$0xff]
      %v1063 = vld [vmem:[%s5 + $0xc0] sm:$0xff]
      %v1064 = vld [vmem:[%s5 + $0xc8] sm:$0xff]
      %v1065 = vld [vmem:[%s5 + $0xd0] sm:$0xff]
      %v1066 = vld [vmem:[%s5 + $0xd8] sm:$0xff]
      %v1067 = vld [vmem:[%s5 + $0xe0] sm:$0xff]
      %v1068 = vld [vmem:[%s5 + $0xe8] sm:$0xff]
      %v1069 = vld [vmem:[%s5 + $0xf0] sm:$0xff]
      %v1070 = vld [vmem:[%s5 + $0xf8] sm:$0xff]
      %v1071 = vld [vmem:[%s5 + $0x100] sm:$0xff]
      %v1072 = vld [vmem:[%s5 + $0x108] sm:$0xff]
      %v1073 = vld [vmem:[%s5 + $0x110] sm:$0xff]
      %v1074 = vld [vmem:[%s5 + $0x118] sm:$0xff]
      %v1075 = vld [vmem:[%s5 + $0x120] sm:$0xff]
      %v1076 = vld [vmem:[%s5 + $0x128] sm:$0xff]
      %v1077 = vld [vmem:[%s5 + $0x130] sm:$0xff]
      %v1078 = vld [vmem:[%s5 + $0x138] sm:$0xff]
      %v1079 = vld [vmem:[%s5 + $0x140] sm:$0xff]
      %v1080 = vld [vmem:[%s5 + $0x148] sm:$0xff]
      %v1081 = vld [vmem:[%s5 + $0x150] sm:$0xff]
      %v1082 = vld [vmem:[%s5 + $0x158] sm:$0xff]
      %v1083 = vld [vmem:[%s5 + $0x160] sm:$0xff]
      %v1084 = vld [vmem:[%s5 + $0x168] sm:$0xff]
      %v1085 = vld [vmem:[%s5 + $0x170] sm:$0xff]
      %v1086 = vld [vmem:[%s5 + $0x178] sm:$0xff]
      %v1087 = vld [vmem:[%s5 + $0x180] sm:$0xff]
      %v1088 = vld [vmem:[%s5 + $0x188] sm:$0xff]
      %v1089 = vld [vmem:[%s5 + $0x190] sm:$0xff]
      %v1090 = vld [vmem:[%s5 + $0x198] sm:$0xff]
      %v1091 = vld [vmem:[%s5 + $0x1a0] sm:$0xff]
      %v1092 = vld [vmem:[%s5 + $0x1a8] sm:$0xff]
      %v1093 = vld [vmem:[%s5 + $0x1b0] sm:$0xff]
      %v1094 = vld [vmem:[%s5 + $0x1b8] sm:$0xff]
      %v1095 = vld [vmem:[%s5 + $0x1c0] sm:$0xff]
      %v1096 = vld [vmem:[%s5 + $0x1c8] sm:$0xff]
      %v1097 = vld [vmem:[%s5 + $0x1d0] sm:$0xff]
      %v1098 = vld [vmem:[%s5 + $0x1d8] sm:$0xff]
      %v1099 = vld [vmem:[%s5 + $0x1e0] sm:$0xff]
      %v1100 = vld [vmem:[%s5 + $0x1e8] sm:$0xff]
      %v1101 = vld [vmem:[%s5 + $0x1f0] sm:$0xff]
      %v1102 = vld [vmem:[%s5 + $0x1f8] sm:$0xff]
      %v1103 = vld [vmem:[%s5 + $0x200] sm:$0xff]
      %v1104 = vld [vmem:[%s5 + $0x208] sm:$0xff]
      %v1105 = vld [vmem:[%s5 + $0x210] sm:$0xff]
      %v1106 = vld [vmem:[%s5 + $0x218] sm:$0xff]
      %v1107 = vld [vmem:[%s5 + $0x220] sm:$0xff]
      %v1108 = vld [vmem:[%s5 + $0x228] sm:$0xff]
      %v1109 = vld [vmem:[%s5 + $0x230] sm:$0xff]
      %v1110 = vld [vmem:[%s5 + $0x238] sm:$0xff]
      %v1111 = vld [vmem:[%s5 + $0x240] sm:$0xff]
      %v1112 = vld [vmem:[%s5 + $0x248] sm:$0xff]
      %v1113 = vld [vmem:[%s5 + $0x250] sm:$0xff]
      %v1114 = vld [vmem:[%s5 + $0x258] sm:$0xff]
      %v1115 = vld [vmem:[%s5 + $0x260] sm:$0xff]
      %v1116 = vld [vmem:[%s5 + $0x268] sm:$0xff]
      %v1117 = vld [vmem:[%s5 + $0x270] sm:$0xff]
      %v1118 = vld [vmem:[%s5 + $0x278] sm:$0xff]
      %v1119 = vld [vmem:[%s5 + $0x280] sm:$0xff]
      %v1120 = vld [vmem:[%s5 + $0x288] sm:$0xff]
      %v1121 = vld [vmem:[%s5 + $0x290] sm:$0xff]
      %v1122 = vld [vmem:[%s5 + $0x298] sm:$0xff]
      %v1123 = vld [vmem:[%s5 + $0x2a0] sm:$0xff]
      %v1124 = vld [vmem:[%s5 + $0x2a8] sm:$0xff]
      %v1125 = vld [vmem:[%s5 + $0x2b0] sm:$0xff]
      %v1126 = vld [vmem:[%s5 + $0x2b8] sm:$0xff]
      %v1127 = vld [vmem:[%s5 + $0x2c0] sm:$0xff]
      %v1128 = vld [vmem:[%s5 + $0x2c8] sm:$0xff]
      %v1129 = vld [vmem:[%s5 + $0x2d0] sm:$0xff]
      %v1130 = vld [vmem:[%s5 + $0x2d8] sm:$0xff]
      %v1131 = vld [vmem:[%s5 + $0x2e0] sm:$0xff]
      %v1132 = vld [vmem:[%s5 + $0x2e8] sm:$0xff]
      %v1133 = vld [vmem:[%s5 + $0x2f0] sm:$0xff]
      %v1134 = vld [vmem:[%s5 + $0x2f8] sm:$0xff]
      %v1135 = vpack.c.bf16 %v1027, %v1021
      %v1136 = vpack.c.bf16 %v1028, %v1022
      %v1137 = vpack.c.bf16 %v1029, %v1023
      %v1138 = vpack.c.bf16 %v1030, %v1024
      %v1139 = vpack.c.bf16 %v1031, %v1025
      %v1140 = vpack.c.bf16 %v1032, %v1026
      %v1141 = vpack.c.bf16 %v1033, %v1033
      %v1142 = vpack.c.bf16 %v1034, %v1034
      %v1143 = vpack.c.bf16 %v1035, %v1035
      %v1144 = vpack.c.bf16 %v1036, %v1036
      %v1145 = vpack.c.bf16 %v1037, %v1037
      %v1146 = vpack.c.bf16 %v1038, %v1038
      %v1147 = vpack.c.bf16 %v1040, %v1039
      %v1148 = vpack.c.bf16 %v1042, %v1041
      %v1149 = vpack.c.bf16 %v1044, %v1043
      %v1150 = vpack.c.bf16 %v1046, %v1045
      %v1151 = vpack.c.bf16 %v1048, %v1047
      %v1152 = vpack.c.bf16 %v1050, %v1049
      %v1153 = vpack.c.bf16 %v1052, %v1051
      %v1154 = vpack.c.bf16 %v1054, %v1053
      %v1155 = vpack.c.bf16 %v1056, %v1055
      %v1156 = vpack.c.bf16 %v1058, %v1057
      %v1157 = vpack.c.bf16 %v1060, %v1059
      %v1158 = vpack.c.bf16 %v1062, %v1061
      %v1159 = vpack.c.bf16 %v1064, %v1063
      %v1160 = vpack.c.bf16 %v1066, %v1065
      %v1161 = vpack.c.bf16 %v1068, %v1067
      %v1162 = vpack.c.bf16 %v1070, %v1069
      %v1163 = vpack.c.bf16 %v1072, %v1071
      %v1164 = vpack.c.bf16 %v1074, %v1073
      %v1165 = vpack.c.bf16 %v1076, %v1075
      %v1166 = vpack.c.bf16 %v1078, %v1077
      %v1167 = vpack.c.bf16 %v1080, %v1079
      %v1168 = vpack.c.bf16 %v1082, %v1081
      %v1169 = vpack.c.bf16 %v1084, %v1083
      %v1170 = vpack.c.bf16 %v1086, %v1085
      %v1171 = vpack.c.bf16 %v1088, %v1087
      %v1172 = vpack.c.bf16 %v1090, %v1089
      %v1173 = vpack.c.bf16 %v1092, %v1091
      %v1174 = vpack.c.bf16 %v1094, %v1093
      %v1175 = vpack.c.bf16 %v1096, %v1095
      %v1176 = vpack.c.bf16 %v1098, %v1097
      %v1177 = vpack.c.bf16 %v1100, %v1099
      %v1178 = vpack.c.bf16 %v1102, %v1101
      %v1179 = vpack.c.bf16 %v1104, %v1103
      %v1180 = vpack.c.bf16 %v1106, %v1105
      %v1181 = vpack.c.bf16 %v1108, %v1107
      %v1182 = vpack.c.bf16 %v1110, %v1109
      %v1183 = vpack.c.bf16 %v1112, %v1111
      %v1184 = vpack.c.bf16 %v1114, %v1113
      %v1185 = vpack.c.bf16 %v1116, %v1115
      %v1186 = vpack.c.bf16 %v1118, %v1117
      %v1187 = vpack.c.bf16 %v1120, %v1119
      %v1188 = vpack.c.bf16 %v1122, %v1121
      %v1189 = vpack.c.bf16 %v1124, %v1123
      %v1190 = vpack.c.bf16 %v1126, %v1125
      %v1191 = vpack.c.bf16 %v1128, %v1127
      %v1192 = vpack.c.bf16 %v1130, %v1129
      %v1193 = vpack.c.bf16 %v1132, %v1131
      %v1194 = vpack.c.bf16 %v1134, %v1133
      %v1195 = vld [vmem:[%s7] sm:$0x1]
      %v1197 = vperm.slane %v1195, 0
      %1199 = vmatpush.bf16.msra.mxu0 %v1154
      %1200 = vmatpush.bf16.msra.mxu0 %v1153
      %1201 = vmatpush.bf16.msra.mxu0 %v1152
      %1202 = vmatpush.bf16.msra.mxu0 %v1151
      %1203 = vmatpush.bf16.msra.mxu0 %v1150
      %1204 = vmatpush.bf16.msra.mxu0 %v1149
      %1205 = vmatpush.bf16.msra.mxu0 %v1148
      %1206 = vmatpush.bf16.msra.mxu0 %v1147
      %1207 = vmatmul.bf16.gmra.mxu0 %v1135
      %v1208 = vpop.f32.mrf.mxu0
      %v1209 = vadd.f32 %v1197, %v1208
      %v1210 = vpop.f32.mrf.mxu0
      %v1211 = vadd.f32 %v1197, %v1210
      %1212 = vmatmul.bf16.gmra.mxu0 %v1141
      %v1213 = vpop.f32.mrf.mxu0
      %v1214 = vadd.f32 %v1197, %v1213
      %v1215 = vpop.f32.mrf.mxu0
      %1216 = vdwg.mxu0
      %1217 = vmatpush.bf16.msra.mxu0 %v1162
      %1218 = vmatpush.bf16.msra.mxu0 %v1161
      %1219 = vmatpush.bf16.msra.mxu0 %v1160
      %1220 = vmatpush.bf16.msra.mxu0 %v1159
      %1221 = vmatpush.bf16.msra.mxu0 %v1158
      %1222 = vmatpush.bf16.msra.mxu0 %v1157
      %1223 = vmatpush.bf16.msra.mxu0 %v1156
      %1224 = vmatpush.bf16.msra.mxu0 %v1155
      %1225 = vmatmul.bf16.gmra.mxu0 %v1136
      %v1226 = vpop.f32.mrf.mxu0
      %v1227 = vadd.f32 %v1209, %v1226
      %v1228 = vpop.f32.mrf.mxu0
      %v1229 = vadd.f32 %v1211, %v1228
      %1230 = vmatmul.bf16.gmra.mxu0 %v1142
      %v1231 = vpop.f32.mrf.mxu0
      %v1232 = vadd.f32 %v1214, %v1231
      %v1233 = vpop.f32.mrf.mxu0
      %1234 = vdwg.mxu0
      %1235 = vmatpush.bf16.msra.mxu0 %v1170
      %1236 = vmatpush.bf16.msra.mxu0 %v1169
      %1237 = vmatpush.bf16.msra.mxu0 %v1168
      %1238 = vmatpush.bf16.msra.mxu0 %v1167
      %1239 = vmatpush.bf16.msra.mxu0 %v1166
      %1240 = vmatpush.bf16.msra.mxu0 %v1165
      %1241 = vmatpush.bf16.msra.mxu0 %v1164
      %1242 = vmatpush.bf16.msra.mxu0 %v1163
      %1243 = vmatmul.bf16.gmra.mxu0 %v1137
      %v1244 = vpop.f32.mrf.mxu0
      %v1245 = vadd.f32 %v1227, %v1244
      %v1246 = vpop.f32.mrf.mxu0
      %v1247 = vadd.f32 %v1229, %v1246
      %1248 = vmatmul.bf16.gmra.mxu0 %v1143
      %v1249 = vpop.f32.mrf.mxu0
      %v1250 = vadd.f32 %v1232, %v1249
      %v1251 = vpop.f32.mrf.mxu0
      %1252 = vdwg.mxu0
      %1253 = vmatpush.bf16.msra.mxu0 %v1178
      %1254 = vmatpush.bf16.msra.mxu0 %v1177
      %1255 = vmatpush.bf16.msra.mxu0 %v1176
      %1256 = vmatpush.bf16.msra.mxu0 %v1175
      %1257 = vmatpush.bf16.msra.mxu0 %v1174
      %1258 = vmatpush.bf16.msra.mxu0 %v1173
      %1259 = vmatpush.bf16.msra.mxu0 %v1172
      %1260 = vmatpush.bf16.msra.mxu0 %v1171
      %1261 = vmatmul.bf16.gmra.mxu0 %v1138
      %v1262 = vpop.f32.mrf.mxu0
      %v1263 = vadd.f32 %v1245, %v1262
      %v1264 = vpop.f32.mrf.mxu0
      %v1265 = vadd.f32 %v1247, %v1264
      %1266 = vmatmul.bf16.gmra.mxu0 %v1144
      %v1267 = vpop.f32.mrf.mxu0
      %v1268 = vadd.f32 %v1250, %v1267
      %v1269 = vpop.f32.mrf.mxu0
      %1270 = vdwg.mxu0
      %1271 = vmatpush.bf16.msra.mxu0 %v1186
      %1272 = vmatpush.bf16.msra.mxu0 %v1185
      %1273 = vmatpush.bf16.msra.mxu0 %v1184
      %1274 = vmatpush.bf16.msra.mxu0 %v1183
      %1275 = vmatpush.bf16.msra.mxu0 %v1182
      %1276 = vmatpush.bf16.msra.mxu0 %v1181
      %1277 = vmatpush.bf16.msra.mxu0 %v1180
      %1278 = vmatpush.bf16.msra.mxu0 %v1179
      %1279 = vmatmul.bf16.gmra.mxu0 %v1139
      %v1280 = vpop.f32.mrf.mxu0
      %v1281 = vadd.f32 %v1263, %v1280
      %v1282 = vpop.f32.mrf.mxu0
      %v1283 = vadd.f32 %v1265, %v1282
      %1284 = vmatmul.bf16.gmra.mxu0 %v1145
      %v1285 = vpop.f32.mrf.mxu0
      %v1286 = vadd.f32 %v1268, %v1285
      %v1287 = vpop.f32.mrf.mxu0
      %1288 = vdwg.mxu0
      %1289 = vmatpush.bf16.msra.mxu0 %v1194
      %1290 = vmatpush.bf16.msra.mxu0 %v1193
      %1291 = vmatpush.bf16.msra.mxu0 %v1192
      %1292 = vmatpush.bf16.msra.mxu0 %v1191
      %1293 = vmatpush.bf16.msra.mxu0 %v1190
      %1294 = vmatpush.bf16.msra.mxu0 %v1189
      %1295 = vmatpush.bf16.msra.mxu0 %v1188
      %1296 = vmatpush.bf16.msra.mxu0 %v1187
      %1297 = vmatmul.bf16.gmra.mxu0 %v1140
      %v1298 = vpop.f32.mrf.mxu0
      %v1299 = vadd.f32 %v1281, %v1298
      %v1300 = vpop.f32.mrf.mxu0
      %v1301 = vadd.f32 %v1283, %v1300
      %1302 = vmatmul.bf16.gmra.mxu0 %v1146
      %v1303 = vpop.f32.mrf.mxu0
      %v1304 = vadd.f32 %v1286, %v1303
      %v1305 = vpop.f32.mrf.mxu0
      %1306 = vdwg.mxu0
      %v1307 = vld [vmem:[%s3] sm:$0xff]
      %v1308 = vld [vmem:[%s3 + $0x8] sm:$0xff]
      %v1309 = vld [vmem:[%s3 + $0x10] sm:$0xf]
      %v1310 = vadd.f32 %v1299, %v1307
      %v1311 = vadd.f32 %v1301, %v1308
      %v1312 = vadd.f32 %v1304, %v1309
      %v1313 = vld [vmem:[%s9] sm:$0x1]
      %v1314 = vld [vmem:[%s11] sm:$0x1]
      %vm1315 = vcmask 261120
      %v1316 = vsel %vm1315, %v1310, 0.0
      %1317 = vadd.xlane.f32.xlu0 %v1316
      %v1318 = vpop.xlane.xlu0 %1317
      %v1319 = vsel %vm1315, %v1311, 0.0
      %1320 = vadd.xlane.f32.xlu0 %v1319
      %v1321 = vpop.xlane.xlu0 %1320
      %vm1322 = vcmask 257024
      %v1323 = vsel %vm1322, %v1312, 0.0
      %1324 = vadd.xlane.f32.xlu0 %v1323
      %v1325 = vpop.xlane.xlu0 %1324
      %v1326 = vrcp.pop 32.0
      %v1327 = vmul.f32 32.0, %v1326
      %v1328 = vsub.f32 1.0, %v1327
      %v1329 = vmul.f32 %v1326, %v1328
      %v1330 = vadd.f32 %v1326, %v1329
      %vm1331 = vweird.f32 %v1326
      %v1332 = vsel %vm1331, %v1326, %v1330
      %v1333 = vmul.f32 %v1318, %v1332
      %v1334 = vmul.f32 %v1321, %v1332
      %v1335 = vmul.f32 %v1325, %v1332
      %v1336 = vsub.f32 %v1310, %v1333
      %v1337 = vsub.f32 %v1311, %v1334
      %v1338 = vsub.f32 %v1312, %v1335
      %v1339 = vmul.f32 %v1336, %v1336
      %v1340 = vmul.f32 %v1337, %v1337
      %v1341 = vmul.f32 %v1338, %v1338
      %v1342 = vsel %vm1315, %v1339, 0.0
      %1343 = vadd.xlane.f32.xlu0 %v1342
      %v1344 = vpop.xlane.xlu0 %1343
      %v1345 = vsel %vm1315, %v1340, 0.0
      %1346 = vadd.xlane.f32.xlu0 %v1345
      %v1347 = vpop.xlane.xlu0 %1346
      %v1348 = vsel %vm1322, %v1341, 0.0
      %1349 = vadd.xlane.f32.xlu0 %v1348
      %v1350 = vpop.xlane.xlu0 %1349
      %v1351 = vmul.f32 %v1344, %v1332
      %v1352 = vmul.f32 %v1347, %v1332
      %v1353 = vmul.f32 %v1350, %v1332
      %v1354 = vadd.f32 %v1351, 1e-05
      %v1355 = vadd.f32 %v1352, 1e-05
      %v1356 = vadd.f32 %v1353, 1e-05
      %v1357 = vrsqrt.pop %v1354
      %v1358 = vmul.f32 %v1357, %v1354
      %v1359 = vmul.f32 %v1358, %v1357
      %v1360 = vmul.f32 0.5, %v1359
      %v1361 = vsub.f32 1.5, %v1360
      %v1362 = vmul.f32 %v1357, %v1361
      %vm1363 = vweird.f32 %v1354
      %vm1364 = vweird.f32 %v1357
      %vm1365 = vmor %vm1363, %vm1364
      %v1366 = vsel %vm1365, %v1357, %v1362
      %v1367 = vrsqrt.pop %v1355
      %v1368 = vmul.f32 %v1367, %v1355
      %v1369 = vmul.f32 %v1368, %v1367
      %v1370 = vmul.f32 0.5, %v1369
      %v1371 = vsub.f32 1.5, %v1370
      %v1372 = vmul.f32 %v1367, %v1371
      %vm1373 = vweird.f32 %v1355
      %vm1374 = vweird.f32 %v1367
      %vm1375 = vmor %vm1373, %vm1374
      %v1376 = vsel %vm1375, %v1367, %v1372
      %v1377 = vrsqrt.pop %v1356
      %v1378 = vmul.f32 %v1377, %v1356
      %v1379 = vmul.f32 %v1378, %v1377
      %v1380 = vmul.f32 0.5, %v1379
      %v1381 = vsub.f32 1.5, %v1380
      %v1382 = vmul.f32 %v1377, %v1381
      %vm1383 = vweird.f32 %v1356
      %vm1384 = vweird.f32 %v1377
      %vm1385 = vmor %vm1383, %vm1384
      %v1386 = vsel %vm1385, %v1377, %v1382
      %v1387 = vmul.f32 %v1336, %v1366
      %v1388 = vmul.f32 %v1337, %v1376
      %v1389 = vmul.f32 %v1338, %v1386
      %v1391 = vperm.slane %v1313, 0
      %v1393 = vmul.f32 %v1387, %v1391
      %v1394 = vmul.f32 %v1388, %v1391
      %v1395 = vmul.f32 %v1389, %v1391
      %v1397 = vperm.slane %v1314, 0
      %v1399 = vadd.f32 %v1393, %v1397
      %v1400 = vadd.f32 %v1394, %v1397
      %v1401 = vadd.f32 %v1395, %v1397
      %v1402 = vld [vmem:[%s13] sm:$0xff]
      %v1403 = vld [vmem:[%s13 + $0x8] sm:$0xff]
      %v1404 = vld [vmem:[%s13 + $0x10] sm:$0xff]
      %v1405 = vld [vmem:[%s13 + $0x18] sm:$0xff]
      %v1406 = vpack.c.bf16 %v1400, %v1399
      %v1407 = vpack.c.bf16 %v1401, %v1401
      %v1408 = vpack.c.bf16 %v1403, %v1402
      %v1409 = vpack.c.bf16 %v1405, %v1404
      %v1410 = vld [vmem:[%s15] sm:$0x1]
      %v1412 = vperm.slane %v1410, 0
      %v1415 = vsel %vm1315, %v1406, 0
      %v1418 = vsel %vm1315, %v1407, 0
      %1420 = vmatpush.bf16.msra.mxu0 0
      %1421 = vmatpush.bf16.msra.mxu0 0
      %1422 = vmatpush.bf16.msra.mxu0 0
      %1423 = vmatpush.bf16.msra.mxu0 0
      %1424 = vmatpush.bf16.msra.mxu0 0
      %1425 = vmatpush.bf16.msra.mxu0 0
      %1426 = vmatpush.bf16.msra.mxu0 %v1409
      %1427 = vmatpush.bf16.msra.mxu0 %v1408
      %1428 = vmatmul.bf16.gmra.mxu0 %v1415
      %v1429 = vpop.f32.mrf.mxu0
      %v1430 = vadd.f32 %v1412, %v1429
      %v1431 = vpop.f32.mrf.mxu0
      %v1432 = vadd.f32 %v1412, %v1431
      %1433 = vmatmul.bf16.gmra.mxu0 %v1418
      %v1434 = vpop.f32.mrf.mxu0
      %v1435 = vadd.f32 %v1412, %v1434
      %v1436 = vpop.f32.mrf.mxu0
      %1437 = vdwg.mxu0
      %v1438 = vpack.c.bf16 %v1432, %v1430
      %v1439 = vpack.c.bf16 %v1435, %v1435
      %1442 = vrot.lane.b32.xlu0 %v1438, 96
      %v1443 = vpop.permute.xlu0 %1442
      %1444 = vrot.lane.b32.xlu0 %v1439, 96
      %v1445 = vpop.permute.xlu0 %1444
      %vm1446 = vcmask 64512
      %v1448 = vsel %vm1446, %v1438, 0
      %v1451 = vsel %vm1446, %v1439, 0
      %v1454 = vsel %vm1446, %v1443, 0
      %v1457 = vsel %vm1446, %v1445, 0
      %1459 = vmatpush.bf16.xpose.msra.mxu0 0
      %1460 = vmatpush.bf16.xpose.msra.mxu0 0
      %1461 = vmatpush.bf16.xpose.msra.mxu0 0
      %1462 = vmatpush.bf16.xpose.msra.mxu0 0
      %1463 = vmatpush.bf16.xpose.msra.mxu0 0
      %1464 = vmatpush.bf16.xpose.msra.mxu0 0
      %1465 = vmatpush.bf16.xpose.msra.mxu0 %v1457
      %1466 = vmatpush.bf16.xpose.msra.mxu0 %v1454
      %1467 = vmatmul.bf16.gmra.mxu0 %v1448
      %v1468 = vpop.f32.mrf.mxu0
      %v1469 = vadd.f32 0.0, %v1468
      %v1470 = vpop.f32.mrf.mxu0
      %v1471 = vadd.f32 0.0, %v1470
      %1472 = vmatmul.bf16.gmra.mxu0 %v1451
      %v1473 = vpop.f32.mrf.mxu0
      %v1474 = vadd.f32 0.0, %v1473
      %v1475 = vpop.f32.mrf.mxu0
      %1476 = vdwg.mxu0
      %v1477 = vmul.f32 %v1469, 0.35355338
      %v1478 = vmul.f32 %v1471, 0.35355338
      %v1479 = vmul.f32 %v1474, 0.35355338
      %vm1480 = vcmask 162816
      %v1481 = vsel %vm1480, %v1477, -inf
      %1482 = vmax.xlane.f32.xlu0 %v1481
      %v1483 = vpop.xlane.xlu0 %1482
      %v1484 = vsel %vm1480, %v1478, -inf
      %1485 = vmax.xlane.f32.xlu0 %v1484
      %v1486 = vpop.xlane.xlu0 %1485
      %vm1487 = vcmask 158720
      %v1488 = vsel %vm1487, %v1479, -inf
      %1489 = vmax.xlane.f32.xlu0 %v1488
      %v1490 = vpop.xlane.xlu0 %1489
      %v1491 = vsub.f32 %v1477, %v1483
      %v1492 = vsub.f32 %v1478, %v1486
      %v1493 = vsub.f32 %v1479, %v1490
      %v1494 = vmul.f32 %v1491, 1.442695
      %v1495 = vpow.pop %v1494
      %v1496 = vmul.f32 %v1492, 1.442695
      %v1497 = vpow.pop %v1496
      %v1498 = vmul.f32 %v1493, 1.442695
      %v1499 = vpow.pop %v1498
      %v1500 = vsel %vm1480, %v1495, 0.0
      %1501 = vadd.xlane.f32.xlu0 %v1500
      %v1502 = vpop.xlane.xlu0 %1501
      %v1503 = vsel %vm1480, %v1497, 0.0
      %1504 = vadd.xlane.f32.xlu0 %v1503
      %v1505 = vpop.xlane.xlu0 %1504
      %v1506 = vsel %vm1487, %v1499, 0.0
      %1507 = vadd.xlane.f32.xlu0 %v1506
      %v1508 = vpop.xlane.xlu0 %1507
      %v1509 = vrcp.pop %v1502
      %v1510 = vrcp.pop %v1505
      %v1511 = vrcp.pop %v1508
      %v1512 = vmul.f32 %v1495, %v1509
      %v1513 = vmul.f32 %v1497, %v1510
      %v1514 = vmul.f32 %v1499, %v1511
      %v1515 = vpack.c.bf16 %v1513, %v1512
      %v1516 = vpack.c.bf16 %v1514, %v1514
      %1517 = vrot.lane.b32.xlu0 %v1438, 64
      %v1518 = vpop.permute.xlu0 %1517
      %1519 = vrot.lane.b32.xlu0 %v1439, 64
      %v1520 = vpop.permute.xlu0 %1519
      %v1523 = vsel %vm1480, %v1515, 0
      %v1526 = vsel %vm1480, %v1516, 0
      %vm1528 = vcmask 1041408
      %v1530 = vsel %vm1528, %v1520, 0
      %1532 = vmatpush.bf16.msra.mxu0 0
      %1533 = vmatpush.bf16.msra.mxu0 0
      %1534 = vmatpush.bf16.msra.mxu0 0
      %1535 = vmatpush.bf16.msra.mxu0 0
      %1536 = vmatpush.bf16.msra.mxu0 0
      %1537 = vmatpush.bf16.msra.mxu0 0
      %1538 = vmatpush.bf16.msra.mxu0 %v1530
      %1539 = vmatpush.bf16.msra.mxu0 %v1518
      %1540 = vmatmul.bf16.gmra.mxu0 %v1523
      %v1541 = vpop.f32.mrf.mxu0
      %v1542 = vadd.f32 0.0, %v1541
      %v1543 = vpop.f32.mrf.mxu0
      %v1544 = vadd.f32 0.0, %v1543
      %1545 = vmatmul.bf16.gmra.mxu0 %v1526
      %v1546 = vpop.f32.mrf.mxu0
      %v1547 = vadd.f32 0.0, %v1546
      %v1548 = vpop.f32.mrf.mxu0
      %1549 = vdwg.mxu0
      %1550 = vrot.lane.b32.xlu0 %v1438, 120
      %v1551 = vpop.permute.xlu0 %1550
      %1552 = vrot.lane.b32.xlu0 %v1439, 120
      %v1553 = vpop.permute.xlu0 %1552
      %1554 = vrot.lane.b32.xlu0 %v1438, 88
      %v1555 = vpop.permute.xlu0 %1554
      %1556 = vrot.lane.b32.xlu0 %v1439, 88
      %v1557 = vpop.permute.xlu0 %1556
      %v1559 = vsel %vm1446, %v1551, 0
      %v1562 = vsel %vm1446, %v1553, 0
      %v1565 = vsel %vm1446, %v1555, 0
      %v1568 = vsel %vm1446, %v1557, 0
      %1570 = vmatpush.bf16.xpose.msra.mxu0 0
      %1571 = vmatpush.bf16.xpose.msra.mxu0 0
      %1572 = vmatpush.bf16.xpose.msra.mxu0 0
      %1573 = vmatpush.bf16.xpose.msra.mxu0 0
      %1574 = vmatpush.bf16.xpose.msra.mxu0 0
      %1575 = vmatpush.bf16.xpose.msra.mxu0 0
      %1576 = vmatpush.bf16.xpose.msra.mxu0 %v1568
      %1577 = vmatpush.bf16.xpose.msra.mxu0 %v1565
      %1578 = vmatmul.bf16.gmra.mxu0 %v1559
      %v1579 = vpop.f32.mrf.mxu0
      %v1580 = vadd.f32 0.0, %v1579
      %v1581 = vpop.f32.mrf.mxu0
      %v1582 = vadd.f32 0.0, %v1581
      %1583 = vmatmul.bf16.gmra.mxu0 %v1562
      %v1584 = vpop.f32.mrf.mxu0
      %v1585 = vadd.f32 0.0, %v1584
      %v1586 = vpop.f32.mrf.mxu0
      %1587 = vdwg.mxu0
      %v1588 = vmul.f32 %v1580, 0.35355338
      %v1589 = vmul.f32 %v1582, 0.35355338
      %v1590 = vmul.f32 %v1585, 0.35355338
      %v1591 = vsel %vm1480, %v1588, -inf
      %1592 = vmax.xlane.f32.xlu0 %v1591
      %v1593 = vpop.xlane.xlu0 %1592
      %v1594 = vsel %vm1480, %v1589, -inf
      %1595 = vmax.xlane.f32.xlu0 %v1594
      %v1596 = vpop.xlane.xlu0 %1595
      %v1597 = vsel %vm1487, %v1590, -inf
      %1598 = vmax.xlane.f32.xlu0 %v1597
      %v1599 = vpop.xlane.xlu0 %1598
      %v1600 = vsub.f32 %v1588, %v1593
      %v1601 = vsub.f32 %v1589, %v1596
      %v1602 = vsub.f32 %v1590, %v1599
      %v1603 = vmul.f32 %v1600, 1.442695
      %v1604 = vpow.pop %v1603
      %v1605 = vmul.f32 %v1601, 1.442695
      %v1606 = vpow.pop %v1605
      %v1607 = vmul.f32 %v1602, 1.442695
      %v1608 = vpow.pop %v1607
      %v1609 = vsel %vm1480, %v1604, 0.0
      %1610 = vadd.xlane.f32.xlu0 %v1609
      %v1611 = vpop.xlane.xlu0 %1610
      %v1612 = vsel %vm1480, %v1606, 0.0
      %1613 = vadd.xlane.f32.xlu0 %v1612
      %v1614 = vpop.xlane.xlu0 %1613
      %v1615 = vsel %vm1487, %v1608, 0.0
      %1616 = vadd.xlane.f32.xlu0 %v1615
      %v1617 = vpop.xlane.xlu0 %1616
      %v1618 = vrcp.pop %v1611
      %v1619 = vrcp.pop %v1614
      %v1620 = vrcp.pop %v1617
      %v1621 = vmul.f32 %v1604, %v1618
      %v1622 = vmul.f32 %v1606, %v1619
      %v1623 = vmul.f32 %v1608, %v1620
      %v1624 = vpack.c.bf16 %v1622, %v1621
      %v1625 = vpack.c.bf16 %v1623, %v1623
      %1626 = vrot.lane.b32.xlu0 %v1438, 56
      %v1627 = vpop.permute.xlu0 %1626
      %1628 = vrot.lane.b32.xlu0 %v1439, 56
      %v1629 = vpop.permute.xlu0 %1628
      %v1632 = vsel %vm1480, %v1624, 0
      %v1635 = vsel %vm1480, %v1625, 0
      %v1638 = vsel %vm1528, %v1629, 0
      %1640 = vmatpush.bf16.msra.mxu0 0
      %1641 = vmatpush.bf16.msra.mxu0 0
      %1642 = vmatpush.bf16.msra.mxu0 0
      %1643 = vmatpush.bf16.msra.mxu0 0
      %1644 = vmatpush.bf16.msra.mxu0 0
      %1645 = vmatpush.bf16.msra.mxu0 0
      %1646 = vmatpush.bf16.msra.mxu0 %v1638
      %1647 = vmatpush.bf16.msra.mxu0 %v1627
      %1648 = vmatmul.bf16.gmra.mxu0 %v1632
      %v1649 = vpop.f32.mrf.mxu0
      %v1650 = vadd.f32 0.0, %v1649
      %v1651 = vpop.f32.mrf.mxu0
      %v1652 = vadd.f32 0.0, %v1651
      %1653 = vmatmul.bf16.gmra.mxu0 %v1635
      %v1654 = vpop.f32.mrf.mxu0
      %v1655 = vadd.f32 0.0, %v1654
      %v1656 = vpop.f32.mrf.mxu0
      %1657 = vdwg.mxu0
      %1658 = vrot.lane.b32.xlu0 %v1438, 112
      %v1659 = vpop.permute.xlu0 %1658
      %1660 = vrot.lane.b32.xlu0 %v1439, 112
      %v1661 = vpop.permute.xlu0 %1660
      %1662 = vrot.lane.b32.xlu0 %v1438, 80
      %v1663 = vpop.permute.xlu0 %1662
      %1664 = vrot.lane.b32.xlu0 %v1439, 80
      %v1665 = vpop.permute.xlu0 %1664
      %v1667 = vsel %vm1446, %v1659, 0
      %v1670 = vsel %vm1446, %v1661, 0
      %v1673 = vsel %vm1446, %v1663, 0
      %v1676 = vsel %vm1446, %v1665, 0
      %1678 = vmatpush.bf16.xpose.msra.mxu0 0
      %1679 = vmatpush.bf16.xpose.msra.mxu0 0
      %1680 = vmatpush.bf16.xpose.msra.mxu0 0
      %1681 = vmatpush.bf16.xpose.msra.mxu0 0
      %1682 = vmatpush.bf16.xpose.msra.mxu0 0
      %1683 = vmatpush.bf16.xpose.msra.mxu0 0
      %1684 = vmatpush.bf16.xpose.msra.mxu0 %v1676
      %1685 = vmatpush.bf16.xpose.msra.mxu0 %v1673
      %1686 = vmatmul.bf16.gmra.mxu0 %v1667
      %v1687 = vpop.f32.mrf.mxu0
      %v1688 = vadd.f32 0.0, %v1687
      %v1689 = vpop.f32.mrf.mxu0
      %v1690 = vadd.f32 0.0, %v1689
      %1691 = vmatmul.bf16.gmra.mxu0 %v1670
      %v1692 = vpop.f32.mrf.mxu0
      %v1693 = vadd.f32 0.0, %v1692
      %v1694 = vpop.f32.mrf.mxu0
      %1695 = vdwg.mxu0
      %v1696 = vmul.f32 %v1688, 0.35355338
      %v1697 = vmul.f32 %v1690, 0.35355338
      %v1698 = vmul.f32 %v1693, 0.35355338
      %v1699 = vsel %vm1480, %v1696, -inf
      %1700 = vmax.xlane.f32.xlu0 %v1699
      %v1701 = vpop.xlane.xlu0 %1700
      %v1702 = vsel %vm1480, %v1697, -inf
      %1703 = vmax.xlane.f32.xlu0 %v1702
      %v1704 = vpop.xlane.xlu0 %1703
      %v1705 = vsel %vm1487, %v1698, -inf
      %1706 = vmax.xlane.f32.xlu0 %v1705
      %v1707 = vpop.xlane.xlu0 %1706
      %v1708 = vsub.f32 %v1696, %v1701
      %v1709 = vsub.f32 %v1697, %v1704
      %v1710 = vsub.f32 %v1698, %v1707
      %v1711 = vmul.f32 %v1708, 1.442695
      %v1712 = vpow.pop %v1711
      %v1713 = vmul.f32 %v1709, 1.442695
      %v1714 = vpow.pop %v1713
      %v1715 = vmul.f32 %v1710, 1.442695
      %v1716 = vpow.pop %v1715
      %v1717 = vsel %vm1480, %v1712, 0.0
      %1718 = vadd.xlane.f32.xlu0 %v1717
      %v1719 = vpop.xlane.xlu0 %1718
      %v1720 = vsel %vm1480, %v1714, 0.0
      %1721 = vadd.xlane.f32.xlu0 %v1720
      %v1722 = vpop.xlane.xlu0 %1721
      %v1723 = vsel %vm1487, %v1716, 0.0
      %1724 = vadd.xlane.f32.xlu0 %v1723
      %v1725 = vpop.xlane.xlu0 %1724
      %v1726 = vrcp.pop %v1719
      %v1727 = vrcp.pop %v1722
      %v1728 = vrcp.pop %v1725
      %v1729 = vmul.f32 %v1712, %v1726
      %v1730 = vmul.f32 %v1714, %v1727
      %v1731 = vmul.f32 %v1716, %v1728
      %v1732 = vpack.c.bf16 %v1730, %v1729
      %v1733 = vpack.c.bf16 %v1731, %v1731
      %1734 = vrot.lane.b32.xlu0 %v1438, 48
      %v1735 = vpop.permute.xlu0 %1734
      %1736 = vrot.lane.b32.xlu0 %v1439, 48
      %v1737 = vpop.permute.xlu0 %1736
      %v1740 = vsel %vm1480, %v1732, 0
      %v1743 = vsel %vm1480, %v1733, 0
      %v1746 = vsel %vm1528, %v1737, 0
      %1748 = vmatpush.bf16.msra.mxu0 0
      %1749 = vmatpush.bf16.msra.mxu0 0
      %1750 = vmatpush.bf16.msra.mxu0 0
      %1751 = vmatpush.bf16.msra.mxu0 0
      %1752 = vmatpush.bf16.msra.mxu0 0
      %1753 = vmatpush.bf16.msra.mxu0 0
      %1754 = vmatpush.bf16.msra.mxu0 %v1746
      %1755 = vmatpush.bf16.msra.mxu0 %v1735
      %1756 = vmatmul.bf16.gmra.mxu0 %v1740
      %v1757 = vpop.f32.mrf.mxu0
      %v1758 = vadd.f32 0.0, %v1757
      %v1759 = vpop.f32.mrf.mxu0
      %v1760 = vadd.f32 0.0, %v1759
      %1761 = vmatmul.bf16.gmra.mxu0 %v1743
      %v1762 = vpop.f32.mrf.mxu0
      %v1763 = vadd.f32 0.0, %v1762
      %v1764 = vpop.f32.mrf.mxu0
      %1765 = vdwg.mxu0
      %1766 = vrot.lane.b32.xlu0 %v1438, 104
      %v1767 = vpop.permute.xlu0 %1766
      %1768 = vrot.lane.b32.xlu0 %v1439, 104
      %v1769 = vpop.permute.xlu0 %1768
      %1770 = vrot.lane.b32.xlu0 %v1438, 72
      %v1771 = vpop.permute.xlu0 %1770
      %1772 = vrot.lane.b32.xlu0 %v1439, 72
      %v1773 = vpop.permute.xlu0 %1772
      %v1775 = vsel %vm1446, %v1767, 0
      %v1778 = vsel %vm1446, %v1769, 0
      %v1781 = vsel %vm1446, %v1771, 0
      %v1784 = vsel %vm1446, %v1773, 0
      %1786 = vmatpush.bf16.xpose.msra.mxu0 0
      %1787 = vmatpush.bf16.xpose.msra.mxu0 0
      %1788 = vmatpush.bf16.xpose.msra.mxu0 0
      %1789 = vmatpush.bf16.xpose.msra.mxu0 0
      %1790 = vmatpush.bf16.xpose.msra.mxu0 0
      %1791 = vmatpush.bf16.xpose.msra.mxu0 0
      %1792 = vmatpush.bf16.xpose.msra.mxu0 %v1784
      %1793 = vmatpush.bf16.xpose.msra.mxu0 %v1781
      %1794 = vmatmul.bf16.gmra.mxu0 %v1775
      %v1795 = vpop.f32.mrf.mxu0
      %v1796 = vadd.f32 0.0, %v1795
      %v1797 = vpop.f32.mrf.mxu0
      %v1798 = vadd.f32 0.0, %v1797
      %1799 = vmatmul.bf16.gmra.mxu0 %v1778
      %v1800 = vpop.f32.mrf.mxu0
      %v1801 = vadd.f32 0.0, %v1800
      %v1802 = vpop.f32.mrf.mxu0
      %1803 = vdwg.mxu0
      %v1804 = vmul.f32 %v1796, 0.35355338
      %v1805 = vmul.f32 %v1798, 0.35355338
      %v1806 = vmul.f32 %v1801, 0.35355338
      %v1807 = vsel %vm1480, %v1804, -inf
      %1808 = vmax.xlane.f32.xlu0 %v1807
      %v1809 = vpop.xlane.xlu0 %1808
      %v1810 = vsel %vm1480, %v1805, -inf
      %1811 = vmax.xlane.f32.xlu0 %v1810
      %v1812 = vpop.xlane.xlu0 %1811
      %v1813 = vsel %vm1487, %v1806, -inf
      %1814 = vmax.xlane.f32.xlu0 %v1813
      %v1815 = vpop.xlane.xlu0 %1814
      %v1816 = vsub.f32 %v1804, %v1809
      %v1817 = vsub.f32 %v1805, %v1812
      %v1818 = vsub.f32 %v1806, %v1815
      %v1819 = vmul.f32 %v1816, 1.442695
      %v1820 = vpow.pop %v1819
      %v1821 = vmul.f32 %v1817, 1.442695
      %v1822 = vpow.pop %v1821
      %v1823 = vmul.f32 %v1818, 1.442695
      %v1824 = vpow.pop %v1823
      %v1825 = vsel %vm1480, %v1820, 0.0
      %1826 = vadd.xlane.f32.xlu0 %v1825
      %v1827 = vpop.xlane.xlu0 %1826
      %v1828 = vsel %vm1480, %v1822, 0.0
      %1829 = vadd.xlane.f32.xlu0 %v1828
      %v1830 = vpop.xlane.xlu0 %1829
      %v1831 = vsel %vm1487, %v1824, 0.0
      %1832 = vadd.xlane.f32.xlu0 %v1831
      %v1833 = vpop.xlane.xlu0 %1832
      %v1834 = vrcp.pop %v1827
      %v1835 = vrcp.pop %v1830
      %v1836 = vrcp.pop %v1833
      %v1837 = vmul.f32 %v1820, %v1834
      %v1838 = vmul.f32 %v1822, %v1835
      %v1839 = vmul.f32 %v1824, %v1836
      %v1840 = vpack.c.bf16 %v1838, %v1837
      %v1841 = vpack.c.bf16 %v1839, %v1839
      %1842 = vrot.lane.b32.xlu0 %v1438, 40
      %v1843 = vpop.permute.xlu0 %1842
      %1844 = vrot.lane.b32.xlu0 %v1439, 40
      %v1845 = vpop.permute.xlu0 %1844
      %v1848 = vsel %vm1480, %v1840, 0
      %v1851 = vsel %vm1480, %v1841, 0
      %v1854 = vsel %vm1528, %v1845, 0
      %1856 = vmatpush.bf16.msra.mxu0 0
      %1857 = vmatpush.bf16.msra.mxu0 0
      %1858 = vmatpush.bf16.msra.mxu0 0
      %1859 = vmatpush.bf16.msra.mxu0 0
      %1860 = vmatpush.bf16.msra.mxu0 0
      %1861 = vmatpush.bf16.msra.mxu0 0
      %1862 = vmatpush.bf16.msra.mxu0 %v1854
      %1863 = vmatpush.bf16.msra.mxu0 %v1843
      %1864 = vmatmul.bf16.gmra.mxu0 %v1848
      %v1865 = vpop.f32.mrf.mxu0
      %v1866 = vadd.f32 0.0, %v1865
      %v1867 = vpop.f32.mrf.mxu0
      %v1868 = vadd.f32 0.0, %v1867
      %1869 = vmatmul.bf16.gmra.mxu0 %v1851
      %v1870 = vpop.f32.mrf.mxu0
      %v1871 = vadd.f32 0.0, %v1870
      %v1872 = vpop.f32.mrf.mxu0
      %1873 = vdwg.mxu0
      %1877 = vrot.lane.b32.xlu0 %v1650, 8
      %v1878 = vpop.permute.xlu0 %1877
      %1879 = vrot.lane.b32.xlu0 %v1652, 8
      %v1880 = vpop.permute.xlu0 %1879
      %1881 = vrot.lane.b32.xlu0 %v1655, 8
      %v1882 = vpop.permute.xlu0 %1881
      %1889 = vrot.lane.b32.xlu0 %v1758, 16
      %v1890 = vpop.permute.xlu0 %1889
      %1891 = vrot.lane.b32.xlu0 %v1760, 16
      %v1892 = vpop.permute.xlu0 %1891
      %1893 = vrot.lane.b32.xlu0 %v1763, 16
      %v1894 = vpop.permute.xlu0 %1893
      %1901 = vrot.lane.b32.xlu0 %v1866, 24
      %v1902 = vpop.permute.xlu0 %1901
      %1903 = vrot.lane.b32.xlu0 %v1868, 24
      %v1904 = vpop.permute.xlu0 %1903
      %1905 = vrot.lane.b32.xlu0 %v1871, 24
      %v1906 = vpop.permute.xlu0 %1905
      %v1910 = vsel %vm1446, %v1542, %v1878
      %v1911 = vsel %vm1446, %v1544, %v1880
      %v1912 = vsel %vm1446, %v1547, %v1882
      %vm1913 = vcmask 130048
      %v1914 = vsel %vm1913, %v1910, %v1890
      %v1915 = vsel %vm1913, %v1911, %v1892
      %v1916 = vsel %vm1913, %v1912, %v1894
      %vm1917 = vcmask 195584
      %v1918 = vsel %vm1917, %v1914, %v1902
      %v1919 = vsel %vm1917, %v1915, %v1904
      %v1920 = vsel %vm1917, %v1916, %v1906
      %v1921 = vld [vmem:[%s17] sm:$0xff]
      %v1922 = vld [vmem:[%s17 + $0x8] sm:$0xff]
      %v1923 = vld [vmem:[%s17 + $0x10] sm:$0xff]
      %v1924 = vld [vmem:[%s17 + $0x18] sm:$0xff]
      %v1925 = vpack.c.bf16 %v1919, %v1918
      %v1926 = vpack.c.bf16 %v1920, %v1920
      %v1927 = vpack.c.bf16 %v1922, %v1921
      %v1928 = vpack.c.bf16 %v1924, %v1923
      %v1929 = vld [vmem:[%s19] sm:$0x1]
      %v1931 = vperm.slane %v1929, 0
      %v1934 = vsel %vm1315, %v1925, 0
      %v1937 = vsel %vm1315, %v1926, 0
      %1939 = vmatpush.bf16.msra.mxu0 0
      %1940 = vmatpush.bf16.msra.mxu0 0
      %1941 = vmatpush.bf16.msra.mxu0 0
      %1942 = vmatpush.bf16.msra.mxu0 0
      %1943 = vmatpush.bf16.msra.mxu0 0
      %1944 = vmatpush.bf16.msra.mxu0 0
      %1945 = vmatpush.bf16.msra.mxu0 %v1928
      %1946 = vmatpush.bf16.msra.mxu0 %v1927
      %1947 = vmatmul.bf16.gmra.mxu0 %v1934
      %v1948 = vpop.f32.mrf.mxu0
      %v1949 = vadd.f32 %v1931, %v1948
      %v1950 = vpop.f32.mrf.mxu0
      %v1951 = vadd.f32 %v1931, %v1950
      %1952 = vmatmul.bf16.gmra.mxu0 %v1937
      %v1953 = vpop.f32.mrf.mxu0
      %v1954 = vadd.f32 %v1931, %v1953
      %v1955 = vpop.f32.mrf.mxu0
      %1956 = vdwg.mxu0
      %v1957 = vadd.f32 %v1310, %v1949
      %v1958 = vadd.f32 %v1311, %v1951
      %v1959 = vadd.f32 %v1312, %v1954
      %v1960 = vld [vmem:[%s21] sm:$0x1]
      %v1961 = vld [vmem:[%s23] sm:$0x1]
      %v1962 = vsel %vm1315, %v1957, 0.0
      %1963 = vadd.xlane.f32.xlu0 %v1962
      %v1964 = vpop.xlane.xlu0 %1963
      %v1965 = vsel %vm1315, %v1958, 0.0
      %1966 = vadd.xlane.f32.xlu0 %v1965
      %v1967 = vpop.xlane.xlu0 %1966
      %v1968 = vsel %vm1322, %v1959, 0.0
      %1969 = vadd.xlane.f32.xlu0 %v1968
      %v1970 = vpop.xlane.xlu0 %1969
      %v1971 = vmul.f32 %v1964, %v1332
      %v1972 = vmul.f32 %v1967, %v1332
      %v1973 = vmul.f32 %v1970, %v1332
      %v1974 = vsub.f32 %v1957, %v1971
      %v1975 = vsub.f32 %v1958, %v1972
      %v1976 = vsub.f32 %v1959, %v1973
      %v1977 = vmul.f32 %v1974, %v1974
      %v1978 = vmul.f32 %v1975, %v1975
      %v1979 = vmul.f32 %v1976, %v1976
      %v1980 = vsel %vm1315, %v1977, 0.0
      %1981 = vadd.xlane.f32.xlu0 %v1980
      %v1982 = vpop.xlane.xlu0 %1981
      %v1983 = vsel %vm1315, %v1978, 0.0
      %1984 = vadd.xlane.f32.xlu0 %v1983
      %v1985 = vpop.xlane.xlu0 %1984
      %v1986 = vsel %vm1322, %v1979, 0.0
      %1987 = vadd.xlane.f32.xlu0 %v1986
      %v1988 = vpop.xlane.xlu0 %1987
      %v1989 = vmul.f32 %v1982, %v1332
      %v1990 = vmul.f32 %v1985, %v1332
      %v1991 = vmul.f32 %v1988, %v1332
      %v1992 = vadd.f32 %v1989, 1e-05
      %v1993 = vadd.f32 %v1990, 1e-05
      %v1994 = vadd.f32 %v1991, 1e-05
      %v1995 = vrsqrt.pop %v1992
      %v1996 = vmul.f32 %v1995, %v1992
      %v1997 = vmul.f32 %v1996, %v1995
      %v1998 = vmul.f32 0.5, %v1997
      %v1999 = vsub.f32 1.5, %v1998
      %v2000 = vmul.f32 %v1995, %v1999
      %vm2001 = vweird.f32 %v1992
      %vm2002 = vweird.f32 %v1995
      %vm2003 = vmor %vm2001, %vm2002
      %v2004 = vsel %vm2003, %v1995, %v2000
      %v2005 = vrsqrt.pop %v1993
      %v2006 = vmul.f32 %v2005, %v1993
      %v2007 = vmul.f32 %v2006, %v2005
      %v2008 = vmul.f32 0.5, %v2007
      %v2009 = vsub.f32 1.5, %v2008
      %v2010 = vmul.f32 %v2005, %v2009
      %vm2011 = vweird.f32 %v1993
      %vm2012 = vweird.f32 %v2005
      %vm2013 = vmor %vm2011, %vm2012
      %v2014 = vsel %vm2013, %v2005, %v2010
      %v2015 = vrsqrt.pop %v1994
      %v2016 = vmul.f32 %v2015, %v1994
      %v2017 = vmul.f32 %v2016, %v2015
      %v2018 = vmul.f32 0.5, %v2017
      %v2019 = vsub.f32 1.5, %v2018
      %v2020 = vmul.f32 %v2015, %v2019
      %vm2021 = vweird.f32 %v1994
      %vm2022 = vweird.f32 %v2015
      %vm2023 = vmor %vm2021, %vm2022
      %v2024 = vsel %vm2023, %v2015, %v2020
      %v2025 = vmul.f32 %v1974, %v2004
      %v2026 = vmul.f32 %v1975, %v2014
      %v2027 = vmul.f32 %v1976, %v2024
      %v2029 = vperm.slane %v1960, 0
      %v2031 = vmul.f32 %v2025, %v2029
      %v2032 = vmul.f32 %v2026, %v2029
      %v2033 = vmul.f32 %v2027, %v2029
      %v2035 = vperm.slane %v1961, 0
      %v2037 = vadd.f32 %v2031, %v2035
      %v2038 = vadd.f32 %v2032, %v2035
      %v2039 = vadd.f32 %v2033, %v2035
      %v2040 = vld [vmem:[%s25] sm:$0xff]
      %v2041 = vld [vmem:[%s25 + $0x8] sm:$0xff]
      %v2042 = vld [vmem:[%s25 + $0x10] sm:$0xff]
      %v2043 = vld [vmem:[%s25 + $0x18] sm:$0xff]
      %v2044 = vpack.c.bf16 %v2038, %v2037
      %v2045 = vpack.c.bf16 %v2039, %v2039
      %v2046 = vpack.c.bf16 %v2041, %v2040
      %v2047 = vpack.c.bf16 %v2043, %v2042
      %v2048 = vld [vmem:[%s27] sm:$0x1]
      %v2050 = vperm.slane %v2048, 0
      %v2053 = vsel %vm1315, %v2044, 0
      %v2056 = vsel %vm1315, %v2045, 0
      %2058 = vmatpush.bf16.msra.mxu0 0
      %2059 = vmatpush.bf16.msra.mxu0 0
      %2060 = vmatpush.bf16.msra.mxu0 0
      %2061 = vmatpush.bf16.msra.mxu0 0
      %2062 = vmatpush.bf16.msra.mxu0 0
      %2063 = vmatpush.bf16.msra.mxu0 0
      %2064 = vmatpush.bf16.msra.mxu0 %v2047
      %2065 = vmatpush.bf16.msra.mxu0 %v2046
      %2066 = vmatmul.bf16.gmra.mxu0 %v2053
      %v2067 = vpop.f32.mrf.mxu0
      %v2068 = vadd.f32 %v2050, %v2067
      %v2069 = vpop.f32.mrf.mxu0
      %v2070 = vadd.f32 %v2050, %v2069
      %2071 = vmatmul.bf16.gmra.mxu0 %v2056
      %v2072 = vpop.f32.mrf.mxu0
      %v2073 = vadd.f32 %v2050, %v2072
      %v2074 = vpop.f32.mrf.mxu0
      %2075 = vdwg.mxu0
      %v2076 = vmul.f32 %v2068, %v2068
      %v2077 = vmul.f32 %v2070, %v2070
      %v2078 = vmul.f32 %v2073, %v2073
      %v2079 = vmul.f32 %v2068, %v2076
      %v2080 = vmul.f32 %v2070, %v2077
      %v2081 = vmul.f32 %v2073, %v2078
      %v2082 = vmul.f32 %v2079, 0.044715
      %v2083 = vmul.f32 %v2080, 0.044715
      %v2084 = vmul.f32 %v2081, 0.044715
      %v2085 = vadd.f32 %v2068, %v2082
      %v2086 = vadd.f32 %v2070, %v2083
      %v2087 = vadd.f32 %v2073, %v2084
      %v2088 = vmul.f32 %v2085, 0.7978846
      %v2089 = vmul.f32 %v2086, 0.7978846
      %v2090 = vmul.f32 %v2087, 0.7978846
      %v2091 = vtanh.pop %v2088
      %v2092 = vtanh.pop %v2089
      %v2093 = vtanh.pop %v2090
      %v2094 = vadd.f32 %v2091, 1.0
      %v2095 = vadd.f32 %v2092, 1.0
      %v2096 = vadd.f32 %v2093, 1.0
      %v2097 = vmul.f32 %v2094, 0.5
      %v2098 = vmul.f32 %v2095, 0.5
      %v2099 = vmul.f32 %v2096, 0.5
      %v2100 = vmul.f32 %v2068, %v2097
      %v2101 = vmul.f32 %v2070, %v2098
      %v2102 = vmul.f32 %v2073, %v2099
      %v2103 = vld [vmem:[%s29] sm:$0xff]
      %v2104 = vld [vmem:[%s29 + $0x8] sm:$0xff]
      %v2105 = vld [vmem:[%s29 + $0x10] sm:$0xff]
      %v2106 = vld [vmem:[%s29 + $0x18] sm:$0xff]
      %v2107 = vld [vmem:[%s29 + $0x20] sm:$0xff]
      %v2108 = vld [vmem:[%s29 + $0x28] sm:$0xff]
      %v2109 = vld [vmem:[%s29 + $0x30] sm:$0xff]
      %v2110 = vld [vmem:[%s29 + $0x38] sm:$0xff]
      %v2111 = vpack.c.bf16 %v2101, %v2100
      %v2112 = vpack.c.bf16 %v2102, %v2102
      %v2113 = vpack.c.bf16 %v2104, %v2103
      %v2114 = vpack.c.bf16 %v2106, %v2105
      %v2115 = vpack.c.bf16 %v2108, %v2107
      %v2116 = vpack.c.bf16 %v2110, %v2109
      %v2117 = vld [vmem:[%s31] sm:$0x1]
      %v2119 = vperm.slane %v2117, 0
      %vm2121 = vcmask 523264
      %v2123 = vsel %vm2121, %v2111, 0
      %v2126 = vsel %vm2121, %v2112, 0
      %2128 = vmatpush.bf16.msra.mxu0 0
      %2129 = vmatpush.bf16.msra.mxu0 0
      %2130 = vmatpush.bf16.msra.mxu0 0
      %2131 = vmatpush.bf16.msra.mxu0 0
      %2132 = vmatpush.bf16.msra.mxu0 %v2116
      %2133 = vmatpush.bf16.msra.mxu0 %v2115
      %2134 = vmatpush.bf16.msra.mxu0 %v2114
      %2135 = vmatpush.bf16.msra.mxu0 %v2113
      %2136 = vmatmul.bf16.gmra.mxu0 %v2123
      %v2137 = vpop.f32.mrf.mxu0
      %v2138 = vadd.f32 %v2119, %v2137
      %v2139 = vpop.f32.mrf.mxu0
      %v2140 = vadd.f32 %v2119, %v2139
      %2141 = vmatmul.bf16.gmra.mxu0 %v2126
      %v2142 = vpop.f32.mrf.mxu0
      %v2143 = vadd.f32 %v2119, %v2142
      %v2144 = vpop.f32.mrf.mxu0
      %2145 = vdwg.mxu0
      %v2146 = vadd.f32 %v1957, %v2138
      %v2147 = vadd.f32 %v1958, %v2140
      %v2148 = vadd.f32 %v1959, %v2143
      %s2149 = scalar_lea.vmem %s9, 1
      %v2150 = vld [vmem:[%s2149] sm:$0x1]
      %s2151 = scalar_lea.vmem %s11, 1
      %v2152 = vld [vmem:[%s2151] sm:$0x1]
      %v2153 = vsel %vm1315, %v2146, 0.0
      %2154 = vadd.xlane.f32.xlu0 %v2153
      %v2155 = vpop.xlane.xlu0 %2154
      %v2156 = vsel %vm1315, %v2147, 0.0
      %2157 = vadd.xlane.f32.xlu0 %v2156
      %v2158 = vpop.xlane.xlu0 %2157
      %v2159 = vsel %vm1322, %v2148, 0.0
      %2160 = vadd.xlane.f32.xlu0 %v2159
      %v2161 = vpop.xlane.xlu0 %2160
      %v2162 = vmul.f32 %v2155, %v1332
      %v2163 = vmul.f32 %v2158, %v1332
      %v2164 = vmul.f32 %v2161, %v1332
      %v2165 = vsub.f32 %v2146, %v2162
      %v2166 = vsub.f32 %v2147, %v2163
      %v2167 = vsub.f32 %v2148, %v2164
      %v2168 = vmul.f32 %v2165, %v2165
      %v2169 = vmul.f32 %v2166, %v2166
      %v2170 = vmul.f32 %v2167, %v2167
      %v2171 = vsel %vm1315, %v2168, 0.0
      %2172 = vadd.xlane.f32.xlu0 %v2171
      %v2173 = vpop.xlane.xlu0 %2172
      %v2174 = vsel %vm1315, %v2169, 0.0
      %2175 = vadd.xlane.f32.xlu0 %v2174
      %v2176 = vpop.xlane.xlu0 %2175
      %v2177 = vsel %vm1322, %v2170, 0.0
      %2178 = vadd.xlane.f32.xlu0 %v2177
      %v2179 = vpop.xlane.xlu0 %2178
      %v2180 = vmul.f32 %v2173, %v1332
      %v2181 = vmul.f32 %v2176, %v1332
      %v2182 = vmul.f32 %v2179, %v1332
      %v2183 = vadd.f32 %v2180, 1e-05
      %v2184 = vadd.f32 %v2181, 1e-05
      %v2185 = vadd.f32 %v2182, 1e-05
      %v2186 = vrsqrt.pop %v2183
      %v2187 = vmul.f32 %v2186, %v2183
      %v2188 = vmul.f32 %v2187, %v2186
      %v2189 = vmul.f32 0.5, %v2188
      %v2190 = vsub.f32 1.5, %v2189
      %v2191 = vmul.f32 %v2186, %v2190
      %vm2192 = vweird.f32 %v2183
      %vm2193 = vweird.f32 %v2186
      %vm2194 = vmor %vm2192, %vm2193
      %v2195 = vsel %vm2194, %v2186, %v2191
      %v2196 = vrsqrt.pop %v2184
      %v2197 = vmul.f32 %v2196, %v2184
      %v2198 = vmul.f32 %v2197, %v2196
      %v2199 = vmul.f32 0.5, %v2198
      %v2200 = vsub.f32 1.5, %v2199
      %v2201 = vmul.f32 %v2196, %v2200
      %vm2202 = vweird.f32 %v2184
      %vm2203 = vweird.f32 %v2196
      %vm2204 = vmor %vm2202, %vm2203
      %v2205 = vsel %vm2204, %v2196, %v2201
      %v2206 = vrsqrt.pop %v2185
      %v2207 = vmul.f32 %v2206, %v2185
      %v2208 = vmul.f32 %v2207, %v2206
      %v2209 = vmul.f32 0.5, %v2208
      %v2210 = vsub.f32 1.5, %v2209
      %v2211 = vmul.f32 %v2206, %v2210
      %vm2212 = vweird.f32 %v2185
      %vm2213 = vweird.f32 %v2206
      %vm2214 = vmor %vm2212, %vm2213
      %v2215 = vsel %vm2214, %v2206, %v2211
      %v2216 = vmul.f32 %v2165, %v2195
      %v2217 = vmul.f32 %v2166, %v2205
      %v2218 = vmul.f32 %v2167, %v2215
      %v2220 = vperm.slane %v2150, 0
      %v2222 = vmul.f32 %v2216, %v2220
      %v2223 = vmul.f32 %v2217, %v2220
      %v2224 = vmul.f32 %v2218, %v2220
      %v2226 = vperm.slane %v2152, 0
      %v2228 = vadd.f32 %v2222, %v2226
      %v2229 = vadd.f32 %v2223, %v2226
      %v2230 = vadd.f32 %v2224, %v2226
      %s2231 = scalar_lea.vmem %s13, 32
      %v2232 = vld [vmem:[%s2231] sm:$0xff]
      %v2233 = vld [vmem:[%s2231 + $0x8] sm:$0xff]
      %v2234 = vld [vmem:[%s2231 + $0x10] sm:$0xff]
      %v2235 = vld [vmem:[%s2231 + $0x18] sm:$0xff]
      %v2236 = vpack.c.bf16 %v2229, %v2228
      %v2237 = vpack.c.bf16 %v2230, %v2230
      %v2238 = vpack.c.bf16 %v2233, %v2232
      %v2239 = vpack.c.bf16 %v2235, %v2234
      %s2240 = scalar_lea.vmem %s15, 1
      %v2241 = vld [vmem:[%s2240] sm:$0x1]
      %v2243 = vperm.slane %v2241, 0
      %v2246 = vsel %vm1315, %v2236, 0
      %v2249 = vsel %vm1315, %v2237, 0
      %2251 = vmatpush.bf16.msra.mxu0 0
      %2252 = vmatpush.bf16.msra.mxu0 0
      %2253 = vmatpush.bf16.msra.mxu0 0
      %2254 = vmatpush.bf16.msra.mxu0 0
      %2255 = vmatpush.bf16.msra.mxu0 0
      %2256 = vmatpush.bf16.msra.mxu0 0
      %2257 = vmatpush.bf16.msra.mxu0 %v2239
      %2258 = vmatpush.bf16.msra.mxu0 %v2238
      %2259 = vmatmul.bf16.gmra.mxu0 %v2246
      %v2260 = vpop.f32.mrf.mxu0
      %v2261 = vadd.f32 %v2243, %v2260
      %v2262 = vpop.f32.mrf.mxu0
      %v2263 = vadd.f32 %v2243, %v2262
      %2264 = vmatmul.bf16.gmra.mxu0 %v2249
      %v2265 = vpop.f32.mrf.mxu0
      %v2266 = vadd.f32 %v2243, %v2265
      %v2267 = vpop.f32.mrf.mxu0
      %2268 = vdwg.mxu0
      %v2269 = vpack.c.bf16 %v2263, %v2261
      %v2270 = vpack.c.bf16 %v2266, %v2266
      %2273 = vrot.lane.b32.xlu0 %v2269, 96
      %v2274 = vpop.permute.xlu0 %2273
      %2275 = vrot.lane.b32.xlu0 %v2270, 96
      %v2276 = vpop.permute.xlu0 %2275
      %v2278 = vsel %vm1446, %v2269, 0
      %v2281 = vsel %vm1446, %v2270, 0
      %v2284 = vsel %vm1446, %v2274, 0
      %v2287 = vsel %vm1446, %v2276, 0
      %2289 = vmatpush.bf16.xpose.msra.mxu0 0
      %2290 = vmatpush.bf16.xpose.msra.mxu0 0
      %2291 = vmatpush.bf16.xpose.msra.mxu0 0
      %2292 = vmatpush.bf16.xpose.msra.mxu0 0
      %2293 = vmatpush.bf16.xpose.msra.mxu0 0
      %2294 = vmatpush.bf16.xpose.msra.mxu0 0
      %2295 = vmatpush.bf16.xpose.msra.mxu0 %v2287
      %2296 = vmatpush.bf16.xpose.msra.mxu0 %v2284
      %2297 = vmatmul.bf16.gmra.mxu0 %v2278
      %v2298 = vpop.f32.mrf.mxu0
      %v2299 = vadd.f32 0.0, %v2298
      %v2300 = vpop.f32.mrf.mxu0
      %v2301 = vadd.f32 0.0, %v2300
      %2302 = vmatmul.bf16.gmra.mxu0 %v2281
      %v2303 = vpop.f32.mrf.mxu0
      %v2304 = vadd.f32 0.0, %v2303
      %v2305 = vpop.f32.mrf.mxu0
      %2306 = vdwg.mxu0
      %v2307 = vmul.f32 %v2299, 0.35355338
      %v2308 = vmul.f32 %v2301, 0.35355338
      %v2309 = vmul.f32 %v2304, 0.35355338
      %v2310 = vsel %vm1480, %v2307, -inf
      %2311 = vmax.xlane.f32.xlu0 %v2310
      %v2312 = vpop.xlane.xlu0 %2311
      %v2313 = vsel %vm1480, %v2308, -inf
      %2314 = vmax.xlane.f32.xlu0 %v2313
      %v2315 = vpop.xlane.xlu0 %2314
      %v2316 = vsel %vm1487, %v2309, -inf
      %2317 = vmax.xlane.f32.xlu0 %v2316
      %v2318 = vpop.xlane.xlu0 %2317
      %v2319 = vsub.f32 %v2307, %v2312
      %v2320 = vsub.f32 %v2308, %v2315
      %v2321 = vsub.f32 %v2309, %v2318
      %v2322 = vmul.f32 %v2319, 1.442695
      %v2323 = vpow.pop %v2322
      %v2324 = vmul.f32 %v2320, 1.442695
      %v2325 = vpow.pop %v2324
      %v2326 = vmul.f32 %v2321, 1.442695
      %v2327 = vpow.pop %v2326
      %v2328 = vsel %vm1480, %v2323, 0.0
      %2329 = vadd.xlane.f32.xlu0 %v2328
      %v2330 = vpop.xlane.xlu0 %2329
      %v2331 = vsel %vm1480, %v2325, 0.0
      %2332 = vadd.xlane.f32.xlu0 %v2331
      %v2333 = vpop.xlane.xlu0 %2332
      %v2334 = vsel %vm1487, %v2327, 0.0
      %2335 = vadd.xlane.f32.xlu0 %v2334
      %v2336 = vpop.xlane.xlu0 %2335
      %v2337 = vrcp.pop %v2330
      %v2338 = vrcp.pop %v2333
      %v2339 = vrcp.pop %v2336
      %v2340 = vmul.f32 %v2323, %v2337
      %v2341 = vmul.f32 %v2325, %v2338
      %v2342 = vmul.f32 %v2327, %v2339
      %v2343 = vpack.c.bf16 %v2341, %v2340
      %v2344 = vpack.c.bf16 %v2342, %v2342
      %2345 = vrot.lane.b32.xlu0 %v2269, 64
      %v2346 = vpop.permute.xlu0 %2345
      %2347 = vrot.lane.b32.xlu0 %v2270, 64
      %v2348 = vpop.permute.xlu0 %2347
      %v2351 = vsel %vm1480, %v2343, 0
      %v2354 = vsel %vm1480, %v2344, 0
      %v2357 = vsel %vm1528, %v2348, 0
      %2359 = vmatpush.bf16.msra.mxu0 0
      %2360 = vmatpush.bf16.msra.mxu0 0
      %2361 = vmatpush.bf16.msra.mxu0 0
      %2362 = vmatpush.bf16.msra.mxu0 0
      %2363 = vmatpush.bf16.msra.mxu0 0
      %2364 = vmatpush.bf16.msra.mxu0 0
      %2365 = vmatpush.bf16.msra.mxu0 %v2357
      %2366 = vmatpush.bf16.msra.mxu0 %v2346
      %2367 = vmatmul.bf16.gmra.mxu0 %v2351
      %v2368 = vpop.f32.mrf.mxu0
      %v2369 = vadd.f32 0.0, %v2368
      %v2370 = vpop.f32.mrf.mxu0
      %v2371 = vadd.f32 0.0, %v2370
      %2372 = vmatmul.bf16.gmra.mxu0 %v2354
      %v2373 = vpop.f32.mrf.mxu0
      %v2374 = vadd.f32 0.0, %v2373
      %v2375 = vpop.f32.mrf.mxu0
      %2376 = vdwg.mxu0
      %2377 = vrot.lane.b32.xlu0 %v2269, 120
      %v2378 = vpop.permute.xlu0 %2377
      %2379 = vrot.lane.b32.xlu0 %v2270, 120
      %v2380 = vpop.permute.xlu0 %2379
      %2381 = vrot.lane.b32.xlu0 %v2269, 88
      %v2382 = vpop.permute.xlu0 %2381
      %2383 = vrot.lane.b32.xlu0 %v2270, 88
      %v2384 = vpop.permute.xlu0 %2383
      %v2386 = vsel %vm1446, %v2378, 0
      %v2389 = vsel %vm1446, %v2380, 0
      %v2392 = vsel %vm1446, %v2382, 0
      %v2395 = vsel %vm1446, %v2384, 0
      %2397 = vmatpush.bf16.xpose.msra.mxu0 0
      %2398 = vmatpush.bf16.xpose.msra.mxu0 0
      %2399 = vmatpush.bf16.xpose.msra.mxu0 0
      %2400 = vmatpush.bf16.xpose.msra.mxu0 0
      %2401 = vmatpush.bf16.xpose.msra.mxu0 0
      %2402 = vmatpush.bf16.xpose.msra.mxu0 0
      %2403 = vmatpush.bf16.xpose.msra.mxu0 %v2395
      %2404 = vmatpush.bf16.xpose.msra.mxu0 %v2392
      %2405 = vmatmul.bf16.gmra.mxu0 %v2386
      %v2406 = vpop.f32.mrf.mxu0
      %v2407 = vadd.f32 0.0, %v2406
      %v2408 = vpop.f32.mrf.mxu0
      %v2409 = vadd.f32 0.0, %v2408
      %2410 = vmatmul.bf16.gmra.mxu0 %v2389
      %v2411 = vpop.f32.mrf.mxu0
      %v2412 = vadd.f32 0.0, %v2411
      %v2413 = vpop.f32.mrf.mxu0
      %2414 = vdwg.mxu0
      %v2415 = vmul.f32 %v2407, 0.35355338
      %v2416 = vmul.f32 %v2409, 0.35355338
      %v2417 = vmul.f32 %v2412, 0.35355338
      %v2418 = vsel %vm1480, %v2415, -inf
      %2419 = vmax.xlane.f32.xlu0 %v2418
      %v2420 = vpop.xlane.xlu0 %2419
      %v2421 = vsel %vm1480, %v2416, -inf
      %2422 = vmax.xlane.f32.xlu0 %v2421
      %v2423 = vpop.xlane.xlu0 %2422
      %v2424 = vsel %vm1487, %v2417, -inf
      %2425 = vmax.xlane.f32.xlu0 %v2424
      %v2426 = vpop.xlane.xlu0 %2425
      %v2427 = vsub.f32 %v2415, %v2420
      %v2428 = vsub.f32 %v2416, %v2423
      %v2429 = vsub.f32 %v2417, %v2426
      %v2430 = vmul.f32 %v2427, 1.442695
      %v2431 = vpow.pop %v2430
      %v2432 = vmul.f32 %v2428, 1.442695
      %v2433 = vpow.pop %v2432
      %v2434 = vmul.f32 %v2429, 1.442695
      %v2435 = vpow.pop %v2434
      %v2436 = vsel %vm1480, %v2431, 0.0
      %2437 = vadd.xlane.f32.xlu0 %v2436
      %v2438 = vpop.xlane.xlu0 %2437
      %v2439 = vsel %vm1480, %v2433, 0.0
      %2440 = vadd.xlane.f32.xlu0 %v2439
      %v2441 = vpop.xlane.xlu0 %2440
      %v2442 = vsel %vm1487, %v2435, 0.0
      %2443 = vadd.xlane.f32.xlu0 %v2442
      %v2444 = vpop.xlane.xlu0 %2443
      %v2445 = vrcp.pop %v2438
      %v2446 = vrcp.pop %v2441
      %v2447 = vrcp.pop %v2444
      %v2448 = vmul.f32 %v2431, %v2445
      %v2449 = vmul.f32 %v2433, %v2446
      %v2450 = vmul.f32 %v2435, %v2447
      %v2451 = vpack.c.bf16 %v2449, %v2448
      %v2452 = vpack.c.bf16 %v2450, %v2450
      %2453 = vrot.lane.b32.xlu0 %v2269, 56
      %v2454 = vpop.permute.xlu0 %2453
      %2455 = vrot.lane.b32.xlu0 %v2270, 56
      %v2456 = vpop.permute.xlu0 %2455
      %v2459 = vsel %vm1480, %v2451, 0
      %v2462 = vsel %vm1480, %v2452, 0
      %v2465 = vsel %vm1528, %v2456, 0
      %2467 = vmatpush.bf16.msra.mxu0 0
      %2468 = vmatpush.bf16.msra.mxu0 0
      %2469 = vmatpush.bf16.msra.mxu0 0
      %2470 = vmatpush.bf16.msra.mxu0 0
      %2471 = vmatpush.bf16.msra.mxu0 0
      %2472 = vmatpush.bf16.msra.mxu0 0
      %2473 = vmatpush.bf16.msra.mxu0 %v2465
      %2474 = vmatpush.bf16.msra.mxu0 %v2454
      %2475 = vmatmul.bf16.gmra.mxu0 %v2459
      %v2476 = vpop.f32.mrf.mxu0
      %v2477 = vadd.f32 0.0, %v2476
      %v2478 = vpop.f32.mrf.mxu0
      %v2479 = vadd.f32 0.0, %v2478
      %2480 = vmatmul.bf16.gmra.mxu0 %v2462
      %v2481 = vpop.f32.mrf.mxu0
      %v2482 = vadd.f32 0.0, %v2481
      %v2483 = vpop.f32.mrf.mxu0
      %2484 = vdwg.mxu0
      %2485 = vrot.lane.b32.xlu0 %v2269, 112
      %v2486 = vpop.permute.xlu0 %2485
      %2487 = vrot.lane.b32.xlu0 %v2270, 112
      %v2488 = vpop.permute.xlu0 %2487
      %2489 = vrot.lane.b32.xlu0 %v2269, 80
      %v2490 = vpop.permute.xlu0 %2489
      %2491 = vrot.lane.b32.xlu0 %v2270, 80
      %v2492 = vpop.permute.xlu0 %2491
      %v2494 = vsel %vm1446, %v2486, 0
      %v2497 = vsel %vm1446, %v2488, 0
      %v2500 = vsel %vm1446, %v2490, 0
      %v2503 = vsel %vm1446, %v2492, 0
      %2505 = vmatpush.bf16.xpose.msra.mxu0 0
      %2506 = vmatpush.bf16.xpose.msra.mxu0 0
      %2507 = vmatpush.bf16.xpose.msra.mxu0 0
      %2508 = vmatpush.bf16.xpose.msra.mxu0 0
      %2509 = vmatpush.bf16.xpose.msra.mxu0 0
      %2510 = vmatpush.bf16.xpose.msra.mxu0 0
      %2511 = vmatpush.bf16.xpose.msra.mxu0 %v2503
      %2512 = vmatpush.bf16.xpose.msra.mxu0 %v2500
      %2513 = vmatmul.bf16.gmra.mxu0 %v2494
      %v2514 = vpop.f32.mrf.mxu0
      %v2515 = vadd.f32 0.0, %v2514
      %v2516 = vpop.f32.mrf.mxu0
      %v2517 = vadd.f32 0.0, %v2516
      %2518 = vmatmul.bf16.gmra.mxu0 %v2497
      %v2519 = vpop.f32.mrf.mxu0
      %v2520 = vadd.f32 0.0, %v2519
      %v2521 = vpop.f32.mrf.mxu0
      %2522 = vdwg.mxu0
      %v2523 = vmul.f32 %v2515, 0.35355338
      %v2524 = vmul.f32 %v2517, 0.35355338
      %v2525 = vmul.f32 %v2520, 0.35355338
      %v2526 = vsel %vm1480, %v2523, -inf
      %2527 = vmax.xlane.f32.xlu0 %v2526
      %v2528 = vpop.xlane.xlu0 %2527
      %v2529 = vsel %vm1480, %v2524, -inf
      %2530 = vmax.xlane.f32.xlu0 %v2529
      %v2531 = vpop.xlane.xlu0 %2530
      %v2532 = vsel %vm1487, %v2525, -inf
      %2533 = vmax.xlane.f32.xlu0 %v2532
      %v2534 = vpop.xlane.xlu0 %2533
      %v2535 = vsub.f32 %v2523, %v2528
      %v2536 = vsub.f32 %v2524, %v2531
      %v2537 = vsub.f32 %v2525, %v2534
      %v2538 = vmul.f32 %v2535, 1.442695
      %v2539 = vpow.pop %v2538
      %v2540 = vmul.f32 %v2536, 1.442695
      %v2541 = vpow.pop %v2540
      %v2542 = vmul.f32 %v2537, 1.442695
      %v2543 = vpow.pop %v2542
      %v2544 = vsel %vm1480, %v2539, 0.0
      %2545 = vadd.xlane.f32.xlu0 %v2544
      %v2546 = vpop.xlane.xlu0 %2545
      %v2547 = vsel %vm1480, %v2541, 0.0
      %2548 = vadd.xlane.f32.xlu0 %v2547
      %v2549 = vpop.xlane.xlu0 %2548
      %v2550 = vsel %vm1487, %v2543, 0.0
      %2551 = vadd.xlane.f32.xlu0 %v2550
      %v2552 = vpop.xlane.xlu0 %2551
      %v2553 = vrcp.pop %v2546
      %v2554 = vrcp.pop %v2549
      %v2555 = vrcp.pop %v2552
      %v2556 = vmul.f32 %v2539, %v2553
      %v2557 = vmul.f32 %v2541, %v2554
      %v2558 = vmul.f32 %v2543, %v2555
      %v2559 = vpack.c.bf16 %v2557, %v2556
      %v2560 = vpack.c.bf16 %v2558, %v2558
      %2561 = vrot.lane.b32.xlu0 %v2269, 48
      %v2562 = vpop.permute.xlu0 %2561
      %2563 = vrot.lane.b32.xlu0 %v2270, 48
      %v2564 = vpop.permute.xlu0 %2563
      %v2567 = vsel %vm1480, %v2559, 0
      %v2570 = vsel %vm1480, %v2560, 0
      %v2573 = vsel %vm1528, %v2564, 0
      %2575 = vmatpush.bf16.msra.mxu0 0
      %2576 = vmatpush.bf16.msra.mxu0 0
      %2577 = vmatpush.bf16.msra.mxu0 0
      %2578 = vmatpush.bf16.msra.mxu0 0
      %2579 = vmatpush.bf16.msra.mxu0 0
      %2580 = vmatpush.bf16.msra.mxu0 0
      %2581 = vmatpush.bf16.msra.mxu0 %v2573
      %2582 = vmatpush.bf16.msra.mxu0 %v2562
      %2583 = vmatmul.bf16.gmra.mxu0 %v2567
      %v2584 = vpop.f32.mrf.mxu0
      %v2585 = vadd.f32 0.0, %v2584
      %v2586 = vpop.f32.mrf.mxu0
      %v2587 = vadd.f32 0.0, %v2586
      %2588 = vmatmul.bf16.gmra.mxu0 %v2570
      %v2589 = vpop.f32.mrf.mxu0
      %v2590 = vadd.f32 0.0, %v2589
      %v2591 = vpop.f32.mrf.mxu0
      %2592 = vdwg.mxu0
      %2593 = vrot.lane.b32.xlu0 %v2269, 104
      %v2594 = vpop.permute.xlu0 %2593
      %2595 = vrot.lane.b32.xlu0 %v2270, 104
      %v2596 = vpop.permute.xlu0 %2595
      %2597 = vrot.lane.b32.xlu0 %v2269, 72
      %v2598 = vpop.permute.xlu0 %2597
      %2599 = vrot.lane.b32.xlu0 %v2270, 72
      %v2600 = vpop.permute.xlu0 %2599
      %v2602 = vsel %vm1446, %v2594, 0
      %v2605 = vsel %vm1446, %v2596, 0
      %v2608 = vsel %vm1446, %v2598, 0
      %v2611 = vsel %vm1446, %v2600, 0
      %2613 = vmatpush.bf16.xpose.msra.mxu0 0
      %2614 = vmatpush.bf16.xpose.msra.mxu0 0
      %2615 = vmatpush.bf16.xpose.msra.mxu0 0
      %2616 = vmatpush.bf16.xpose.msra.mxu0 0
      %2617 = vmatpush.bf16.xpose.msra.mxu0 0
      %2618 = vmatpush.bf16.xpose.msra.mxu0 0
      %2619 = vmatpush.bf16.xpose.msra.mxu0 %v2611
      %2620 = vmatpush.bf16.xpose.msra.mxu0 %v2608
      %2621 = vmatmul.bf16.gmra.mxu0 %v2602
      %v2622 = vpop.f32.mrf.mxu0
      %v2623 = vadd.f32 0.0, %v2622
      %v2624 = vpop.f32.mrf.mxu0
      %v2625 = vadd.f32 0.0, %v2624
      %2626 = vmatmul.bf16.gmra.mxu0 %v2605
      %v2627 = vpop.f32.mrf.mxu0
      %v2628 = vadd.f32 0.0, %v2627
      %v2629 = vpop.f32.mrf.mxu0
      %2630 = vdwg.mxu0
      %v2631 = vmul.f32 %v2623, 0.35355338
      %v2632 = vmul.f32 %v2625, 0.35355338
      %v2633 = vmul.f32 %v2628, 0.35355338
      %v2634 = vsel %vm1480, %v2631, -inf
      %2635 = vmax.xlane.f32.xlu0 %v2634
      %v2636 = vpop.xlane.xlu0 %2635
      %v2637 = vsel %vm1480, %v2632, -inf
      %2638 = vmax.xlane.f32.xlu0 %v2637
      %v2639 = vpop.xlane.xlu0 %2638
      %v2640 = vsel %vm1487, %v2633, -inf
      %2641 = vmax.xlane.f32.xlu0 %v2640
      %v2642 = vpop.xlane.xlu0 %2641
      %v2643 = vsub.f32 %v2631, %v2636
      %v2644 = vsub.f32 %v2632, %v2639
      %v2645 = vsub.f32 %v2633, %v2642
      %v2646 = vmul.f32 %v2643, 1.442695
      %v2647 = vpow.pop %v2646
      %v2648 = vmul.f32 %v2644, 1.442695
      %v2649 = vpow.pop %v2648
      %v2650 = vmul.f32 %v2645, 1.442695
      %v2651 = vpow.pop %v2650
      %v2652 = vsel %vm1480, %v2647, 0.0
      %2653 = vadd.xlane.f32.xlu0 %v2652
      %v2654 = vpop.xlane.xlu0 %2653
      %v2655 = vsel %vm1480, %v2649, 0.0
      %2656 = vadd.xlane.f32.xlu0 %v2655
      %v2657 = vpop.xlane.xlu0 %2656
      %v2658 = vsel %vm1487, %v2651, 0.0
      %2659 = vadd.xlane.f32.xlu0 %v2658
      %v2660 = vpop.xlane.xlu0 %2659
      %v2661 = vrcp.pop %v2654
      %v2662 = vrcp.pop %v2657
      %v2663 = vrcp.pop %v2660
      %v2664 = vmul.f32 %v2647, %v2661
      %v2665 = vmul.f32 %v2649, %v2662
      %v2666 = vmul.f32 %v2651, %v2663
      %v2667 = vpack.c.bf16 %v2665, %v2664
      %v2668 = vpack.c.bf16 %v2666, %v2666
      %2669 = vrot.lane.b32.xlu0 %v2269, 40
      %v2670 = vpop.permute.xlu0 %2669
      %2671 = vrot.lane.b32.xlu0 %v2270, 40
      %v2672 = vpop.permute.xlu0 %2671
      %v2675 = vsel %vm1480, %v2667, 0
      %v2678 = vsel %vm1480, %v2668, 0
      %v2681 = vsel %vm1528, %v2672, 0
      %2683 = vmatpush.bf16.msra.mxu0 0
      %2684 = vmatpush.bf16.msra.mxu0 0
      %2685 = vmatpush.bf16.msra.mxu0 0
      %2686 = vmatpush.bf16.msra.mxu0 0
      %2687 = vmatpush.bf16.msra.mxu0 0
      %2688 = vmatpush.bf16.msra.mxu0 0
      %2689 = vmatpush.bf16.msra.mxu0 %v2681
      %2690 = vmatpush.bf16.msra.mxu0 %v2670
      %2691 = vmatmul.bf16.gmra.mxu0 %v2675
      %v2692 = vpop.f32.mrf.mxu0
      %v2693 = vadd.f32 0.0, %v2692
      %v2694 = vpop.f32.mrf.mxu0
      %v2695 = vadd.f32 0.0, %v2694
      %2696 = vmatmul.bf16.gmra.mxu0 %v2678
      %v2697 = vpop.f32.mrf.mxu0
      %v2698 = vadd.f32 0.0, %v2697
      %v2699 = vpop.f32.mrf.mxu0
      %2700 = vdwg.mxu0
      %2704 = vrot.lane.b32.xlu0 %v2477, 8
      %v2705 = vpop.permute.xlu0 %2704
      %2706 = vrot.lane.b32.xlu0 %v2479, 8
      %v2707 = vpop.permute.xlu0 %2706
      %2708 = vrot.lane.b32.xlu0 %v2482, 8
      %v2709 = vpop.permute.xlu0 %2708
      %2716 = vrot.lane.b32.xlu0 %v2585, 16
      %v2717 = vpop.permute.xlu0 %2716
      %2718 = vrot.lane.b32.xlu0 %v2587, 16
      %v2719 = vpop.permute.xlu0 %2718
      %2720 = vrot.lane.b32.xlu0 %v2590, 16
      %v2721 = vpop.permute.xlu0 %2720
      %2728 = vrot.lane.b32.xlu0 %v2693, 24
      %v2729 = vpop.permute.xlu0 %2728
      %2730 = vrot.lane.b32.xlu0 %v2695, 24
      %v2731 = vpop.permute.xlu0 %2730
      %2732 = vrot.lane.b32.xlu0 %v2698, 24
      %v2733 = vpop.permute.xlu0 %2732
      %v2737 = vsel %vm1446, %v2369, %v2705
      %v2738 = vsel %vm1446, %v2371, %v2707
      %v2739 = vsel %vm1446, %v2374, %v2709
      %v2740 = vsel %vm1913, %v2737, %v2717
      %v2741 = vsel %vm1913, %v2738, %v2719
      %v2742 = vsel %vm1913, %v2739, %v2721
      %v2743 = vsel %vm1917, %v2740, %v2729
      %v2744 = vsel %vm1917, %v2741, %v2731
      %v2745 = vsel %vm1917, %v2742, %v2733
      %s2746 = scalar_lea.vmem %s17, 32
      %v2747 = vld [vmem:[%s2746] sm:$0xff]
      %v2748 = vld [vmem:[%s2746 + $0x8] sm:$0xff]
      %v2749 = vld [vmem:[%s2746 + $0x10] sm:$0xff]
      %v2750 = vld [vmem:[%s2746 + $0x18] sm:$0xff]
      %v2751 = vpack.c.bf16 %v2744, %v2743
      %v2752 = vpack.c.bf16 %v2745, %v2745
      %v2753 = vpack.c.bf16 %v2748, %v2747
      %v2754 = vpack.c.bf16 %v2750, %v2749
      %s2755 = scalar_lea.vmem %s19, 1
      %v2756 = vld [vmem:[%s2755] sm:$0x1]
      %v2758 = vperm.slane %v2756, 0
      %v2761 = vsel %vm1315, %v2751, 0
      %v2764 = vsel %vm1315, %v2752, 0
      %2766 = vmatpush.bf16.msra.mxu0 0
      %2767 = vmatpush.bf16.msra.mxu0 0
      %2768 = vmatpush.bf16.msra.mxu0 0
      %2769 = vmatpush.bf16.msra.mxu0 0
      %2770 = vmatpush.bf16.msra.mxu0 0
      %2771 = vmatpush.bf16.msra.mxu0 0
      %2772 = vmatpush.bf16.msra.mxu0 %v2754
      %2773 = vmatpush.bf16.msra.mxu0 %v2753
      %2774 = vmatmul.bf16.gmra.mxu0 %v2761
      %v2775 = vpop.f32.mrf.mxu0
      %v2776 = vadd.f32 %v2758, %v2775
      %v2777 = vpop.f32.mrf.mxu0
      %v2778 = vadd.f32 %v2758, %v2777
      %2779 = vmatmul.bf16.gmra.mxu0 %v2764
      %v2780 = vpop.f32.mrf.mxu0
      %v2781 = vadd.f32 %v2758, %v2780
      %v2782 = vpop.f32.mrf.mxu0
      %2783 = vdwg.mxu0
      %v2784 = vadd.f32 %v2146, %v2776
      %v2785 = vadd.f32 %v2147, %v2778
      %v2786 = vadd.f32 %v2148, %v2781
      %s2787 = scalar_lea.vmem %s21, 1
      %v2788 = vld [vmem:[%s2787] sm:$0x1]
      %s2789 = scalar_lea.vmem %s23, 1
      %v2790 = vld [vmem:[%s2789] sm:$0x1]
      %v2791 = vsel %vm1315, %v2784, 0.0
      %2792 = vadd.xlane.f32.xlu0 %v2791
      %v2793 = vpop.xlane.xlu0 %2792
      %v2794 = vsel %vm1315, %v2785, 0.0
      %2795 = vadd.xlane.f32.xlu0 %v2794
      %v2796 = vpop.xlane.xlu0 %2795
      %v2797 = vsel %vm1322, %v2786, 0.0
      %2798 = vadd.xlane.f32.xlu0 %v2797
      %v2799 = vpop.xlane.xlu0 %2798
      %v2800 = vmul.f32 %v2793, %v1332
      %v2801 = vmul.f32 %v2796, %v1332
      %v2802 = vmul.f32 %v2799, %v1332
      %v2803 = vsub.f32 %v2784, %v2800
      %v2804 = vsub.f32 %v2785, %v2801
      %v2805 = vsub.f32 %v2786, %v2802
      %v2806 = vmul.f32 %v2803, %v2803
      %v2807 = vmul.f32 %v2804, %v2804
      %v2808 = vmul.f32 %v2805, %v2805
      %v2809 = vsel %vm1315, %v2806, 0.0
      %2810 = vadd.xlane.f32.xlu0 %v2809
      %v2811 = vpop.xlane.xlu0 %2810
      %v2812 = vsel %vm1315, %v2807, 0.0
      %2813 = vadd.xlane.f32.xlu0 %v2812
      %v2814 = vpop.xlane.xlu0 %2813
      %v2815 = vsel %vm1322, %v2808, 0.0
      %2816 = vadd.xlane.f32.xlu0 %v2815
      %v2817 = vpop.xlane.xlu0 %2816
      %v2818 = vmul.f32 %v2811, %v1332
      %v2819 = vmul.f32 %v2814, %v1332
      %v2820 = vmul.f32 %v2817, %v1332
      %v2821 = vadd.f32 %v2818, 1e-05
      %v2822 = vadd.f32 %v2819, 1e-05
      %v2823 = vadd.f32 %v2820, 1e-05
      %v2824 = vrsqrt.pop %v2821
      %v2825 = vmul.f32 %v2824, %v2821
      %v2826 = vmul.f32 %v2825, %v2824
      %v2827 = vmul.f32 0.5, %v2826
      %v2828 = vsub.f32 1.5, %v2827
      %v2829 = vmul.f32 %v2824, %v2828
      %vm2830 = vweird.f32 %v2821
      %vm2831 = vweird.f32 %v2824
      %vm2832 = vmor %vm2830, %vm2831
      %v2833 = vsel %vm2832, %v2824, %v2829
      %v2834 = vrsqrt.pop %v2822
      %v2835 = vmul.f32 %v2834, %v2822
      %v2836 = vmul.f32 %v2835, %v2834
      %v2837 = vmul.f32 0.5, %v2836
      %v2838 = vsub.f32 1.5, %v2837
      %v2839 = vmul.f32 %v2834, %v2838
      %vm2840 = vweird.f32 %v2822
      %vm2841 = vweird.f32 %v2834
      %vm2842 = vmor %vm2840, %vm2841
      %v2843 = vsel %vm2842, %v2834, %v2839
      %v2844 = vrsqrt.pop %v2823
      %v2845 = vmul.f32 %v2844, %v2823
      %v2846 = vmul.f32 %v2845, %v2844
      %v2847 = vmul.f32 0.5, %v2846
      %v2848 = vsub.f32 1.5, %v2847
      %v2849 = vmul.f32 %v2844, %v2848
      %vm2850 = vweird.f32 %v2823
      %vm2851 = vweird.f32 %v2844
      %vm2852 = vmor %vm2850, %vm2851
      %v2853 = vsel %vm2852, %v2844, %v2849
      %v2854 = vmul.f32 %v2803, %v2833
      %v2855 = vmul.f32 %v2804, %v2843
      %v2856 = vmul.f32 %v2805, %v2853
      %v2858 = vperm.slane %v2788, 0
      %v2860 = vmul.f32 %v2854, %v2858
      %v2861 = vmul.f32 %v2855, %v2858
      %v2862 = vmul.f32 %v2856, %v2858
      %v2864 = vperm.slane %v2790, 0
      %v2866 = vadd.f32 %v2860, %v2864
      %v2867 = vadd.f32 %v2861, %v2864
      %v2868 = vadd.f32 %v2862, %v2864
      %s2869 = scalar_lea.vmem %s25, 32
      %v2870 = vld [vmem:[%s2869] sm:$0xff]
      %v2871 = vld [vmem:[%s2869 + $0x8] sm:$0xff]
      %v2872 = vld [vmem:[%s2869 + $0x10] sm:$0xff]
      %v2873 = vld [vmem:[%s2869 + $0x18] sm:$0xff]
      %v2874 = vpack.c.bf16 %v2867, %v2866
      %v2875 = vpack.c.bf16 %v2868, %v2868
      %v2876 = vpack.c.bf16 %v2871, %v2870
      %v2877 = vpack.c.bf16 %v2873, %v2872
      %s2878 = scalar_lea.vmem %s27, 1
      %v2879 = vld [vmem:[%s2878] sm:$0x1]
      %v2881 = vperm.slane %v2879, 0
      %v2884 = vsel %vm1315, %v2874, 0
      %v2887 = vsel %vm1315, %v2875, 0
      %2889 = vmatpush.bf16.msra.mxu0 0
      %2890 = vmatpush.bf16.msra.mxu0 0
      %2891 = vmatpush.bf16.msra.mxu0 0
      %2892 = vmatpush.bf16.msra.mxu0 0
      %2893 = vmatpush.bf16.msra.mxu0 0
      %2894 = vmatpush.bf16.msra.mxu0 0
      %2895 = vmatpush.bf16.msra.mxu0 %v2877
      %2896 = vmatpush.bf16.msra.mxu0 %v2876
      %2897 = vmatmul.bf16.gmra.mxu0 %v2884
      %v2898 = vpop.f32.mrf.mxu0
      %v2899 = vadd.f32 %v2881, %v2898
      %v2900 = vpop.f32.mrf.mxu0
      %v2901 = vadd.f32 %v2881, %v2900
      %2902 = vmatmul.bf16.gmra.mxu0 %v2887
      %v2903 = vpop.f32.mrf.mxu0
      %v2904 = vadd.f32 %v2881, %v2903
      %v2905 = vpop.f32.mrf.mxu0
      %2906 = vdwg.mxu0
      %v2907 = vmul.f32 %v2899, %v2899
      %v2908 = vmul.f32 %v2901, %v2901
      %v2909 = vmul.f32 %v2904, %v2904
      %v2910 = vmul.f32 %v2899, %v2907
      %v2911 = vmul.f32 %v2901, %v2908
      %v2912 = vmul.f32 %v2904, %v2909
      %v2913 = vmul.f32 %v2910, 0.044715
      %v2914 = vmul.f32 %v2911, 0.044715
      %v2915 = vmul.f32 %v2912, 0.044715
      %v2916 = vadd.f32 %v2899, %v2913
      %v2917 = vadd.f32 %v2901, %v2914
      %v2918 = vadd.f32 %v2904, %v2915
      %v2919 = vmul.f32 %v2916, 0.7978846
      %v2920 = vmul.f32 %v2917, 0.7978846
      %v2921 = vmul.f32 %v2918, 0.7978846
      %v2922 = vtanh.pop %v2919
      %v2923 = vtanh.pop %v2920
      %v2924 = vtanh.pop %v2921
      %v2925 = vadd.f32 %v2922, 1.0
      %v2926 = vadd.f32 %v2923, 1.0
      %v2927 = vadd.f32 %v2924, 1.0
      %v2928 = vmul.f32 %v2925, 0.5
      %v2929 = vmul.f32 %v2926, 0.5
      %v2930 = vmul.f32 %v2927, 0.5
      %v2931 = vmul.f32 %v2899, %v2928
      %v2932 = vmul.f32 %v2901, %v2929
      %v2933 = vmul.f32 %v2904, %v2930
      %s2934 = scalar_lea.vmem %s29, 64
      %v2935 = vld [vmem:[%s2934] sm:$0xff]
      %v2936 = vld [vmem:[%s2934 + $0x8] sm:$0xff]
      %v2937 = vld [vmem:[%s2934 + $0x10] sm:$0xff]
      %v2938 = vld [vmem:[%s2934 + $0x18] sm:$0xff]
      %v2939 = vld [vmem:[%s2934 + $0x20] sm:$0xff]
      %v2940 = vld [vmem:[%s2934 + $0x28] sm:$0xff]
      %v2941 = vld [vmem:[%s2934 + $0x30] sm:$0xff]
      %v2942 = vld [vmem:[%s2934 + $0x38] sm:$0xff]
      %v2943 = vpack.c.bf16 %v2932, %v2931
      %v2944 = vpack.c.bf16 %v2933, %v2933
      %v2945 = vpack.c.bf16 %v2936, %v2935
      %v2946 = vpack.c.bf16 %v2938, %v2937
      %v2947 = vpack.c.bf16 %v2940, %v2939
      %v2948 = vpack.c.bf16 %v2942, %v2941
      %s2949 = scalar_lea.vmem %s31, 1
      %v2950 = vld [vmem:[%s2949] sm:$0x1]
      %v2952 = vperm.slane %v2950, 0
      %v2955 = vsel %vm2121, %v2943, 0
      %v2958 = vsel %vm2121, %v2944, 0
      %2960 = vmatpush.bf16.msra.mxu0 0
      %2961 = vmatpush.bf16.msra.mxu0 0
      %2962 = vmatpush.bf16.msra.mxu0 0
      %2963 = vmatpush.bf16.msra.mxu0 0
      %2964 = vmatpush.bf16.msra.mxu0 %v2948
      %2965 = vmatpush.bf16.msra.mxu0 %v2947
      %2966 = vmatpush.bf16.msra.mxu0 %v2946
      %2967 = vmatpush.bf16.msra.mxu0 %v2945
      %2968 = vmatmul.bf16.gmra.mxu0 %v2955
      %v2969 = vpop.f32.mrf.mxu0
      %v2970 = vadd.f32 %v2952, %v2969
      %v2971 = vpop.f32.mrf.mxu0
      %v2972 = vadd.f32 %v2952, %v2971
      %2973 = vmatmul.bf16.gmra.mxu0 %v2958
      %v2974 = vpop.f32.mrf.mxu0
      %v2975 = vadd.f32 %v2952, %v2974
      %v2976 = vpop.f32.mrf.mxu0
      %2977 = vdwg.mxu0
      %v2978 = vadd.f32 %v2784, %v2970
      %v2979 = vadd.f32 %v2785, %v2972
      %v2980 = vadd.f32 %v2786, %v2975
      %2981 = vst.msk [vmem:[%s1007] sm:$0xff] %vm1315, %v2978
      %2982 = vst.msk [vmem:[%s1007 + $0x8] sm:$0xff] %vm1315, %v2979
      %2983 = vst.msk [vmem:[%s1007 + $0x10] sm:$0xf] %vm1322, %v2980
      %v2984 = vsel %vm1315, %v2978, 0.0
      %v2985 = vsel %vm1315, %v2979, 0.0
      %v2986 = vadd.f32 %v2984, %v2985
      %v2987 = vsel %vm1322, %v2980, 0.0
      %v2988 = vadd.f32 %v2986, %v2987
      %v2989 = vrot.slane %v2988, 4
      %v2990 = vadd.f32 %v2988, %v2989
      %v2991 = vrot.slane %v2990, 2
      %v2992 = vadd.f32 %v2990, %v2991
      %v2993 = vrot.slane %v2992, 1
      %v2994 = vadd.f32 %v2992, %v2993
      %v2995 = vrcp.pop 20.0
      %v2996 = vmul.f32 20.0, %v2995
      %v2997 = vsub.f32 1.0, %v2996
      %v2998 = vmul.f32 %v2995, %v2997
      %v2999 = vadd.f32 %v2995, %v2998
      %vm3000 = vweird.f32 %v2995
      %v3001 = vsel %vm3000, %v2995, %v2999
      %v3002 = vmul.f32 %v2994, %v3001
      %v3003 = vld [vmem:[%s51] sm:$0xff]
      %v3004 = vld [vmem:[%s51 + $0x8] sm:$0xff]
      %v3005 = vld [vmem:[%s51 + $0x10] sm:$0xff]
      %v3006 = vld [vmem:[%s51 + $0x18] sm:$0xff]
      %v3007 = vpack.c.bf16 %v3002, %v3002
      %v3008 = vpack.c.bf16 %v3004, %v3003
      %v3009 = vpack.c.bf16 %v3006, %v3005
      %v3010 = vld [vmem:[%s53] sm:$0x1]
      %v3012 = vsel %vm1315, %v3007, 0
      %3014 = vmatpush.bf16.msra.mxu0 0
      %3015 = vmatpush.bf16.msra.mxu0 0
      %3016 = vmatpush.bf16.msra.mxu0 0
      %3017 = vmatpush.bf16.msra.mxu0 0
      %3018 = vmatpush.bf16.msra.mxu0 0
      %3019 = vmatpush.bf16.msra.mxu0 0
      %3020 = vmatpush.bf16.msra.mxu0 %v3009
      %3021 = vmatpush.bf16.msra.mxu0 %v3008
      %3022 = vmatmul.bf16.gmra.mxu0 %v3012
      %v3023 = vpop.f32.mrf.mxu0
      %v3024 = vadd.f32 %v3010, %v3023
      %v3025 = vpop.f32.mrf.mxu0
      %3026 = vdwg.mxu0
      %v3027 = vmax.f32 %v3024, 0.0
      %v3028 = vld [vmem:[%s55] sm:$0xff]
      %v3029 = vld [vmem:[%s55 + $0x8] sm:$0xff]
      %v3030 = vld [vmem:[%s55 + $0x10] sm:$0xff]
      %v3031 = vld [vmem:[%s55 + $0x18] sm:$0xff]
      %v3032 = vpack.c.bf16 %v3027, %v3027
      %v3033 = vpack.c.bf16 %v3029, %v3028
      %v3034 = vpack.c.bf16 %v3031, %v3030
      %v3035 = vld [vmem:[#allocation2] sm:$0x1]
      %v3037 = vsel %vm1315, %v3032, 0
      %3039 = vmatpush.bf16.msra.mxu0 0
      %3040 = vmatpush.bf16.msra.mxu0 0
      %3041 = vmatpush.bf16.msra.mxu0 0
      %3042 = vmatpush.bf16.msra.mxu0 0
      %3043 = vmatpush.bf16.msra.mxu0 0
      %3044 = vmatpush.bf16.msra.mxu0 0
      %3045 = vmatpush.bf16.msra.mxu0 %v3034
      %3046 = vmatpush.bf16.msra.mxu0 %v3033
      %3047 = vmatmul.bf16.gmra.mxu0 %v3037
      %v3048 = vpop.f32.mrf.mxu0
      %v3049 = vadd.f32 %v3035, %v3048
      %v3050 = vpop.f32.mrf.mxu0
      %3051 = vdwg.mxu0
      %vm3052 = vcmask 0
      %3053 = vst.msk [vmem:[%s1019] sm:$0x1] %vm3052, %v3049
      %v3054 = vld [vmem:[%s33] sm:$0x1]
      %v3055 = vld [vmem:[%s35] sm:$0x1]
      %3056 = vadd.xlane.f32.xlu0 %v2984
      %v3057 = vpop.xlane.xlu0 %3056
      %3058 = vadd.xlane.f32.xlu0 %v2985
      %v3059 = vpop.xlane.xlu0 %3058
      %3060 = vadd.xlane.f32.xlu0 %v2987
      %v3061 = vpop.xlane.xlu0 %3060
      %v3062 = vmul.f32 %v3057, %v1332
      %v3063 = vmul.f32 %v3059, %v1332
      %v3064 = vmul.f32 %v3061, %v1332
      %v3065 = vsub.f32 %v2978, %v3062
      %v3066 = vsub.f32 %v2979, %v3063
      %v3067 = vsub.f32 %v2980, %v3064
      %v3068 = vmul.f32 %v3065, %v3065
      %v3069 = vmul.f32 %v3066, %v3066
      %v3070 = vmul.f32 %v3067, %v3067
      %v3071 = vsel %vm1315, %v3068, 0.0
      %3072 = vadd.xlane.f32.xlu0 %v3071
      %v3073 = vpop.xlane.xlu0 %3072
      %v3074 = vsel %vm1315, %v3069, 0.0
      %3075 = vadd.xlane.f32.xlu0 %v3074
      %v3076 = vpop.xlane.xlu0 %3075
      %v3077 = vsel %vm1322, %v3070, 0.0
      %3078 = vadd.xlane.f32.xlu0 %v3077
      %v3079 = vpop.xlane.xlu0 %3078
      %v3080 = vmul.f32 %v3073, %v1332
      %v3081 = vmul.f32 %v3076, %v1332
      %v3082 = vmul.f32 %v3079, %v1332
      %v3083 = vadd.f32 %v3080, 1e-05
      %v3084 = vadd.f32 %v3081, 1e-05
      %v3085 = vadd.f32 %v3082, 1e-05
      %v3086 = vrsqrt.pop %v3083
      %v3087 = vmul.f32 %v3086, %v3083
      %v3088 = vmul.f32 %v3087, %v3086
      %v3089 = vmul.f32 0.5, %v3088
      %v3090 = vsub.f32 1.5, %v3089
      %v3091 = vmul.f32 %v3086, %v3090
      %vm3092 = vweird.f32 %v3083
      %vm3093 = vweird.f32 %v3086
      %vm3094 = vmor %vm3092, %vm3093
      %v3095 = vsel %vm3094, %v3086, %v3091
      %v3096 = vrsqrt.pop %v3084
      %v3097 = vmul.f32 %v3096, %v3084
      %v3098 = vmul.f32 %v3097, %v3096
      %v3099 = vmul.f32 0.5, %v3098
      %v3100 = vsub.f32 1.5, %v3099
      %v3101 = vmul.f32 %v3096, %v3100
      %vm3102 = vweird.f32 %v3084
      %vm3103 = vweird.f32 %v3096
      %vm3104 = vmor %vm3102, %vm3103
      %v3105 = vsel %vm3104, %v3096, %v3101
      %v3106 = vrsqrt.pop %v3085
      %v3107 = vmul.f32 %v3106, %v3085
      %v3108 = vmul.f32 %v3107, %v3106
      %v3109 = vmul.f32 0.5, %v3108
      %v3110 = vsub.f32 1.5, %v3109
      %v3111 = vmul.f32 %v3106, %v3110
      %vm3112 = vweird.f32 %v3085
      %vm3113 = vweird.f32 %v3106
      %vm3114 = vmor %vm3112, %vm3113
      %v3115 = vsel %vm3114, %v3106, %v3111
      %v3116 = vmul.f32 %v3065, %v3095
      %v3117 = vmul.f32 %v3066, %v3105
      %v3118 = vmul.f32 %v3067, %v3115
      %v3120 = vperm.slane %v3054, 0
      %v3122 = vmul.f32 %v3116, %v3120
      %v3123 = vmul.f32 %v3117, %v3120
      %v3124 = vmul.f32 %v3118, %v3120
      %v3126 = vperm.slane %v3055, 0
      %v3128 = vadd.f32 %v3122, %v3126
      %v3129 = vadd.f32 %v3123, %v3126
      %v3130 = vadd.f32 %v3124, %v3126
      %v3131 = vld [vmem:[%s37] sm:$0xff]
      %v3132 = vld [vmem:[%s37 + $0x8] sm:$0xff]
      %v3133 = vld [vmem:[%s37 + $0x10] sm:$0xff]
      %v3134 = vld [vmem:[%s37 + $0x18] sm:$0xff]
      %v3135 = vpack.c.bf16 %v3129, %v3128
      %v3136 = vpack.c.bf16 %v3130, %v3130
      %v3137 = vpack.c.bf16 %v3132, %v3131
      %v3138 = vpack.c.bf16 %v3134, %v3133
      %v3140 = vsel %vm1315, %v3135, 0
      %v3143 = vsel %vm1315, %v3136, 0
      %3145 = vmatpush.bf16.msra.mxu0 0
      %3146 = vmatpush.bf16.msra.mxu0 0
      %3147 = vmatpush.bf16.msra.mxu0 0
      %3148 = vmatpush.bf16.msra.mxu0 0
      %3149 = vmatpush.bf16.msra.mxu0 0
      %3150 = vmatpush.bf16.msra.mxu0 0
      %3151 = vmatpush.bf16.msra.mxu0 %v3138
      %3152 = vmatpush.bf16.msra.mxu0 %v3137
      %3153 = vmatmul.bf16.gmra.mxu0 %v3140
      %v3154 = vpop.f32.mrf.mxu0
      %v3155 = vadd.f32 0.0, %v3154
      %v3156 = vpop.f32.mrf.mxu0
      %v3157 = vadd.f32 0.0, %v3156
      %3158 = vmatmul.bf16.gmra.mxu0 %v3143
      %v3159 = vpop.f32.mrf.mxu0
      %v3160 = vadd.f32 0.0, %v3159
      %v3161 = vpop.f32.mrf.mxu0
      %3162 = vdwg.mxu0
      %v3163 = vld [vmem:[%s45] sm:$0xff]
      %v3164 = vld [vmem:[%s45 + $0x8] sm:$0xff]
      %v3165 = vpack.c.bf16 %v3164, %v3163
      %v3166 = vpack.c.bf16 %v3157, %v3155
      %v3167 = vpack.c.bf16 %v3160, %v3160
      %s3168 = scalar_lea.vmem %s37, 32
      %v3169 = vld [vmem:[%s3168] sm:$0xff]
      %v3170 = vld [vmem:[%s3168 + $0x8] sm:$0xff]
      %v3171 = vld [vmem:[%s3168 + $0x10] sm:$0xff]
      %v3172 = vld [vmem:[%s3168 + $0x18] sm:$0xff]
      %v3173 = vpack.c.bf16 %v3170, %v3169
      %v3174 = vpack.c.bf16 %v3172, %v3171
      %3175 = vmatpush.bf16.msra.mxu0 0
      %3176 = vmatpush.bf16.msra.mxu0 0
      %3177 = vmatpush.bf16.msra.mxu0 0
      %3178 = vmatpush.bf16.msra.mxu0 0
      %3179 = vmatpush.bf16.msra.mxu0 0
      %3180 = vmatpush.bf16.msra.mxu0 0
      %3181 = vmatpush.bf16.msra.mxu0 %v3174
      %3182 = vmatpush.bf16.msra.mxu0 %v3173
      %3183 = vmatmul.bf16.gmra.mxu0 %v3140
      %v3184 = vpop.f32.mrf.mxu0
      %v3185 = vadd.f32 0.0, %v3184
      %v3186 = vpop.f32.mrf.mxu0
      %v3187 = vadd.f32 0.0, %v3186
      %3188 = vmatmul.bf16.gmra.mxu0 %v3143
      %v3189 = vpop.f32.mrf.mxu0
      %v3190 = vadd.f32 0.0, %v3189
      %v3191 = vpop.f32.mrf.mxu0
      %3192 = vdwg.mxu0
      %s3193 = scalar_lea.vmem %s45, 16
      %v3194 = vld [vmem:[%s3193] sm:$0xff]
      %v3195 = vld [vmem:[%s3193 + $0x8] sm:$0xff]
      %v3196 = vpack.c.bf16 %v3195, %v3194
      %v3197 = vpack.c.bf16 %v3187, %v3185
      %v3198 = vpack.c.bf16 %v3190, %v3190
      %v3200 = vsel %vm1480, %v3196, 0
      %v3203 = vsel %vm1528, %v3198, 0
      %3205 = vmatpush.bf16.msra.mxu0 0
      %3206 = vmatpush.bf16.msra.mxu0 0
      %3207 = vmatpush.bf16.msra.mxu0 0
      %3208 = vmatpush.bf16.msra.mxu0 0
      %3209 = vmatpush.bf16.msra.mxu0 0
      %3210 = vmatpush.bf16.msra.mxu0 0
      %3211 = vmatpush.bf16.msra.mxu0 %v3203
      %3212 = vmatpush.bf16.msra.mxu0 %v3197
      %3213 = vmatmul.bf16.gmra.mxu0 %v3200
      %v3214 = vpop.f32.mrf.mxu0
      %v3215 = vadd.f32 0.0, %v3214
      %v3216 = vpop.f32.mrf.mxu0
      %v3217 = vadd.f32 0.0, %v3216
      %3218 = vdwg.mxu0
      %v3220 = vsel %vm1480, %v3165, 0
      %v3223 = vsel %vm1528, %v3167, 0
      %3225 = vmatpush.bf16.msra.mxu0 0
      %3226 = vmatpush.bf16.msra.mxu0 0
      %3227 = vmatpush.bf16.msra.mxu0 0
      %3228 = vmatpush.bf16.msra.mxu0 0
      %3229 = vmatpush.bf16.msra.mxu0 0
      %3230 = vmatpush.bf16.msra.mxu0 0
      %3231 = vmatpush.bf16.msra.mxu0 %v3223
      %3232 = vmatpush.bf16.msra.mxu0 %v3166
      %3233 = vmatmul.bf16.gmra.mxu0 %v3220
      %v3234 = vpop.f32.mrf.mxu0
      %v3235 = vadd.f32 %v3215, %v3234
      %v3236 = vpop.f32.mrf.mxu0
      %v3237 = vadd.f32 %v3217, %v3236
      %3238 = vdwg.mxu0
      %s3239 = scalar_lea.vmem %s37, 64
      %v3240 = vld [vmem:[%s3239] sm:$0xff]
      %v3241 = vld [vmem:[%s3239 + $0x8] sm:$0xff]
      %v3242 = vld [vmem:[%s3239 + $0x10] sm:$0xff]
      %v3243 = vld [vmem:[%s3239 + $0x18] sm:$0xff]
      %v3244 = vpack.c.bf16 %v3241, %v3240
      %v3245 = vpack.c.bf16 %v3243, %v3242
      %3246 = vmatpush.bf16.msra.mxu0 0
      %3247 = vmatpush.bf16.msra.mxu0 0
      %3248 = vmatpush.bf16.msra.mxu0 0
      %3249 = vmatpush.bf16.msra.mxu0 0
      %3250 = vmatpush.bf16.msra.mxu0 0
      %3251 = vmatpush.bf16.msra.mxu0 0
      %3252 = vmatpush.bf16.msra.mxu0 %v3245
      %3253 = vmatpush.bf16.msra.mxu0 %v3244
      %3254 = vmatmul.bf16.gmra.mxu0 %v3140
      %v3255 = vpop.f32.mrf.mxu0
      %v3256 = vadd.f32 0.0, %v3255
      %v3257 = vpop.f32.mrf.mxu0
      %v3258 = vadd.f32 0.0, %v3257
      %3259 = vmatmul.bf16.gmra.mxu0 %v3143
      %v3260 = vpop.f32.mrf.mxu0
      %v3261 = vadd.f32 0.0, %v3260
      %v3262 = vpop.f32.mrf.mxu0
      %3263 = vdwg.mxu0
      %s3264 = scalar_lea.vmem %s45, 32
      %v3265 = vld [vmem:[%s3264] sm:$0xff]
      %v3266 = vld [vmem:[%s3264 + $0x8] sm:$0xff]
      %v3267 = vpack.c.bf16 %v3266, %v3265
      %v3268 = vpack.c.bf16 %v3258, %v3256
      %v3269 = vpack.c.bf16 %v3261, %v3261
      %v3271 = vsel %vm1480, %v3267, 0
      %v3274 = vsel %vm1528, %v3269, 0
      %3276 = vmatpush.bf16.msra.mxu0 0
      %3277 = vmatpush.bf16.msra.mxu0 0
      %3278 = vmatpush.bf16.msra.mxu0 0
      %3279 = vmatpush.bf16.msra.mxu0 0
      %3280 = vmatpush.bf16.msra.mxu0 0
      %3281 = vmatpush.bf16.msra.mxu0 0
      %3282 = vmatpush.bf16.msra.mxu0 %v3274
      %3283 = vmatpush.bf16.msra.mxu0 %v3268
      %3284 = vmatmul.bf16.gmra.mxu0 %v3271
      %v3285 = vpop.f32.mrf.mxu0
      %v3286 = vadd.f32 0.0, %v3285
      %v3287 = vpop.f32.mrf.mxu0
      %v3288 = vadd.f32 0.0, %v3287
      %3289 = vdwg.mxu0
      %v3290 = vadd.f32 %v3235, %v3286
      %v3291 = vadd.f32 %v3237, %v3288
      %s3292 = scalar_lea.vmem %s37, 96
      %v3293 = vld [vmem:[%s3292] sm:$0xff]
      %v3294 = vld [vmem:[%s3292 + $0x8] sm:$0xff]
      %v3295 = vld [vmem:[%s3292 + $0x10] sm:$0xff]
      %v3296 = vld [vmem:[%s3292 + $0x18] sm:$0xff]
      %v3297 = vpack.c.bf16 %v3294, %v3293
      %v3298 = vpack.c.bf16 %v3296, %v3295
      %3299 = vmatpush.bf16.msra.mxu0 0
      %3300 = vmatpush.bf16.msra.mxu0 0
      %3301 = vmatpush.bf16.msra.mxu0 0
      %3302 = vmatpush.bf16.msra.mxu0 0
      %3303 = vmatpush.bf16.msra.mxu0 0
      %3304 = vmatpush.bf16.msra.mxu0 0
      %3305 = vmatpush.bf16.msra.mxu0 %v3298
      %3306 = vmatpush.bf16.msra.mxu0 %v3297
      %3307 = vmatmul.bf16.gmra.mxu0 %v3140
      %v3308 = vpop.f32.mrf.mxu0
      %v3309 = vadd.f32 0.0, %v3308
      %v3310 = vpop.f32.mrf.mxu0
      %v3311 = vadd.f32 0.0, %v3310
      %3312 = vmatmul.bf16.gmra.mxu0 %v3143
      %v3313 = vpop.f32.mrf.mxu0
      %v3314 = vadd.f32 0.0, %v3313
      %v3315 = vpop.f32.mrf.mxu0
      %3316 = vdwg.mxu0
      %s3317 = scalar_lea.vmem %s45, 48
      %v3318 = vld [vmem:[%s3317] sm:$0xff]
      %v3319 = vld [vmem:[%s3317 + $0x8] sm:$0xff]
      %v3320 = vpack.c.bf16 %v3319, %v3318
      %v3321 = vpack.c.bf16 %v3311, %v3309
      %v3322 = vpack.c.bf16 %v3314, %v3314
      %v3324 = vsel %vm1480, %v3320, 0
      %v3327 = vsel %vm1528, %v3322, 0
      %3329 = vmatpush.bf16.msra.mxu0 0
      %3330 = vmatpush.bf16.msra.mxu0 0
      %3331 = vmatpush.bf16.msra.mxu0 0
      %3332 = vmatpush.bf16.msra.mxu0 0
      %3333 = vmatpush.bf16.msra.mxu0 0
      %3334 = vmatpush.bf16.msra.mxu0 0
      %3335 = vmatpush.bf16.msra.mxu0 %v3327
      %3336 = vmatpush.bf16.msra.mxu0 %v3321
      %3337 = vmatmul.bf16.gmra.mxu0 %v3324
      %v3338 = vpop.f32.mrf.mxu0
      %v3339 = vadd.f32 0.0, %v3338
      %v3340 = vpop.f32.mrf.mxu0
      %v3341 = vadd.f32 0.0, %v3340
      %3342 = vdwg.mxu0
      %v3343 = vadd.f32 %v3290, %v3339
      %v3344 = vadd.f32 %v3291, %v3341
      %s3345 = scalar_lea.vmem %s37, 128
      %v3346 = vld [vmem:[%s3345] sm:$0xff]
      %v3347 = vld [vmem:[%s3345 + $0x8] sm:$0xff]
      %v3348 = vld [vmem:[%s3345 + $0x10] sm:$0xff]
      %v3349 = vld [vmem:[%s3345 + $0x18] sm:$0xff]
      %v3350 = vpack.c.bf16 %v3347, %v3346
      %v3351 = vpack.c.bf16 %v3349, %v3348
      %3352 = vmatpush.bf16.msra.mxu0 0
      %3353 = vmatpush.bf16.msra.mxu0 0
      %3354 = vmatpush.bf16.msra.mxu0 0
      %3355 = vmatpush.bf16.msra.mxu0 0
      %3356 = vmatpush.bf16.msra.mxu0 0
      %3357 = vmatpush.bf16.msra.mxu0 0
      %3358 = vmatpush.bf16.msra.mxu0 %v3351
      %3359 = vmatpush.bf16.msra.mxu0 %v3350
      %3360 = vmatmul.bf16.gmra.mxu0 %v3140
      %v3361 = vpop.f32.mrf.mxu0
      %v3362 = vadd.f32 0.0, %v3361
      %v3363 = vpop.f32.mrf.mxu0
      %v3364 = vadd.f32 0.0, %v3363
      %3365 = vmatmul.bf16.gmra.mxu0 %v3143
      %v3366 = vpop.f32.mrf.mxu0
      %v3367 = vadd.f32 0.0, %v3366
      %v3368 = vpop.f32.mrf.mxu0
      %3369 = vdwg.mxu0
      %s3370 = scalar_lea.vmem %s45, 64
      %v3371 = vld [vmem:[%s3370] sm:$0xff]
      %v3372 = vld [vmem:[%s3370 + $0x8] sm:$0xff]
      %v3373 = vpack.c.bf16 %v3372, %v3371
      %v3374 = vpack.c.bf16 %v3364, %v3362
      %v3375 = vpack.c.bf16 %v3367, %v3367
      %v3377 = vsel %vm1480, %v3373, 0
      %v3380 = vsel %vm1528, %v3375, 0
      %3382 = vmatpush.bf16.msra.mxu0 0
      %3383 = vmatpush.bf16.msra.mxu0 0
      %3384 = vmatpush.bf16.msra.mxu0 0
      %3385 = vmatpush.bf16.msra.mxu0 0
      %3386 = vmatpush.bf16.msra.mxu0 0
      %3387 = vmatpush.bf16.msra.mxu0 0
      %3388 = vmatpush.bf16.msra.mxu0 %v3380
      %3389 = vmatpush.bf16.msra.mxu0 %v3374
      %3390 = vmatmul.bf16.gmra.mxu0 %v3377
      %v3391 = vpop.f32.mrf.mxu0
      %v3392 = vadd.f32 0.0, %v3391
      %v3393 = vpop.f32.mrf.mxu0
      %v3394 = vadd.f32 0.0, %v3393
      %3395 = vdwg.mxu0
      %v3396 = vadd.f32 %v3343, %v3392
      %v3397 = vadd.f32 %v3344, %v3394
      %s3398 = scalar_lea.vmem %s37, 160
      %v3399 = vld [vmem:[%s3398] sm:$0xff]
      %v3400 = vld [vmem:[%s3398 + $0x8] sm:$0xff]
      %v3401 = vld [vmem:[%s3398 + $0x10] sm:$0xff]
      %v3402 = vld [vmem:[%s3398 + $0x18] sm:$0xff]
      %v3403 = vpack.c.bf16 %v3400, %v3399
      %v3404 = vpack.c.bf16 %v3402, %v3401
      %3405 = vmatpush.bf16.msra.mxu0 0
      %3406 = vmatpush.bf16.msra.mxu0 0
      %3407 = vmatpush.bf16.msra.mxu0 0
      %3408 = vmatpush.bf16.msra.mxu0 0
      %3409 = vmatpush.bf16.msra.mxu0 0
      %3410 = vmatpush.bf16.msra.mxu0 0
      %3411 = vmatpush.bf16.msra.mxu0 %v3404
      %3412 = vmatpush.bf16.msra.mxu0 %v3403
      %3413 = vmatmul.bf16.gmra.mxu0 %v3140
      %v3414 = vpop.f32.mrf.mxu0
      %v3415 = vadd.f32 0.0, %v3414
      %v3416 = vpop.f32.mrf.mxu0
      %v3417 = vadd.f32 0.0, %v3416
      %3418 = vmatmul.bf16.gmra.mxu0 %v3143
      %v3419 = vpop.f32.mrf.mxu0
      %v3420 = vadd.f32 0.0, %v3419
      %v3421 = vpop.f32.mrf.mxu0
      %3422 = vdwg.mxu0
      %s3423 = scalar_lea.vmem %s45, 80
      %v3424 = vld [vmem:[%s3423] sm:$0xff]
      %v3425 = vld [vmem:[%s3423 + $0x8] sm:$0xff]
      %v3426 = vpack.c.bf16 %v3425, %v3424
      %v3427 = vpack.c.bf16 %v3417, %v3415
      %v3428 = vpack.c.bf16 %v3420, %v3420
      %v3430 = vsel %vm1480, %v3426, 0
      %v3433 = vsel %vm1528, %v3428, 0
      %3435 = vmatpush.bf16.msra.mxu0 0
      %3436 = vmatpush.bf16.msra.mxu0 0
      %3437 = vmatpush.bf16.msra.mxu0 0
      %3438 = vmatpush.bf16.msra.mxu0 0
      %3439 = vmatpush.bf16.msra.mxu0 0
      %3440 = vmatpush.bf16.msra.mxu0 0
      %3441 = vmatpush.bf16.msra.mxu0 %v3433
      %3442 = vmatpush.bf16.msra.mxu0 %v3427
      %3443 = vmatmul.bf16.gmra.mxu0 %v3430
      %v3444 = vpop.f32.mrf.mxu0
      %v3445 = vadd.f32 0.0, %v3444
      %v3446 = vpop.f32.mrf.mxu0
      %v3447 = vadd.f32 0.0, %v3446
      %3448 = vdwg.mxu0
      %v3449 = vadd.f32 %v3396, %v3445
      %v3450 = vadd.f32 %v3397, %v3447
      %s3451 = scalar_lea.vmem %s37, 192
      %v3452 = vld [vmem:[%s3451] sm:$0xff]
      %v3453 = vld [vmem:[%s3451 + $0x8] sm:$0xff]
      %v3454 = vld [vmem:[%s3451 + $0x10] sm:$0xff]
      %v3455 = vld [vmem:[%s3451 + $0x18] sm:$0xff]
      %v3456 = vpack.c.bf16 %v3453, %v3452
      %v3457 = vpack.c.bf16 %v3455, %v3454
      %3458 = vmatpush.bf16.msra.mxu0 0
      %3459 = vmatpush.bf16.msra.mxu0 0
      %3460 = vmatpush.bf16.msra.mxu0 0
      %3461 = vmatpush.bf16.msra.mxu0 0
      %3462 = vmatpush.bf16.msra.mxu0 0
      %3463 = vmatpush.bf16.msra.mxu0 0
      %3464 = vmatpush.bf16.msra.mxu0 %v3457
      %3465 = vmatpush.bf16.msra.mxu0 %v3456
      %3466 = vmatmul.bf16.gmra.mxu0 %v3140
      %v3467 = vpop.f32.mrf.mxu0
      %v3468 = vadd.f32 0.0, %v3467
      %v3469 = vpop.f32.mrf.mxu0
      %v3470 = vadd.f32 0.0, %v3469
      %3471 = vmatmul.bf16.gmra.mxu0 %v3143
      %v3472 = vpop.f32.mrf.mxu0
      %v3473 = vadd.f32 0.0, %v3472
      %v3474 = vpop.f32.mrf.mxu0
      %3475 = vdwg.mxu0
      %s3476 = scalar_lea.vmem %s45, 96
      %v3477 = vld [vmem:[%s3476] sm:$0xff]
      %v3478 = vld [vmem:[%s3476 + $0x8] sm:$0xff]
      %v3479 = vpack.c.bf16 %v3478, %v3477
      %v3480 = vpack.c.bf16 %v3470, %v3468
      %v3481 = vpack.c.bf16 %v3473, %v3473
      %v3483 = vsel %vm1480, %v3479, 0
      %v3486 = vsel %vm1528, %v3481, 0
      %3488 = vmatpush.bf16.msra.mxu0 0
      %3489 = vmatpush.bf16.msra.mxu0 0
      %3490 = vmatpush.bf16.msra.mxu0 0
      %3491 = vmatpush.bf16.msra.mxu0 0
      %3492 = vmatpush.bf16.msra.mxu0 0
      %3493 = vmatpush.bf16.msra.mxu0 0
      %3494 = vmatpush.bf16.msra.mxu0 %v3486
      %3495 = vmatpush.bf16.msra.mxu0 %v3480
      %3496 = vmatmul.bf16.gmra.mxu0 %v3483
      %v3497 = vpop.f32.mrf.mxu0
      %v3498 = vadd.f32 0.0, %v3497
      %v3499 = vpop.f32.mrf.mxu0
      %v3500 = vadd.f32 0.0, %v3499
      %3501 = vdwg.mxu0
      %v3502 = vadd.f32 %v3449, %v3498
      %v3503 = vadd.f32 %v3450, %v3500
      %s3504 = scalar_lea.vmem %s37, 224
      %v3505 = vld [vmem:[%s3504] sm:$0xff]
      %v3506 = vld [vmem:[%s3504 + $0x8] sm:$0xff]
      %v3507 = vld [vmem:[%s3504 + $0x10] sm:$0xff]
      %v3508 = vld [vmem:[%s3504 + $0x18] sm:$0xff]
      %v3509 = vpack.c.bf16 %v3506, %v3505
      %v3510 = vpack.c.bf16 %v3508, %v3507
      %3511 = vmatpush.bf16.msra.mxu0 0
      %3512 = vmatpush.bf16.msra.mxu0 0
      %3513 = vmatpush.bf16.msra.mxu0 0
      %3514 = vmatpush.bf16.msra.mxu0 0
      %3515 = vmatpush.bf16.msra.mxu0 0
      %3516 = vmatpush.bf16.msra.mxu0 0
      %3517 = vmatpush.bf16.msra.mxu0 %v3510
      %3518 = vmatpush.bf16.msra.mxu0 %v3509
      %3519 = vmatmul.bf16.gmra.mxu0 %v3140
      %v3520 = vpop.f32.mrf.mxu0
      %v3521 = vadd.f32 0.0, %v3520
      %v3522 = vpop.f32.mrf.mxu0
      %v3523 = vadd.f32 0.0, %v3522
      %3524 = vmatmul.bf16.gmra.mxu0 %v3143
      %v3525 = vpop.f32.mrf.mxu0
      %v3526 = vadd.f32 0.0, %v3525
      %v3527 = vpop.f32.mrf.mxu0
      %3528 = vdwg.mxu0
      %s3529 = scalar_lea.vmem %s45, 112
      %v3530 = vld [vmem:[%s3529] sm:$0xff]
      %v3531 = vld [vmem:[%s3529 + $0x8] sm:$0xff]
      %v3532 = vpack.c.bf16 %v3531, %v3530
      %v3533 = vpack.c.bf16 %v3523, %v3521
      %v3534 = vpack.c.bf16 %v3526, %v3526
      %v3536 = vsel %vm1480, %v3532, 0
      %v3539 = vsel %vm1528, %v3534, 0
      %3541 = vmatpush.bf16.msra.mxu0 0
      %3542 = vmatpush.bf16.msra.mxu0 0
      %3543 = vmatpush.bf16.msra.mxu0 0
      %3544 = vmatpush.bf16.msra.mxu0 0
      %3545 = vmatpush.bf16.msra.mxu0 0
      %3546 = vmatpush.bf16.msra.mxu0 0
      %3547 = vmatpush.bf16.msra.mxu0 %v3539
      %3548 = vmatpush.bf16.msra.mxu0 %v3533
      %3549 = vmatmul.bf16.gmra.mxu0 %v3536
      %v3550 = vpop.f32.mrf.mxu0
      %v3551 = vadd.f32 0.0, %v3550
      %v3552 = vpop.f32.mrf.mxu0
      %v3553 = vadd.f32 0.0, %v3552
      %3554 = vdwg.mxu0
      %v3555 = vadd.f32 %v3502, %v3551
      %v3556 = vadd.f32 %v3503, %v3553
      %s3557 = scalar_lea.vmem %s37, 256
      %v3558 = vld [vmem:[%s3557] sm:$0xff]
      %v3559 = vld [vmem:[%s3557 + $0x8] sm:$0xff]
      %v3560 = vld [vmem:[%s3557 + $0x10] sm:$0xff]
      %v3561 = vld [vmem:[%s3557 + $0x18] sm:$0xff]
      %v3562 = vpack.c.bf16 %v3559, %v3558
      %v3563 = vpack.c.bf16 %v3561, %v3560
      %3564 = vmatpush.bf16.msra.mxu0 0
      %3565 = vmatpush.bf16.msra.mxu0 0
      %3566 = vmatpush.bf16.msra.mxu0 0
      %3567 = vmatpush.bf16.msra.mxu0 0
      %3568 = vmatpush.bf16.msra.mxu0 0
      %3569 = vmatpush.bf16.msra.mxu0 0
      %3570 = vmatpush.bf16.msra.mxu0 %v3563
      %3571 = vmatpush.bf16.msra.mxu0 %v3562
      %3572 = vmatmul.bf16.gmra.mxu0 %v3140
      %v3573 = vpop.f32.mrf.mxu0
      %v3574 = vadd.f32 0.0, %v3573
      %v3575 = vpop.f32.mrf.mxu0
      %v3576 = vadd.f32 0.0, %v3575
      %3577 = vmatmul.bf16.gmra.mxu0 %v3143
      %v3578 = vpop.f32.mrf.mxu0
      %v3579 = vadd.f32 0.0, %v3578
      %v3580 = vpop.f32.mrf.mxu0
      %3581 = vdwg.mxu0
      %s3582 = scalar_lea.vmem %s45, 128
      %v3583 = vld [vmem:[%s3582] sm:$0xff]
      %v3584 = vld [vmem:[%s3582 + $0x8] sm:$0xff]
      %v3585 = vpack.c.bf16 %v3584, %v3583
      %v3586 = vpack.c.bf16 %v3576, %v3574
      %v3587 = vpack.c.bf16 %v3579, %v3579
      %v3589 = vsel %vm1480, %v3585, 0
      %v3592 = vsel %vm1528, %v3587, 0
      %3594 = vmatpush.bf16.msra.mxu0 0
      %3595 = vmatpush.bf16.msra.mxu0 0
      %3596 = vmatpush.bf16.msra.mxu0 0
      %3597 = vmatpush.bf16.msra.mxu0 0
      %3598 = vmatpush.bf16.msra.mxu0 0
      %3599 = vmatpush.bf16.msra.mxu0 0
      %3600 = vmatpush.bf16.msra.mxu0 %v3592
      %3601 = vmatpush.bf16.msra.mxu0 %v3586
      %3602 = vmatmul.bf16.gmra.mxu0 %v3589
      %v3603 = vpop.f32.mrf.mxu0
      %v3604 = vadd.f32 0.0, %v3603
      %v3605 = vpop.f32.mrf.mxu0
      %v3606 = vadd.f32 0.0, %v3605
      %3607 = vdwg.mxu0
      %v3608 = vadd.f32 %v3555, %v3604
      %v3609 = vadd.f32 %v3556, %v3606
      %v3610 = vld [vmem:[%s39] sm:$0x1]
      %v3612 = vperm.slane %v3610, 0
      %v3614 = vadd.f32 %v3608, %v3612
      %v3615 = vadd.f32 %v3609, %v3612
      %v3616 = vmax.f32 %v3614, 0.0
      %v3617 = vmax.f32 %v3615, 0.0
      %v3618 = vld [vmem:[%s41] sm:$0xff]
      %v3619 = vld [vmem:[%s41 + $0x8] sm:$0xff]
      %v3620 = vld [vmem:[%s41 + $0x10] sm:$0xff]
      %v3621 = vld [vmem:[%s41 + $0x18] sm:$0xff]
      %v3622 = vpack.c.bf16 %v3617, %v3616
      %v3623 = vpack.c.bf16 %v3619, %v3618
      %v3624 = vpack.c.bf16 %v3621, %v3620
      %v3625 = vld [vmem:[%s43] sm:$0x1]
      %v3627 = vperm.slane %v3625, 0
      %v3630 = vsel %vm1315, %v3622, 0
      %3632 = vmatpush.bf16.msra.mxu0 0
      %3633 = vmatpush.bf16.msra.mxu0 0
      %3634 = vmatpush.bf16.msra.mxu0 0
      %3635 = vmatpush.bf16.msra.mxu0 0
      %3636 = vmatpush.bf16.msra.mxu0 0
      %3637 = vmatpush.bf16.msra.mxu0 0
      %3638 = vmatpush.bf16.msra.mxu0 %v3624
      %3639 = vmatpush.bf16.msra.mxu0 %v3623
      %3640 = vmatmul.bf16.gmra.mxu0 %v3630
      %v3641 = vpop.f32.mrf.mxu0
      %v3642 = vadd.f32 %v3627, %v3641
      %v3643 = vpop.f32.mrf.mxu0
      %v3644 = vadd.f32 %v3627, %v3643
      %3645 = vdwg.mxu0
      %vm3646 = vcmask 15360
      %3647 = vst.msk [vmem:[%s1012] sm:$0xff] %vm3646, %v3642
      %3648 = vst.msk [vmem:[%s1012 + $0x8] sm:$0xff] %vm3646, %v3644
      %v3649 = vsel %vm3646, %v3642, -inf
      %v3650 = vsel %vm3646, %v3644, -inf
      %v3651 = vmax.f32 %v3649, %v3650
      %v3652 = vrot.slane %v3651, 4
      %v3653 = vmax.f32 %v3651, %v3652
      %v3654 = vrot.slane %v3653, 2
      %v3655 = vmax.f32 %v3653, %v3654
      %v3656 = vrot.slane %v3655, 1
      %v3657 = vmax.f32 %v3655, %v3656
      %v3658 = vsub.f32 %v3642, %v3657
      %v3659 = vsub.f32 %v3644, %v3657
      %v3660 = vmul.f32 %v3658, 1.442695
      %v3661 = vpow.pop %v3660
      %v3662 = vmul.f32 %v3659, 1.442695
      %v3663 = vpow.pop %v3662
      %v3664 = vsel %vm3646, %v3661, 0.0
      %v3665 = vsel %vm3646, %v3663, 0.0
      %v3666 = vadd.f32 %v3664, %v3665
      %v3667 = vrot.slane %v3666, 4
      %v3668 = vadd.f32 %v3666, %v3667
      %v3669 = vrot.slane %v3668, 2
      %v3670 = vadd.f32 %v3668, %v3669
      %v3671 = vrot.slane %v3670, 1
      %v3672 = vadd.f32 %v3670, %v3671
      %v3673 = vrcp.pop %v3672
      %v3674 = vmul.f32 %v3661, %v3673
      %v3675 = vmul.f32 %v3663, %v3673
      %v3676 = vld [vmem:[%s47] sm:$0xff]
      %v3677 = vld [vmem:[%s47 + $0x8] sm:$0xff]
      %3679 = vset.pattern.permute.xlu0 0
      %3680 = vperm.xlu0 %3679, %v3676
      %v3681 = vpop.permute.xlu0 %3680
      %3684 = vset.pattern.permute.xlu0 0
      %3685 = vperm.xlu0 %3684, %v3677
      %v3686 = vpop.permute.xlu0 %3685
      %v3688 = vmul.f32 %v3674, %v3681
      %v3689 = vmul.f32 %v3675, %v3686
      %v3690 = vsel %vm3646, %v3688, 0.0
      %v3691 = vsel %vm3646, %v3689, 0.0
      %v3692 = vadd.f32 %v3690, %v3691
      %v3693 = vrot.slane %v3692, 4
      %v3694 = vadd.f32 %v3692, %v3693
      %v3695 = vrot.slane %v3694, 2
      %v3696 = vadd.f32 %v3694, %v3695
      %v3697 = vrot.slane %v3696, 1
      %v3698 = vadd.f32 %v3696, %v3697
      %v3699 = vld [vmem:[%s49] sm:$0xff]
      %v3700 = vld [vmem:[%s49 + $0x8] sm:$0xff]
      %3702 = vset.pattern.permute.xlu0 0
      %3703 = vperm.xlu0 %3702, %v3699
      %v3704 = vpop.permute.xlu0 %3703
      %3707 = vset.pattern.permute.xlu0 0
      %3708 = vperm.xlu0 %3707, %v3700
      %v3709 = vpop.permute.xlu0 %3708
      %v3711 = vmul.f32 %v3674, %v3704
      %v3712 = vmul.f32 %v3675, %v3709
      %v3713 = vsel %vm3646, %v3711, 0.0
      %v3714 = vsel %vm3646, %v3712, 0.0
      %v3715 = vadd.f32 %v3713, %v3714
      %v3716 = vrot.slane %v3715, 4
      %v3717 = vadd.f32 %v3715, %v3716
      %v3718 = vrot.slane %v3717, 2
      %v3719 = vadd.f32 %v3717, %v3718
      %v3720 = vrot.slane %v3719, 1
      %v3721 = vadd.f32 %v3719, %v3720
      %vm3722 = vcmask 1040384
      %v3723 = vsel %vm3722, %v3698, %v3721
      %vm3724 = vcmask 9216
      %3725 = vst.msk [vmem:[%s1016] sm:$0x3] %vm3724, %v3723
      %p3726 = scmp.lt.s32.totalorder %s79, 1
      %s3727 = scalar_select %p3726, %s79, 1
      %s3728 = smul.addr %s3727, 3
      %s3729 = smul.addr %s3728, 8
      %s3730 = scalar_lea.vmem %s59, %s3729
      %p3731 = scmp.lt.s32.totalorder %s79, 1
      %s3732 = scalar_select %p3731, %s79, 1
      %s3733 = smul.addr %s3732, 2
      %s3734 = smul.addr %s3733, 8
      %s3735 = scalar_lea.vmem %s61, %s3734
      %p3736 = scmp.lt.s32.totalorder %s79, 1
      %s3737 = scalar_select %p3736, %s79, 1
      %s3738 = smul.addr %s3737, 2
      %s3739 = scalar_lea.vmem %s63, %s3738
      %p3740 = scmp.lt.s32.totalorder %s79, 1
      %s3741 = scalar_select %p3740, %s79, 1
      %s3742 = scalar_lea.vmem %s65, %s3741
      // Predicated region
      $region137: #{focustrack_forward.1} parent=135 // pred_check
        %p3743 = pneg %p711
      $region138: #{focustrack_forward.1} parent=135 // pred_check_branch
        %3745 = sbr.rel (%p3743) target = $region140
      $region139: #{focustrack_forward.1} parent=135 // pred_region
        _
      $region140: #{focustrack_forward.1} parent=135 // pred_fallthru
        _
      // Predicated region
      $region141: #{focustrack_forward.1} parent=135 // pred_check
        %p3746 = pneg %p737
      $region142: #{focustrack_forward.1} parent=135 // pred_check_branch
        %3748 = sbr.rel (%p3746) target = $region144
      $region143: #{focustrack_forward.1} parent=135 // pred_region
        _
      $region144: #{focustrack_forward.1} parent=135 // pred_fallthru
        _
      // Predicated region
      $region145: #{focustrack_forward.1} parent=135 // pred_check
        %p3749 = pneg %p763
      $region146: #{focustrack_forward.1} parent=135 // pred_check_branch
        %3751 = sbr.rel (%p3749) target = $region148
      $region147: #{focustrack_forward.1} parent=135 // pred_region
        _
      $region148: #{focustrack_forward.1} parent=135 // pred_fallthru
        _
      // Predicated region
      $region149: #{focustrack_forward.1} parent=135 // pred_check
        %p3752 = pneg %p789
      $region150: #{focustrack_forward.1} parent=135 // pred_check_branch
        %3754 = sbr.rel (%p3752) target = $region152
      $region151: #{focustrack_forward.1} parent=135 // pred_region
        _
      $region152: #{focustrack_forward.1} parent=135 // pred_fallthru
        _
    $region136: #{focustrack_forward.1} parent=5 // pred_fallthru
      _
    %p3755 = scmp.le.s32.totalorder 2, %s74
    // Predicated region
    $region153: #{focustrack_forward.1} parent=5 // pred_check
      %p3756 = pneg %p3755
    $region154: #{focustrack_forward.1} parent=5 // pred_check_branch
      %3758 = sbr.rel (%p3756) target = $region156
    $region155: #{focustrack_forward.1} parent=5 // pred_region
      %s3759 = ssub.s32 %s74, 2
      // Predicated region
      $region157: #{focustrack_forward.1} parent=155 // pred_check
        %p3760 = pneg %p717
      $region158: #{focustrack_forward.1} parent=155 // pred_check_branch
        %3762 = sbr.rel (%p3760) target = $region160
      $region159: #{focustrack_forward.1} parent=155 // pred_region
        %p3763 = scmp.lt.s32.totalorder %s80, 1
        %s3764 = scalar_select %p3763, %s80, 1
        %s3765 = smul.addr %s3764, 3
        %s3766 = smul.addr %s3765, 8
        %s3767 = scalar_lea.vmem %s59, %s3766
      $region160: #{focustrack_forward.1} parent=155 // pred_fallthru
        _
      // Predicated region
      $region161: #{focustrack_forward.1} parent=155 // pred_check
        %p3768 = pneg %p743
      $region162: #{focustrack_forward.1} parent=155 // pred_check_branch
        %3770 = sbr.rel (%p3768) target = $region164
      $region163: #{focustrack_forward.1} parent=155 // pred_region
        %p3771 = scmp.lt.s32.totalorder %s80, 1
        %s3772 = scalar_select %p3771, %s80, 1
        %s3773 = smul.addr %s3772, 2
        %s3774 = smul.addr %s3773, 8
        %s3775 = scalar_lea.vmem %s61, %s3774
      $region164: #{focustrack_forward.1} parent=155 // pred_fallthru
        _
      // Predicated region
      $region165: #{focustrack_forward.1} parent=155 // pred_check
        %p3776 = pneg %p769
      $region166: #{focustrack_forward.1} parent=155 // pred_check_branch
        %3778 = sbr.rel (%p3776) target = $region168
      $region167: #{focustrack_forward.1} parent=155 // pred_region
        %p3779 = scmp.lt.s32.totalorder %s80, 1
        %s3780 = scalar_select %p3779, %s80, 1
        %s3781 = smul.addr %s3780, 2
        %s3782 = scalar_lea.vmem %s63, %s3781
      $region168: #{focustrack_forward.1} parent=155 // pred_fallthru
        _
      // Predicated region
      $region169: #{focustrack_forward.1} parent=155 // pred_check
        %p3783 = pneg %p795
      $region170: #{focustrack_forward.1} parent=155 // pred_check_branch
        %3785 = sbr.rel (%p3783) target = $region172
      $region171: #{focustrack_forward.1} parent=155 // pred_region
        %p3786 = scmp.lt.s32.totalorder %s80, 1
        %s3787 = scalar_select %p3786, %s80, 1
        %s3788 = scalar_lea.vmem %s65, %s3787
      $region172: #{focustrack_forward.1} parent=155 // pred_fallthru
        _
    $region156: #{focustrack_forward.1} parent=5 // pred_fallthru
      _
  $region6: #{focustrack_forward.1} parent=0 // loop_footer
    %s78 = sadd.s32 1, %s74
  $region7: #{focustrack_forward.1} parent=0 // loop_footer_branch
    %73 = sbr.rel target = $region3
  $region8: #{focustrack_forward.1} parent=0 // loop_exit
    _

</llo_original>
